<compile_context>
chip_gen: v5e
topology: v5e:2x2
jax: 0.10.0
libtpu: 0.0.40
codegen_flags: <defaults>
</compile_context>

<pallas_src>
import functools

import jax
import jax.numpy as jnp
from jax.experimental import pallas as pl
from jax.experimental.pallas import tpu as pltpu

HIDDEN2 = 128
NUM_CLASSES = 2
OUT6_PAD = 128            # lane-dense padded width of the fc6 output
NEG_SLOPE = 0.01          # PyTorch nn.LeakyReLU default
MAX_BATCH_TILE = 1024     # big tiles amortize per-grid-step overhead
SUBLANE = 16              # bf16 sublane packing granularity

# (in_features, out_features) for fc1..fc6
_LAYER_DIMS = [(HIDDEN2, HIDDEN2), (HIDDEN2, 1024), (1024, 512),
               (512, 256), (256, 128), (128, NUM_CLASSES)]


def _lrelu(h):
    return jnp.where(h > 0, h, NEG_SLOPE * h)


def mlp_kernel(x_ref, w1, b1, w2, b2, w3, b3, w4, b4, w5, b5, w6, b6,
               out5_ref, out6_ref):
    def layer(h_bf16, w_ref, b_ref):
        # bf16 MXU operands, f32 accumulation, f32 bias add.
        return jnp.dot(h_bf16, w_ref[...],
                       preferred_element_type=jnp.float32) + b_ref[...]

    h = _lrelu(layer(x_ref[...], w1, b1)).astype(jnp.bfloat16)   # fc1 + act
    h = _lrelu(layer(h, w2, b2)).astype(jnp.bfloat16)            # fc2 + act
    h = _lrelu(layer(h, w3, b3)).astype(jnp.bfloat16)            # fc3 + act
    h = _lrelu(layer(h, w4, b4)).astype(jnp.bfloat16)            # fc4 + act
    h5 = _lrelu(layer(h, w5, b5))                                # fc5 + act (f32)
    out5_ref[...] = h5.astype(out5_ref.dtype)                    # f32 out5
    # fc6 (no activation), stored bf16 to a 128-lane padded slab.
    out6_ref[...] = layer(h5.astype(jnp.bfloat16), w6, b6).astype(out6_ref.dtype)


def init_params(key, num_classes=NUM_CLASSES):
    """PyTorch-Linear-style init: U(-1/sqrt(fan_in), +1/sqrt(fan_in)).

    Weights stored pre-transposed as (in_features, out_features) in bfloat16;
    biases (1, out_features) in float32.  fc6 zero-padded to OUT6_PAD columns
    so the kernel's out6 store is lane-dense.
    """
    params = []
    for i, (fan_in, fan_out) in enumerate(_LAYER_DIMS):
        kw, kb = jax.random.split(jax.random.fold_in(key, i))
        bound = 1.0 / (fan_in ** 0.5)
        w = jax.random.uniform(kw, (fan_in, fan_out), jnp.float32, -bound, bound)
        b = jax.random.uniform(kb, (1, fan_out), jnp.float32, -bound, bound)
        if i == len(_LAYER_DIMS) - 1 and fan_out < OUT6_PAD:
            w = jnp.pad(w, ((0, 0), (0, OUT6_PAD - fan_out)))
            b = jnp.pad(b, ((0, 0), (0, OUT6_PAD - fan_out)))
        params.append((w.astype(jnp.bfloat16), b.astype(jnp.float32)))
    return params


def _round_up(x, m):
    return ((x + m - 1) // m) * m


def _choose_batch_tile(b):
    """Tile multiple of SUBLANE, <= MAX_BATCH_TILE, aiming for >= 2 grid steps
    (v7x megacore) while keeping batch padding small."""
    bp_min = _round_up(b, SUBLANE)
    tb = _round_up(max(1, pl.cdiv(bp_min, 2)), SUBLANE)
    tb = max(SUBLANE, min(MAX_BATCH_TILE, tb))
    return tb


@functools.partial(jax.jit, static_argnames=("num_classes",))
def server_resnet_cat_forward(x1, x2, params, num_classes=NUM_CLASSES):
    """(out5, out6) = Server_ResNet_cat(x1, x2) as one fused Pallas kernel."""
    if x1.shape[0] != x2.shape[0]:
        raise ValueError("x1 and x2 must share the batch dimension")
    b = x1.shape[0]
    d1, d2 = x1.shape[1], x2.shape[1]
    if d1 + d2 != HIDDEN2:
        raise ValueError(f"x1/x2 feature dims must sum to {HIDDEN2}")

    (w1, b1), (w2, b2), (w3, b3), (w4, b4), (w5, b5), (w6, b6) = params
    # Enforce the lane-dense padded fc6 slab even if caller passed raw params.
    if w6.shape[1] != OUT6_PAD:
        w6 = jnp.pad(w6, ((0, 0), (0, OUT6_PAD - w6.shape[1])))
        b6 = jnp.pad(b6, ((0, 0), (0, OUT6_PAD - b6.shape[1])))

    # Concatenate in the wrapper: kernel gets a single (TB, 128) bf16 input.
    x = jnp.concatenate([x1, x2], axis=1).astype(jnp.bfloat16)

    tb = _choose_batch_tile(b)
    bp = _round_up(b, tb)
    if bp != b:
        x = jnp.pad(x, ((0, bp - b), (0, 0)))

    flat = [x, w1, b1, w2, b2, w3, b3, w4, b4, w5, b5, w6, b6]

    def batch_spec(width):
        return pl.BlockSpec((tb, width), lambda i: (i, 0))

    def resident_spec(arr):
        # Constant index_map: DMA'd once, stays VMEM-resident; single buffer.
        return pl.BlockSpec(arr.shape, lambda i: (0, 0),
                            pipeline_mode=pl.Buffered(1))

    in_specs = [batch_spec(HIDDEN2)] + [resident_spec(a) for a in flat[1:]]
    out_specs = (batch_spec(128), batch_spec(OUT6_PAD))

    flops = 2 * bp * (sum(ki * ko for ki, ko in _LAYER_DIMS[:-1])
                      + 128 * OUT6_PAD)
    weight_bytes = sum(a.size * a.dtype.itemsize for a in flat[1:])
    io_bytes = bp * HIDDEN2 * 2 + bp * 128 * 4 + bp * OUT6_PAD * 2
    cost = pl.CostEstimate(flops=flops, transcendentals=0,
                           bytes_accessed=weight_bytes + io_bytes)

    out5, out6 = pl.pallas_call(
        mlp_kernel,
        out_shape=(jax.ShapeDtypeStruct((bp, 128), jnp.float32),
                   jax.ShapeDtypeStruct((bp, OUT6_PAD), jnp.bfloat16)),
        grid=(bp // tb,),
        in_specs=in_specs,
        out_specs=out_specs,
        compiler_params=pltpu.CompilerParams(
            dimension_semantics=("parallel",),
            vmem_limit_bytes=24 * 1024 * 1024),
        cost_estimate=cost,
    )(*flat)
    return out5[:b], out6[:b, :num_classes].astype(jnp.float32)


def _reference_forward(x1, x2, params, num_classes=NUM_CLASSES):
    """Plain-JAX reference using the same bf16 weights / bf16 matmul operands."""
    def lin(h, w, bb):
        return jnp.dot(h.astype(jnp.bfloat16), w,
                       preferred_element_type=jnp.float32) + bb

    (w1, b1), (w2, b2), (w3, b3), (w4, b4), (w5, b5), (w6, b6) = params
    h = jnp.concatenate([x1, x2], axis=1)
    h = _lrelu(lin(h, w1, b1))
    h = _lrelu(lin(h, w2, b2))
    h = _lrelu(lin(h, w3, b3))
    h = _lrelu(lin(h, w4, b4))
    h5 = _lrelu(lin(h, w5, b5))
    out6 = lin(h5, w6, b6)[:, :num_classes]
    return h5, out6


if __name__ == "__main__":
    key = jax.random.PRNGKey(0)
    k1, k2, kp = jax.random.split(key, 3)

    batch = 8
    d_half = HIDDEN2 // 2                # cat([x1, x2]) -> 128 features
    x1 = jax.random.normal(k1, (batch, d_half), dtype=jnp.float32)
    x2 = jax.random.normal(k2, (batch, d_half), dtype=jnp.float32)
    params = init_params(kp)

    out5, out6 = server_resnet_cat_forward(x1, x2, params)
    jax.block_until_ready((out5, out6))

    ref5, ref6 = _reference_forward(x1, x2, params)
    assert out5.shape == (batch, 128) and out6.shape == (batch, NUM_CLASSES)
    assert jnp.allclose(out5, ref5, atol=2e-2, rtol=2e-2), \
        float(jnp.max(jnp.abs(out5 - ref5)))
    assert jnp.allclose(out6, ref6, atol=2e-2, rtol=2e-2), \
        float(jnp.max(jnp.abs(out6 - ref6)))

    print("KERNEL_OK")
</pallas_src>

<mosaic_0001>
module attributes {stable_mosaic.version = 11 : i64} {
  func.func @mlp_kernel(%arg0: i32, %arg1: memref<16x128xbf16, #tpu.memory_space<vmem>>, %arg2: memref<128x128xbf16, #tpu.memory_space<vmem>>, %arg3: memref<1x128xf32, #tpu.memory_space<vmem>>, %arg4: memref<128x1024xbf16, #tpu.memory_space<vmem>>, %arg5: memref<1x1024xf32, #tpu.memory_space<vmem>>, %arg6: memref<1024x512xbf16, #tpu.memory_space<vmem>>, %arg7: memref<1x512xf32, #tpu.memory_space<vmem>>, %arg8: memref<512x256xbf16, #tpu.memory_space<vmem>>, %arg9: memref<1x256xf32, #tpu.memory_space<vmem>>, %arg10: memref<256x128xbf16, #tpu.memory_space<vmem>>, %arg11: memref<1x128xf32, #tpu.memory_space<vmem>>, %arg12: memref<128x128xbf16, #tpu.memory_space<vmem>>, %arg13: memref<1x128xf32, #tpu.memory_space<vmem>>, %arg14: memref<16x128xf32, #tpu.memory_space<vmem>>, %arg15: memref<16x128xbf16, #tpu.memory_space<vmem>>) attributes {dimension_semantics = [#tpu.dimension_semantics<parallel>], iteration_bounds = array<i64: 1>, scalar_prefetch = 0 : i64, scratch_operands = 0 : i64, tpu.core_type = #tpu.core_type<tc>, window_params = [{transform_indices = @transform_0, window_bounds = array<i64: 16, 128>}, {pipeline_mode = #tpu.pipeline_mode<synchronous>, transform_indices = @transform_1, window_bounds = array<i64: 128, 128>}, {pipeline_mode = #tpu.pipeline_mode<synchronous>, transform_indices = @transform_2, window_bounds = array<i64: 1, 128>}, {pipeline_mode = #tpu.pipeline_mode<synchronous>, transform_indices = @transform_3, window_bounds = array<i64: 128, 1024>}, {pipeline_mode = #tpu.pipeline_mode<synchronous>, transform_indices = @transform_4, window_bounds = array<i64: 1, 1024>}, {pipeline_mode = #tpu.pipeline_mode<synchronous>, transform_indices = @transform_5, window_bounds = array<i64: 1024, 512>}, {pipeline_mode = #tpu.pipeline_mode<synchronous>, transform_indices = @transform_6, window_bounds = array<i64: 1, 512>}, {pipeline_mode = #tpu.pipeline_mode<synchronous>, transform_indices = @transform_7, window_bounds = array<i64: 512, 256>}, {pipeline_mode = #tpu.pipeline_mode<synchronous>, transform_indices = @transform_8, window_bounds = array<i64: 1, 256>}, {pipeline_mode = #tpu.pipeline_mode<synchronous>, transform_indices = @transform_9, window_bounds = array<i64: 256, 128>}, {pipeline_mode = #tpu.pipeline_mode<synchronous>, transform_indices = @transform_10, window_bounds = array<i64: 1, 128>}, {pipeline_mode = #tpu.pipeline_mode<synchronous>, transform_indices = @transform_11, window_bounds = array<i64: 128, 128>}, {pipeline_mode = #tpu.pipeline_mode<synchronous>, transform_indices = @transform_12, window_bounds = array<i64: 1, 128>}, {transform_indices = @transform_13, window_bounds = array<i64: 16, 128>}, {transform_indices = @transform_14, window_bounds = array<i64: 16, 128>}]} {
    %c0 = arith.constant 0 : index
    %c0_0 = arith.constant 0 : index
    %0 = vector.load %arg1[%c0, %c0_0] : memref<16x128xbf16, #tpu.memory_space<vmem>>, vector<16x128xbf16>
    %c0_1 = arith.constant 0 : index
    %c0_2 = arith.constant 0 : index
    %1 = vector.load %arg2[%c0_1, %c0_2] : memref<128x128xbf16, #tpu.memory_space<vmem>>, vector<128x128xbf16>
    %cst = arith.constant dense<0.000000e+00> : vector<16x128xf32>
    %2 = tpu.matmul %0, %1, %cst {dimension_numbers = #tpu.dot_dimension_numbers<[1], [0], [0], [1], [0, 0, 1, 1], [], []>} : vector<16x128xbf16>, vector<128x128xbf16>, vector<16x128xf32> -> vector<16x128xf32>
    %c0_3 = arith.constant 0 : index
    %c0_4 = arith.constant 0 : index
    %3 = vector.load %arg3[%c0_3, %c0_4] : memref<1x128xf32, #tpu.memory_space<vmem>>, vector<1x128xf32>
    %4 = vector.broadcast %3 : vector<1x128xf32> to vector<16x128xf32>
    %5 = arith.addf %2, %4 : vector<16x128xf32>
    %cst_5 = arith.constant 0.000000e+00 : f32
    %6 = vector.broadcast %cst_5 : f32 to vector<16x128xf32>
    %7 = arith.cmpf ogt, %5, %6 : vector<16x128xf32>
    %cst_6 = arith.constant 0.00999999977 : f32
    %8 = vector.broadcast %cst_6 : f32 to vector<16x128xf32>
    %9 = arith.mulf %8, %5 : vector<16x128xf32>
    %10 = arith.select %7, %5, %9 : vector<16x128xi1>, vector<16x128xf32>
    %11 = arith.truncf %10 : vector<16x128xf32> to vector<16x128xbf16>
    %c0_7 = arith.constant 0 : index
    %c0_8 = arith.constant 0 : index
    %12 = vector.load %arg4[%c0_7, %c0_8] : memref<128x1024xbf16, #tpu.memory_space<vmem>>, vector<128x1024xbf16>
    %cst_9 = arith.constant dense<0.000000e+00> : vector<16x1024xf32>
    %13 = tpu.matmul %11, %12, %cst_9 {dimension_numbers = #tpu.dot_dimension_numbers<[1], [0], [0], [1], [0, 0, 1, 1], [], []>} : vector<16x128xbf16>, vector<128x1024xbf16>, vector<16x1024xf32> -> vector<16x1024xf32>
    %c0_10 = arith.constant 0 : index
    %c0_11 = arith.constant 0 : index
    %14 = vector.load %arg5[%c0_10, %c0_11] : memref<1x1024xf32, #tpu.memory_space<vmem>>, vector<1x1024xf32>
    %15 = vector.broadcast %14 : vector<1x1024xf32> to vector<16x1024xf32>
    %16 = arith.addf %13, %15 : vector<16x1024xf32>
    %cst_12 = arith.constant 0.000000e+00 : f32
    %17 = vector.broadcast %cst_12 : f32 to vector<16x1024xf32>
    %18 = arith.cmpf ogt, %16, %17 : vector<16x1024xf32>
    %cst_13 = arith.constant 0.00999999977 : f32
    %19 = vector.broadcast %cst_13 : f32 to vector<16x1024xf32>
    %20 = arith.mulf %19, %16 : vector<16x1024xf32>
    %21 = arith.select %18, %16, %20 : vector<16x1024xi1>, vector<16x1024xf32>
    %22 = arith.truncf %21 : vector<16x1024xf32> to vector<16x1024xbf16>
    %c0_14 = arith.constant 0 : index
    %c0_15 = arith.constant 0 : index
    %23 = vector.load %arg6[%c0_14, %c0_15] : memref<1024x512xbf16, #tpu.memory_space<vmem>>, vector<1024x512xbf16>
    %cst_16 = arith.constant dense<0.000000e+00> : vector<16x512xf32>
    %24 = tpu.matmul %22, %23, %cst_16 {dimension_numbers = #tpu.dot_dimension_numbers<[1], [0], [0], [1], [0, 0, 1, 1], [], []>} : vector<16x1024xbf16>, vector<1024x512xbf16>, vector<16x512xf32> -> vector<16x512xf32>
    %c0_17 = arith.constant 0 : index
    %c0_18 = arith.constant 0 : index
    %25 = vector.load %arg7[%c0_17, %c0_18] : memref<1x512xf32, #tpu.memory_space<vmem>>, vector<1x512xf32>
    %26 = vector.broadcast %25 : vector<1x512xf32> to vector<16x512xf32>
    %27 = arith.addf %24, %26 : vector<16x512xf32>
    %cst_19 = arith.constant 0.000000e+00 : f32
    %28 = vector.broadcast %cst_19 : f32 to vector<16x512xf32>
    %29 = arith.cmpf ogt, %27, %28 : vector<16x512xf32>
    %cst_20 = arith.constant 0.00999999977 : f32
    %30 = vector.broadcast %cst_20 : f32 to vector<16x512xf32>
    %31 = arith.mulf %30, %27 : vector<16x512xf32>
    %32 = arith.select %29, %27, %31 : vector<16x512xi1>, vector<16x512xf32>
    %33 = arith.truncf %32 : vector<16x512xf32> to vector<16x512xbf16>
    %c0_21 = arith.constant 0 : index
    %c0_22 = arith.constant 0 : index
    %34 = vector.load %arg8[%c0_21, %c0_22] : memref<512x256xbf16, #tpu.memory_space<vmem>>, vector<512x256xbf16>
    %cst_23 = arith.constant dense<0.000000e+00> : vector<16x256xf32>
    %35 = tpu.matmul %33, %34, %cst_23 {dimension_numbers = #tpu.dot_dimension_numbers<[1], [0], [0], [1], [0, 0, 1, 1], [], []>} : vector<16x512xbf16>, vector<512x256xbf16>, vector<16x256xf32> -> vector<16x256xf32>
    %c0_24 = arith.constant 0 : index
    %c0_25 = arith.constant 0 : index
    %36 = vector.load %arg9[%c0_24, %c0_25] : memref<1x256xf32, #tpu.memory_space<vmem>>, vector<1x256xf32>
    %37 = vector.broadcast %36 : vector<1x256xf32> to vector<16x256xf32>
    %38 = arith.addf %35, %37 : vector<16x256xf32>
    %cst_26 = arith.constant 0.000000e+00 : f32
    %39 = vector.broadcast %cst_26 : f32 to vector<16x256xf32>
    %40 = arith.cmpf ogt, %38, %39 : vector<16x256xf32>
    %cst_27 = arith.constant 0.00999999977 : f32
    %41 = vector.broadcast %cst_27 : f32 to vector<16x256xf32>
    %42 = arith.mulf %41, %38 : vector<16x256xf32>
    %43 = arith.select %40, %38, %42 : vector<16x256xi1>, vector<16x256xf32>
    %44 = arith.truncf %43 : vector<16x256xf32> to vector<16x256xbf16>
    %c0_28 = arith.constant 0 : index
    %c0_29 = arith.constant 0 : index
    %45 = vector.load %arg10[%c0_28, %c0_29] : memref<256x128xbf16, #tpu.memory_space<vmem>>, vector<256x128xbf16>
    %cst_30 = arith.constant dense<0.000000e+00> : vector<16x128xf32>
    %46 = tpu.matmul %44, %45, %cst_30 {dimension_numbers = #tpu.dot_dimension_numbers<[1], [0], [0], [1], [0, 0, 1, 1], [], []>} : vector<16x256xbf16>, vector<256x128xbf16>, vector<16x128xf32> -> vector<16x128xf32>
    %c0_31 = arith.constant 0 : index
    %c0_32 = arith.constant 0 : index
    %47 = vector.load %arg11[%c0_31, %c0_32] : memref<1x128xf32, #tpu.memory_space<vmem>>, vector<1x128xf32>
    %48 = vector.broadcast %47 : vector<1x128xf32> to vector<16x128xf32>
    %49 = arith.addf %46, %48 : vector<16x128xf32>
    %cst_33 = arith.constant 0.000000e+00 : f32
    %50 = vector.broadcast %cst_33 : f32 to vector<16x128xf32>
    %51 = arith.cmpf ogt, %49, %50 : vector<16x128xf32>
    %cst_34 = arith.constant 0.00999999977 : f32
    %52 = vector.broadcast %cst_34 : f32 to vector<16x128xf32>
    %53 = arith.mulf %52, %49 : vector<16x128xf32>
    %54 = arith.select %51, %49, %53 : vector<16x128xi1>, vector<16x128xf32>
    %c0_35 = arith.constant 0 : index
    %c0_36 = arith.constant 0 : index
    %55 = vector.load %arg14[%c0_35, %c0_36] : memref<16x128xf32, #tpu.memory_space<vmem>>, vector<16x128xf32>
    tpu.vector_store %arg14[%c0_35, %c0_36], %54 {strides = array<i32>} : memref<16x128xf32, #tpu.memory_space<vmem>>, vector<16x128xf32>,
    %56 = arith.truncf %54 : vector<16x128xf32> to vector<16x128xbf16>
    %c0_37 = arith.constant 0 : index
    %c0_38 = arith.constant 0 : index
    %57 = vector.load %arg12[%c0_37, %c0_38] : memref<128x128xbf16, #tpu.memory_space<vmem>>, vector<128x128xbf16>
    %cst_39 = arith.constant dense<0.000000e+00> : vector<16x128xf32>
    %58 = tpu.matmul %56, %57, %cst_39 {dimension_numbers = #tpu.dot_dimension_numbers<[1], [0], [0], [1], [0, 0, 1, 1], [], []>} : vector<16x128xbf16>, vector<128x128xbf16>, vector<16x128xf32> -> vector<16x128xf32>
    %c0_40 = arith.constant 0 : index
    %c0_41 = arith.constant 0 : index
    %59 = vector.load %arg13[%c0_40, %c0_41] : memref<1x128xf32, #tpu.memory_space<vmem>>, vector<1x128xf32>
    %60 = vector.broadcast %59 : vector<1x128xf32> to vector<16x128xf32>
    %61 = arith.addf %58, %60 : vector<16x128xf32>
    %62 = arith.truncf %61 : vector<16x128xf32> to vector<16x128xbf16>
    %c0_42 = arith.constant 0 : index
    %c0_43 = arith.constant 0 : index
    %63 = vector.load %arg15[%c0_42, %c0_43] : memref<16x128xbf16, #tpu.memory_space<vmem>>, vector<16x128xbf16>
    tpu.vector_store %arg15[%c0_42, %c0_43], %62 {strides = array<i32>} : memref<16x128xbf16, #tpu.memory_space<vmem>>, vector<16x128xbf16>,
    return
  }
  func.func @transform_0(%arg0: i32) -> (i32, i32) {
    %c0_i32 = arith.constant 0 : i32
    %c0_i32_0 = arith.constant 0 : i32
    return %arg0, %c0_i32 : i32, i32
  }
  func.func @transform_1(%arg0: i32) -> (i32, i32) {
    %c0_i32 = arith.constant 0 : i32
    %c0_i32_0 = arith.constant 0 : i32
    %c0_i32_1 = arith.constant 0 : i32
    return %c0_i32, %c0_i32_0 : i32, i32
  }
  func.func @transform_2(%arg0: i32) -> (i32, i32) {
    %c0_i32 = arith.constant 0 : i32
    %c0_i32_0 = arith.constant 0 : i32
    %c0_i32_1 = arith.constant 0 : i32
    return %c0_i32, %c0_i32_0 : i32, i32
  }
  func.func @transform_3(%arg0: i32) -> (i32, i32) {
    %c0_i32 = arith.constant 0 : i32
    %c0_i32_0 = arith.constant 0 : i32
    %c0_i32_1 = arith.constant 0 : i32
    return %c0_i32, %c0_i32_0 : i32, i32
  }
  func.func @transform_4(%arg0: i32) -> (i32, i32) {
    %c0_i32 = arith.constant 0 : i32
    %c0_i32_0 = arith.constant 0 : i32
    %c0_i32_1 = arith.constant 0 : i32
    return %c0_i32, %c0_i32_0 : i32, i32
  }
  func.func @transform_5(%arg0: i32) -> (i32, i32) {
    %c0_i32 = arith.constant 0 : i32
    %c0_i32_0 = arith.constant 0 : i32
    %c0_i32_1 = arith.constant 0 : i32
    return %c0_i32, %c0_i32_0 : i32, i32
  }
  func.func @transform_6(%arg0: i32) -> (i32, i32) {
    %c0_i32 = arith.constant 0 : i32
    %c0_i32_0 = arith.constant 0 : i32
    %c0_i32_1 = arith.constant 0 : i32
    return %c0_i32, %c0_i32_0 : i32, i32
  }
  func.func @transform_7(%arg0: i32) -> (i32, i32) {
    %c0_i32 = arith.constant 0 : i32
    %c0_i32_0 = arith.constant 0 : i32
    %c0_i32_1 = arith.constant 0 : i32
    return %c0_i32, %c0_i32_0 : i32, i32
  }
  func.func @transform_8(%arg0: i32) -> (i32, i32) {
    %c0_i32 = arith.constant 0 : i32
    %c0_i32_0 = arith.constant 0 : i32
    %c0_i32_1 = arith.constant 0 : i32
    return %c0_i32, %c0_i32_0 : i32, i32
  }
  func.func @transform_9(%arg0: i32) -> (i32, i32) {
    %c0_i32 = arith.constant 0 : i32
    %c0_i32_0 = arith.constant 0 : i32
    %c0_i32_1 = arith.constant 0 : i32
    return %c0_i32, %c0_i32_0 : i32, i32
  }
  func.func @transform_10(%arg0: i32) -> (i32, i32) {
    %c0_i32 = arith.constant 0 : i32
    %c0_i32_0 = arith.constant 0 : i32
    %c0_i32_1 = arith.constant 0 : i32
    return %c0_i32, %c0_i32_0 : i32, i32
  }
  func.func @transform_11(%arg0: i32) -> (i32, i32) {
    %c0_i32 = arith.constant 0 : i32
    %c0_i32_0 = arith.constant 0 : i32
    %c0_i32_1 = arith.constant 0 : i32
    return %c0_i32, %c0_i32_0 : i32, i32
  }
  func.func @transform_12(%arg0: i32) -> (i32, i32) {
    %c0_i32 = arith.constant 0 : i32
    %c0_i32_0 = arith.constant 0 : i32
    %c0_i32_1 = arith.constant 0 : i32
    return %c0_i32, %c0_i32_0 : i32, i32
  }
  func.func @transform_13(%arg0: i32) -> (i32, i32) {
    %c0_i32 = arith.constant 0 : i32
    %c0_i32_0 = arith.constant 0 : i32
    return %arg0, %c0_i32 : i32, i32
  }
  func.func @transform_14(%arg0: i32) -> (i32, i32) {
    %c0_i32 = arith.constant 0 : i32
    %c0_i32_0 = arith.constant 0 : i32
    return %arg0, %c0_i32 : i32, i32
  }
}

</mosaic_0001>

<llo_original>
// kernel: server_resnet_cat_forward.1
$region0: #{server_resnet_cat_forward.1}
  #allocation0 [shape = 'u32[]', space=smem, size = 0x4, offset = 0x4, fixed_abs, tag = 'smem constant byte address 0x4 - core index']
  #allocation1 [shape = 'u32[72,128]{1,0:T(1,128)}', space=vmem, size = 0x9000, scoped, tag = 'internal scratch']
  %s0 = inlined_call_operand.vmem [shape: bf16[16,128], index: 0, kind: input, shape index: {}]
  %s1 = inlined_call_operand.hbm [shape: bf16[128,128], index: 1, kind: input, shape index: {}]
  %s2 = inlined_call_operand.vmem [shape: f32[1,128], index: 2, kind: input, shape index: {}]
  %s3 = inlined_call_operand.hbm [shape: bf16[128,1024], index: 3, kind: input, shape index: {}]
  %s4 = inlined_call_operand.vmem [shape: f32[1,1024], index: 4, kind: input, shape index: {}]
  %s5 = inlined_call_operand.hbm [shape: bf16[1024,512], index: 5, kind: input, shape index: {}]
  %s6 = inlined_call_operand.vmem [shape: f32[1,512], index: 6, kind: input, shape index: {}]
  %s7 = inlined_call_operand.hbm [shape: bf16[512,256], index: 7, kind: input, shape index: {}]
  %s8 = inlined_call_operand.vmem [shape: f32[1,256], index: 8, kind: input, shape index: {}]
  %s9 = inlined_call_operand.hbm [shape: bf16[256,128], index: 9, kind: input, shape index: {}]
  %s10 = inlined_call_operand.vmem [shape: f32[1,128], index: 10, kind: input, shape index: {}]
  %s11 = inlined_call_operand.hbm [shape: bf16[128,128], index: 11, kind: input, shape index: {}]
  %s12 = inlined_call_operand.vmem [shape: f32[1,128], index: 12, kind: input, shape index: {}]
  %s13 = inlined_call_operand.vmem [shape: f32[16,128], index: 13, kind: output, shape index: {0}]
  %s14 = inlined_call_operand.vmem [shape: bf16[16,128], index: 14, kind: output, shape index: {1}]
  %15 = xla_tuple %s13, %s14
  %s16 = sld [smem:[#allocation0]]
  $region94: #{server_resnet_cat_forward.1} parent=0
    _
  %s18 = ssub.s32 1, %s16
  %s19 = scalar_select 0, %s18, %s16
  $region1: #{server_resnet_cat_forward.1} parent=0
    #allocation2 [shape = 'u8[32768]{0}', space=vmem, size = 0x8000, scoped, tag = 'input window, operand 1, single buffered']
    #allocation3 [shape = 's32[1]{0}', space=sflag, size = 0x4, scoped, tag = 'scoped memory for server_resnet_cat_forward.1']
    #allocation4 [shape = 'u8[262144]{0}', space=vmem, size = 0x40000, scoped, tag = 'input window, operand 3, single buffered']
    #allocation5 [shape = 's32[1]{0}', space=sflag, size = 0x4, scoped, tag = 'scoped memory for server_resnet_cat_forward.1']
    #allocation6 [shape = 'u8[1048576]{0}', space=vmem, size = 0x100000, scoped, tag = 'input window, operand 5, single buffered']
    #allocation7 [shape = 'u8[262144]{0}', space=vmem, size = 0x40000, scoped, tag = 'input window, operand 7, single buffered']
    #allocation8 [shape = 's32[1]{0}', space=sflag, size = 0x4, scoped, tag = 'scoped memory for server_resnet_cat_forward.1']
    #allocation9 [shape = 'u8[65536]{0}', space=vmem, size = 0x10000, scoped, tag = 'input window, operand 9, single buffered']
    #allocation10 [shape = 'u8[32768]{0}', space=vmem, size = 0x8000, scoped, tag = 'input window, operand 11, single buffered']
    #allocation11 [shape = 's32[1]{0}', space=sflag, size = 0x4, scoped, tag = 'scoped memory for server_resnet_cat_forward.1']
    %20 = vsyncpa [#allocation3], 0
    %21 = vsyncpa [#allocation5], 0
    %22 = vsyncpa [#allocation8], 0
    %23 = vsyncpa [#allocation11], 0
    // Predicated region
    $region2: #{server_resnet_cat_forward.1} parent=1 // pred_check
      _
    $region3: #{server_resnet_cat_forward.1} parent=1 // pred_check_branch
      %25 = sbr.rel (0) target = $region5
    $region4: #{server_resnet_cat_forward.1} parent=1 // pred_region
      _
    $region5: #{server_resnet_cat_forward.1} parent=1 // pred_fallthru
      _
    // Predicated region
    $region6: #{server_resnet_cat_forward.1} parent=1 // pred_check
      _
    $region7: #{server_resnet_cat_forward.1} parent=1 // pred_check_branch
      %27 = sbr.rel (0) target = $region9
    $region8: #{server_resnet_cat_forward.1} parent=1 // pred_region
      %29 = vsyncadd [#allocation3], 0
      %s30 = sshll.u32 %s1, 4
      %s31 = int_to_ptr.hbm [resolvable:$true] %s30
      %s32 = sshll.u32 [#allocation2], 4
      %s33 = int_to_ptr.vmem [resolvable:$true] %s32
      %38 = dma.hbm_to_vmem [thread:$0]  %s31, 1024, %s33, [#allocation3], 64, 64, 4
    $region9: #{server_resnet_cat_forward.1} parent=1 // pred_fallthru
      _
    // Predicated region
    $region10: #{server_resnet_cat_forward.1} parent=1 // pred_check
      _
    $region11: #{server_resnet_cat_forward.1} parent=1 // pred_check_branch
      %40 = sbr.rel (0) target = $region13
    $region12: #{server_resnet_cat_forward.1} parent=1 // pred_region
      _
    $region13: #{server_resnet_cat_forward.1} parent=1 // pred_fallthru
      _
    // Predicated region
    $region14: #{server_resnet_cat_forward.1} parent=1 // pred_check
      _
    $region15: #{server_resnet_cat_forward.1} parent=1 // pred_check_branch
      %42 = sbr.rel (0) target = $region17
    $region16: #{server_resnet_cat_forward.1} parent=1 // pred_region
      %44 = vsyncadd [#allocation5], 0
      %s45 = sshll.u32 %s3, 4
      %s46 = int_to_ptr.hbm [resolvable:$true] %s45
      %s47 = sshll.u32 [#allocation4], 4
      %s48 = int_to_ptr.vmem [resolvable:$true] %s47
      %53 = dma.hbm_to_vmem [thread:$0]  %s46, 8192, %s48, [#allocation5], 512, 512, 32
    $region17: #{server_resnet_cat_forward.1} parent=1 // pred_fallthru
      _
    // Predicated region
    $region18: #{server_resnet_cat_forward.1} parent=1 // pred_check
      _
    $region19: #{server_resnet_cat_forward.1} parent=1 // pred_check_branch
      %55 = sbr.rel (0) target = $region21
    $region20: #{server_resnet_cat_forward.1} parent=1 // pred_region
      _
    $region21: #{server_resnet_cat_forward.1} parent=1 // pred_fallthru
      _
    // Predicated region
    $region22: #{server_resnet_cat_forward.1} parent=1 // pred_check
      _
    $region23: #{server_resnet_cat_forward.1} parent=1 // pred_check_branch
      %57 = sbr.rel (0) target = $region25
    $region24: #{server_resnet_cat_forward.1} parent=1 // pred_region
      %59 = vsyncadd [#allocation5], 0
      %s60 = sshll.u32 %s5, 4
      %s61 = int_to_ptr.hbm [resolvable:$true] %s60
      %s62 = sshll.u32 [#allocation6], 4
      %s63 = int_to_ptr.vmem [resolvable:$true] %s62
      %68 = dma.hbm_to_vmem [thread:$0]  %s61, 32768, %s63, [#allocation5], 256, 256, 16
    $region25: #{server_resnet_cat_forward.1} parent=1 // pred_fallthru
      _
    // Predicated region
    $region26: #{server_resnet_cat_forward.1} parent=1 // pred_check
      _
    $region27: #{server_resnet_cat_forward.1} parent=1 // pred_check_branch
      %70 = sbr.rel (0) target = $region29
    $region28: #{server_resnet_cat_forward.1} parent=1 // pred_region
      _
    $region29: #{server_resnet_cat_forward.1} parent=1 // pred_fallthru
      _
    // Predicated region
    $region30: #{server_resnet_cat_forward.1} parent=1 // pred_check
      _
    $region31: #{server_resnet_cat_forward.1} parent=1 // pred_check_branch
      %72 = sbr.rel (0) target = $region33
    $region32: #{server_resnet_cat_forward.1} parent=1 // pred_region
      %74 = vsyncadd [#allocation8], 0
      %s75 = sshll.u32 %s7, 4
      %s76 = int_to_ptr.hbm [resolvable:$true] %s75
      %s77 = sshll.u32 [#allocation7], 4
      %s78 = int_to_ptr.vmem [resolvable:$true] %s77
      %83 = dma.hbm_to_vmem [thread:$0]  %s76, 8192, %s78, [#allocation8], 128, 128, 8
    $region33: #{server_resnet_cat_forward.1} parent=1 // pred_fallthru
      _
    // Predicated region
    $region34: #{server_resnet_cat_forward.1} parent=1 // pred_check
      _
    $region35: #{server_resnet_cat_forward.1} parent=1 // pred_check_branch
      %85 = sbr.rel (0) target = $region37
    $region36: #{server_resnet_cat_forward.1} parent=1 // pred_region
      _
    $region37: #{server_resnet_cat_forward.1} parent=1 // pred_fallthru
      _
    // Predicated region
    $region38: #{server_resnet_cat_forward.1} parent=1 // pred_check
      _
    $region39: #{server_resnet_cat_forward.1} parent=1 // pred_check_branch
      %87 = sbr.rel (0) target = $region41
    $region40: #{server_resnet_cat_forward.1} parent=1 // pred_region
      %89 = vsyncadd [#allocation8], 0
      %s90 = sshll.u32 %s9, 4
      %s91 = int_to_ptr.hbm [resolvable:$true] %s90
      %s92 = sshll.u32 [#allocation9], 4
      %s93 = int_to_ptr.vmem [resolvable:$true] %s92
      %98 = dma.hbm_to_vmem [thread:$0]  %s91, 2048, %s93, [#allocation8], 64, 64, 4
    $region41: #{server_resnet_cat_forward.1} parent=1 // pred_fallthru
      _
    // Predicated region
    $region42: #{server_resnet_cat_forward.1} parent=1 // pred_check
      _
    $region43: #{server_resnet_cat_forward.1} parent=1 // pred_check_branch
      %100 = sbr.rel (0) target = $region45
    $region44: #{server_resnet_cat_forward.1} parent=1 // pred_region
      _
    $region45: #{server_resnet_cat_forward.1} parent=1 // pred_fallthru
      _
    // Predicated region
    $region46: #{server_resnet_cat_forward.1} parent=1 // pred_check
      _
    $region47: #{server_resnet_cat_forward.1} parent=1 // pred_check_branch
      %102 = sbr.rel (0) target = $region49
    $region48: #{server_resnet_cat_forward.1} parent=1 // pred_region
      %104 = vsyncadd [#allocation11], 0
      %s105 = sshll.u32 %s11, 4
      %s106 = int_to_ptr.hbm [resolvable:$true] %s105
      %s107 = sshll.u32 [#allocation10], 4
      %s108 = int_to_ptr.vmem [resolvable:$true] %s107
      %113 = dma.hbm_to_vmem [thread:$0]  %s106, 1024, %s108, [#allocation11], 64, 64, 4
    $region49: #{server_resnet_cat_forward.1} parent=1 // pred_fallthru
      _
    // Predicated region
    $region50: #{server_resnet_cat_forward.1} parent=1 // pred_check
      _
    $region51: #{server_resnet_cat_forward.1} parent=1 // pred_check_branch
      %115 = sbr.rel (0) target = $region53
    $region52: #{server_resnet_cat_forward.1} parent=1 // pred_region
      _
    $region53: #{server_resnet_cat_forward.1} parent=1 // pred_fallthru
      _
    // Predicated region
    $region54: #{server_resnet_cat_forward.1} parent=1 // pred_check
      _
    $region55: #{server_resnet_cat_forward.1} parent=1 // pred_check_branch
      %117 = sbr.rel (0) target = $region57
    $region56: #{server_resnet_cat_forward.1} parent=1 // pred_region
      %119 = dma.done [#allocation3], 1024
    $region57: #{server_resnet_cat_forward.1} parent=1 // pred_fallthru
      _
    // Predicated region
    $region58: #{server_resnet_cat_forward.1} parent=1 // pred_check
      _
    $region59: #{server_resnet_cat_forward.1} parent=1 // pred_check_branch
      %121 = sbr.rel (0) target = $region61
    $region60: #{server_resnet_cat_forward.1} parent=1 // pred_region
      %123 = dma.done [#allocation5], 8192
    $region61: #{server_resnet_cat_forward.1} parent=1 // pred_fallthru
      _
    // Predicated region
    $region62: #{server_resnet_cat_forward.1} parent=1 // pred_check
      _
    $region63: #{server_resnet_cat_forward.1} parent=1 // pred_check_branch
      %125 = sbr.rel (0) target = $region65
    $region64: #{server_resnet_cat_forward.1} parent=1 // pred_region
      %127 = dma.done [#allocation5], 32768
    $region65: #{server_resnet_cat_forward.1} parent=1 // pred_fallthru
      _
    // Predicated region
    $region66: #{server_resnet_cat_forward.1} parent=1 // pred_check
      _
    $region67: #{server_resnet_cat_forward.1} parent=1 // pred_check_branch
      %129 = sbr.rel (0) target = $region69
    $region68: #{server_resnet_cat_forward.1} parent=1 // pred_region
      %131 = dma.done [#allocation8], 8192
    $region69: #{server_resnet_cat_forward.1} parent=1 // pred_fallthru
      _
    // Predicated region
    $region70: #{server_resnet_cat_forward.1} parent=1 // pred_check
      _
    $region71: #{server_resnet_cat_forward.1} parent=1 // pred_check_branch
      %133 = sbr.rel (0) target = $region73
    $region72: #{server_resnet_cat_forward.1} parent=1 // pred_region
      %135 = dma.done [#allocation8], 2048
    $region73: #{server_resnet_cat_forward.1} parent=1 // pred_fallthru
      _
    // Predicated region
    $region74: #{server_resnet_cat_forward.1} parent=1 // pred_check
      _
    $region75: #{server_resnet_cat_forward.1} parent=1 // pred_check_branch
      %137 = sbr.rel (0) target = $region77
    $region76: #{server_resnet_cat_forward.1} parent=1 // pred_region
      %139 = dma.done [#allocation11], 1024
    $region77: #{server_resnet_cat_forward.1} parent=1 // pred_fallthru
      _
    %v140 = vld [vmem:[%s0] sm:$0xf]
    %v141 = vld [vmem:[%s0 + $0x4] sm:$0xf]
    %v142 = vld [vmem:[#allocation2] sm:$0xf]
    %v143 = vld [vmem:[#allocation2 + $0x4] sm:$0xf]
    %v144 = vld [vmem:[#allocation2 + $0x8] sm:$0xf]
    %v145 = vld [vmem:[#allocation2 + $0xc] sm:$0xf]
    %v146 = vld [vmem:[#allocation2 + $0x10] sm:$0xf]
    %v147 = vld [vmem:[#allocation2 + $0x14] sm:$0xf]
    %v148 = vld [vmem:[#allocation2 + $0x18] sm:$0xf]
    %v149 = vld [vmem:[#allocation2 + $0x1c] sm:$0xf]
    %v150 = vld [vmem:[#allocation2 + $0x20] sm:$0xf]
    %v151 = vld [vmem:[#allocation2 + $0x24] sm:$0xf]
    %v152 = vld [vmem:[#allocation2 + $0x28] sm:$0xf]
    %v153 = vld [vmem:[#allocation2 + $0x2c] sm:$0xf]
    %v154 = vld [vmem:[#allocation2 + $0x30] sm:$0xf]
    %v155 = vld [vmem:[#allocation2 + $0x34] sm:$0xf]
    %v156 = vld [vmem:[#allocation2 + $0x38] sm:$0xf]
    %v157 = vld [vmem:[#allocation2 + $0x3c] sm:$0xf]
    %v158 = vld [vmem:[%s2] sm:$0x1]
    %v160 = vperm.slane %v158, 0
    %v164 = vunpack.c.l.b16 %v140
    %v165 = vunpack.c.l.b16 %v141
    %v166 = vpack.c.b16 %v165, %v164
    %v184 = vunpack.c.l.b16 %v142
    %v185 = vunpack.c.l.b16 %v143
    %v186 = vunpack.c.l.b16 %v144
    %v187 = vunpack.c.l.b16 %v145
    %v188 = vunpack.c.l.b16 %v146
    %v189 = vunpack.c.l.b16 %v147
    %v190 = vunpack.c.l.b16 %v148
    %v191 = vunpack.c.l.b16 %v149
    %v192 = vunpack.c.l.b16 %v150
    %v193 = vunpack.c.l.b16 %v151
    %v194 = vunpack.c.l.b16 %v152
    %v195 = vunpack.c.l.b16 %v153
    %v196 = vunpack.c.l.b16 %v154
    %v197 = vunpack.c.l.b16 %v155
    %v198 = vunpack.c.l.b16 %v156
    %v199 = vunpack.c.l.b16 %v157
    %v200 = vpack.c.b16 %v185, %v184
    %v201 = vpack.c.b16 %v187, %v186
    %v202 = vpack.c.b16 %v189, %v188
    %v203 = vpack.c.b16 %v191, %v190
    %v204 = vpack.c.b16 %v193, %v192
    %v205 = vpack.c.b16 %v195, %v194
    %v206 = vpack.c.b16 %v197, %v196
    %v207 = vpack.c.b16 %v199, %v198
    %216 = vmatpush.bf16.msra.mxu0 %v207
    %217 = vmatpush.bf16.msra.mxu0 %v206
    %218 = vmatpush.bf16.msra.mxu0 %v205
    %219 = vmatpush.bf16.msra.mxu0 %v204
    %220 = vmatpush.bf16.msra.mxu0 %v203
    %221 = vmatpush.bf16.msra.mxu0 %v202
    %222 = vmatpush.bf16.msra.mxu0 %v201
    %223 = vmatpush.bf16.msra.mxu0 %v200
    %224 = vmatmul.bf16.gmra.mxu0 %v166
    %v225 = vpop.f32.mrf.mxu0
    %v226 = vadd.f32 %v160, %v225
    %v227 = vpop.f32.mrf.mxu0
    %v228 = vadd.f32 %v160, %v227
    %229 = vdwg.mxu0
    %vm230 = vcmp.gt.f32.partialorder %v226, 0.0
    %vm231 = vcmp.gt.f32.partialorder %v228, 0.0
    %v232 = vmul.f32 %v226, 0.01
    %v233 = vmul.f32 %v228, 0.01
    %v234 = vsel %vm230, %v226, %v232
    %v235 = vsel %vm231, %v228, %v233
    %v236 = vpack.c.bf16 %v235, %v234
    %v237 = vld [vmem:[#allocation4] sm:$0xff]
    %v238 = vld [vmem:[#allocation4 + $0x8] sm:$0xff]
    %v239 = vld [vmem:[#allocation4 + $0x10] sm:$0xff]
    %v240 = vld [vmem:[#allocation4 + $0x18] sm:$0xff]
    %v241 = vld [vmem:[#allocation4 + $0x20] sm:$0xff]
    %v242 = vld [vmem:[#allocation4 + $0x28] sm:$0xff]
    %v243 = vld [vmem:[#allocation4 + $0x30] sm:$0xff]
    %v244 = vld [vmem:[#allocation4 + $0x38] sm:$0xff]
    %v245 = vld [vmem:[#allocation4 + $0x40] sm:$0xff]
    %v246 = vld [vmem:[#allocation4 + $0x48] sm:$0xff]
    %v247 = vld [vmem:[#allocation4 + $0x50] sm:$0xff]
    %v248 = vld [vmem:[#allocation4 + $0x58] sm:$0xff]
    %v249 = vld [vmem:[#allocation4 + $0x60] sm:$0xff]
    %v250 = vld [vmem:[#allocation4 + $0x68] sm:$0xff]
    %v251 = vld [vmem:[#allocation4 + $0x70] sm:$0xff]
    %v252 = vld [vmem:[#allocation4 + $0x78] sm:$0xff]
    %v253 = vld [vmem:[#allocation4 + $0x80] sm:$0xff]
    %v254 = vld [vmem:[#allocation4 + $0x88] sm:$0xff]
    %v255 = vld [vmem:[#allocation4 + $0x90] sm:$0xff]
    %v256 = vld [vmem:[#allocation4 + $0x98] sm:$0xff]
    %v257 = vld [vmem:[#allocation4 + $0xa0] sm:$0xff]
    %v258 = vld [vmem:[#allocation4 + $0xa8] sm:$0xff]
    %v259 = vld [vmem:[#allocation4 + $0xb0] sm:$0xff]
    %v260 = vld [vmem:[#allocation4 + $0xb8] sm:$0xff]
    %v261 = vld [vmem:[#allocation4 + $0xc0] sm:$0xff]
    %v262 = vld [vmem:[#allocation4 + $0xc8] sm:$0xff]
    %v263 = vld [vmem:[#allocation4 + $0xd0] sm:$0xff]
    %v264 = vld [vmem:[#allocation4 + $0xd8] sm:$0xff]
    %v265 = vld [vmem:[#allocation4 + $0xe0] sm:$0xff]
    %v266 = vld [vmem:[#allocation4 + $0xe8] sm:$0xff]
    %v267 = vld [vmem:[#allocation4 + $0xf0] sm:$0xff]
    %v268 = vld [vmem:[#allocation4 + $0xf8] sm:$0xff]
    %v269 = vld [vmem:[#allocation4 + $0x100] sm:$0xff]
    %v270 = vld [vmem:[#allocation4 + $0x108] sm:$0xff]
    %v271 = vld [vmem:[#allocation4 + $0x110] sm:$0xff]
    %v272 = vld [vmem:[#allocation4 + $0x118] sm:$0xff]
    %v273 = vld [vmem:[#allocation4 + $0x120] sm:$0xff]
    %v274 = vld [vmem:[#allocation4 + $0x128] sm:$0xff]
    %v275 = vld [vmem:[#allocation4 + $0x130] sm:$0xff]
    %v276 = vld [vmem:[#allocation4 + $0x138] sm:$0xff]
    %v277 = vld [vmem:[#allocation4 + $0x140] sm:$0xff]
    %v278 = vld [vmem:[#allocation4 + $0x148] sm:$0xff]
    %v279 = vld [vmem:[#allocation4 + $0x150] sm:$0xff]
    %v280 = vld [vmem:[#allocation4 + $0x158] sm:$0xff]
    %v281 = vld [vmem:[#allocation4 + $0x160] sm:$0xff]
    %v282 = vld [vmem:[#allocation4 + $0x168] sm:$0xff]
    %v283 = vld [vmem:[#allocation4 + $0x170] sm:$0xff]
    %v284 = vld [vmem:[#allocation4 + $0x178] sm:$0xff]
    %v285 = vld [vmem:[#allocation4 + $0x180] sm:$0xff]
    %v286 = vld [vmem:[#allocation4 + $0x188] sm:$0xff]
    %v287 = vld [vmem:[#allocation4 + $0x190] sm:$0xff]
    %v288 = vld [vmem:[#allocation4 + $0x198] sm:$0xff]
    %v289 = vld [vmem:[#allocation4 + $0x1a0] sm:$0xff]
    %v290 = vld [vmem:[#allocation4 + $0x1a8] sm:$0xff]
    %v291 = vld [vmem:[#allocation4 + $0x1b0] sm:$0xff]
    %v292 = vld [vmem:[#allocation4 + $0x1b8] sm:$0xff]
    %v293 = vld [vmem:[#allocation4 + $0x1c0] sm:$0xff]
    %v294 = vld [vmem:[#allocation4 + $0x1c8] sm:$0xff]
    %v295 = vld [vmem:[#allocation4 + $0x1d0] sm:$0xff]
    %v296 = vld [vmem:[#allocation4 + $0x1d8] sm:$0xff]
    %v297 = vld [vmem:[#allocation4 + $0x1e0] sm:$0xff]
    %v298 = vld [vmem:[#allocation4 + $0x1e8] sm:$0xff]
    %v299 = vld [vmem:[#allocation4 + $0x1f0] sm:$0xff]
    %v300 = vld [vmem:[#allocation4 + $0x1f8] sm:$0xff]
    %v301 = vld [vmem:[%s4] sm:$0xff]
    %v303 = vperm.slane %v301, 0
    %v304 = vperm.slane %v301, 1
    %v305 = vperm.slane %v301, 2
    %v306 = vperm.slane %v301, 3
    %v307 = vperm.slane %v301, 4
    %v308 = vperm.slane %v301, 5
    %v309 = vperm.slane %v301, 6
    %v310 = vperm.slane %v301, 7
    %v383 = vunpack.c.l.b16 %v237
    %v384 = vunpack.c.h.b16 %v237
    %v385 = vunpack.c.l.b16 %v238
    %v386 = vunpack.c.h.b16 %v238
    %v387 = vunpack.c.l.b16 %v239
    %v388 = vunpack.c.h.b16 %v239
    %v389 = vunpack.c.l.b16 %v240
    %v390 = vunpack.c.h.b16 %v240
    %v391 = vunpack.c.l.b16 %v241
    %v392 = vunpack.c.h.b16 %v241
    %v393 = vunpack.c.l.b16 %v242
    %v394 = vunpack.c.h.b16 %v242
    %v395 = vunpack.c.l.b16 %v243
    %v396 = vunpack.c.h.b16 %v243
    %v397 = vunpack.c.l.b16 %v244
    %v398 = vunpack.c.h.b16 %v244
    %v399 = vunpack.c.l.b16 %v245
    %v400 = vunpack.c.h.b16 %v245
    %v401 = vunpack.c.l.b16 %v246
    %v402 = vunpack.c.h.b16 %v246
    %v403 = vunpack.c.l.b16 %v247
    %v404 = vunpack.c.h.b16 %v247
    %v405 = vunpack.c.l.b16 %v248
    %v406 = vunpack.c.h.b16 %v248
    %v407 = vunpack.c.l.b16 %v249
    %v408 = vunpack.c.h.b16 %v249
    %v409 = vunpack.c.l.b16 %v250
    %v410 = vunpack.c.h.b16 %v250
    %v411 = vunpack.c.l.b16 %v251
    %v412 = vunpack.c.h.b16 %v251
    %v413 = vunpack.c.l.b16 %v252
    %v414 = vunpack.c.h.b16 %v252
    %v415 = vunpack.c.l.b16 %v253
    %v416 = vunpack.c.h.b16 %v253
    %v417 = vunpack.c.l.b16 %v254
    %v418 = vunpack.c.h.b16 %v254
    %v419 = vunpack.c.l.b16 %v255
    %v420 = vunpack.c.h.b16 %v255
    %v421 = vunpack.c.l.b16 %v256
    %v422 = vunpack.c.h.b16 %v256
    %v423 = vunpack.c.l.b16 %v257
    %v424 = vunpack.c.h.b16 %v257
    %v425 = vunpack.c.l.b16 %v258
    %v426 = vunpack.c.h.b16 %v258
    %v427 = vunpack.c.l.b16 %v259
    %v428 = vunpack.c.h.b16 %v259
    %v429 = vunpack.c.l.b16 %v260
    %v430 = vunpack.c.h.b16 %v260
    %v431 = vunpack.c.l.b16 %v261
    %v432 = vunpack.c.h.b16 %v261
    %v433 = vunpack.c.l.b16 %v262
    %v434 = vunpack.c.h.b16 %v262
    %v435 = vunpack.c.l.b16 %v263
    %v436 = vunpack.c.h.b16 %v263
    %v437 = vunpack.c.l.b16 %v264
    %v438 = vunpack.c.h.b16 %v264
    %v439 = vunpack.c.l.b16 %v265
    %v440 = vunpack.c.h.b16 %v265
    %v441 = vunpack.c.l.b16 %v266
    %v442 = vunpack.c.h.b16 %v266
    %v443 = vunpack.c.l.b16 %v267
    %v444 = vunpack.c.h.b16 %v267
    %v445 = vunpack.c.l.b16 %v268
    %v446 = vunpack.c.h.b16 %v268
    %v447 = vunpack.c.l.b16 %v269
    %v448 = vunpack.c.h.b16 %v269
    %v449 = vunpack.c.l.b16 %v270
    %v450 = vunpack.c.h.b16 %v270
    %v451 = vunpack.c.l.b16 %v271
    %v452 = vunpack.c.h.b16 %v271
    %v453 = vunpack.c.l.b16 %v272
    %v454 = vunpack.c.h.b16 %v272
    %v455 = vunpack.c.l.b16 %v273
    %v456 = vunpack.c.h.b16 %v273
    %v457 = vunpack.c.l.b16 %v274
    %v458 = vunpack.c.h.b16 %v274
    %v459 = vunpack.c.l.b16 %v275
    %v460 = vunpack.c.h.b16 %v275
    %v461 = vunpack.c.l.b16 %v276
    %v462 = vunpack.c.h.b16 %v276
    %v463 = vunpack.c.l.b16 %v277
    %v464 = vunpack.c.h.b16 %v277
    %v465 = vunpack.c.l.b16 %v278
    %v466 = vunpack.c.h.b16 %v278
    %v467 = vunpack.c.l.b16 %v279
    %v468 = vunpack.c.h.b16 %v279
    %v469 = vunpack.c.l.b16 %v280
    %v470 = vunpack.c.h.b16 %v280
    %v471 = vunpack.c.l.b16 %v281
    %v472 = vunpack.c.h.b16 %v281
    %v473 = vunpack.c.l.b16 %v282
    %v474 = vunpack.c.h.b16 %v282
    %v475 = vunpack.c.l.b16 %v283
    %v476 = vunpack.c.h.b16 %v283
    %v477 = vunpack.c.l.b16 %v284
    %v478 = vunpack.c.h.b16 %v284
    %v479 = vunpack.c.l.b16 %v285
    %v480 = vunpack.c.h.b16 %v285
    %v481 = vunpack.c.l.b16 %v286
    %v482 = vunpack.c.h.b16 %v286
    %v483 = vunpack.c.l.b16 %v287
    %v484 = vunpack.c.h.b16 %v287
    %v485 = vunpack.c.l.b16 %v288
    %v486 = vunpack.c.h.b16 %v288
    %v487 = vunpack.c.l.b16 %v289
    %v488 = vunpack.c.h.b16 %v289
    %v489 = vunpack.c.l.b16 %v290
    %v490 = vunpack.c.h.b16 %v290
    %v491 = vunpack.c.l.b16 %v291
    %v492 = vunpack.c.h.b16 %v291
    %v493 = vunpack.c.l.b16 %v292
    %v494 = vunpack.c.h.b16 %v292
    %v495 = vunpack.c.l.b16 %v293
    %v496 = vunpack.c.h.b16 %v293
    %v497 = vunpack.c.l.b16 %v294
    %v498 = vunpack.c.h.b16 %v294
    %v499 = vunpack.c.l.b16 %v295
    %v500 = vunpack.c.h.b16 %v295
    %v501 = vunpack.c.l.b16 %v296
    %v502 = vunpack.c.h.b16 %v296
    %v503 = vunpack.c.l.b16 %v297
    %v504 = vunpack.c.h.b16 %v297
    %v505 = vunpack.c.l.b16 %v298
    %v506 = vunpack.c.h.b16 %v298
    %v507 = vunpack.c.l.b16 %v299
    %v508 = vunpack.c.h.b16 %v299
    %v509 = vunpack.c.l.b16 %v300
    %v510 = vunpack.c.h.b16 %v300
    %v511 = vpack.c.b16 %v391, %v383
    %v512 = vpack.c.b16 %v392, %v384
    %v513 = vpack.c.b16 %v393, %v385
    %v514 = vpack.c.b16 %v394, %v386
    %v515 = vpack.c.b16 %v395, %v387
    %v516 = vpack.c.b16 %v396, %v388
    %v517 = vpack.c.b16 %v397, %v389
    %v518 = vpack.c.b16 %v398, %v390
    %v519 = vpack.c.b16 %v407, %v399
    %v520 = vpack.c.b16 %v408, %v400
    %v521 = vpack.c.b16 %v409, %v401
    %v522 = vpack.c.b16 %v410, %v402
    %v523 = vpack.c.b16 %v411, %v403
    %v524 = vpack.c.b16 %v412, %v404
    %v525 = vpack.c.b16 %v413, %v405
    %v526 = vpack.c.b16 %v414, %v406
    %v527 = vpack.c.b16 %v423, %v415
    %v528 = vpack.c.b16 %v424, %v416
    %v529 = vpack.c.b16 %v425, %v417
    %v530 = vpack.c.b16 %v426, %v418
    %v531 = vpack.c.b16 %v427, %v419
    %v532 = vpack.c.b16 %v428, %v420
    %v533 = vpack.c.b16 %v429, %v421
    %v534 = vpack.c.b16 %v430, %v422
    %v535 = vpack.c.b16 %v439, %v431
    %v536 = vpack.c.b16 %v440, %v432
    %v537 = vpack.c.b16 %v441, %v433
    %v538 = vpack.c.b16 %v442, %v434
    %v539 = vpack.c.b16 %v443, %v435
    %v540 = vpack.c.b16 %v444, %v436
    %v541 = vpack.c.b16 %v445, %v437
    %v542 = vpack.c.b16 %v446, %v438
    %v543 = vpack.c.b16 %v455, %v447
    %v544 = vpack.c.b16 %v456, %v448
    %v545 = vpack.c.b16 %v457, %v449
    %v546 = vpack.c.b16 %v458, %v450
    %v547 = vpack.c.b16 %v459, %v451
    %v548 = vpack.c.b16 %v460, %v452
    %v549 = vpack.c.b16 %v461, %v453
    %v550 = vpack.c.b16 %v462, %v454
    %v551 = vpack.c.b16 %v471, %v463
    %v552 = vpack.c.b16 %v472, %v464
    %v553 = vpack.c.b16 %v473, %v465
    %v554 = vpack.c.b16 %v474, %v466
    %v555 = vpack.c.b16 %v475, %v467
    %v556 = vpack.c.b16 %v476, %v468
    %v557 = vpack.c.b16 %v477, %v469
    %v558 = vpack.c.b16 %v478, %v470
    %v559 = vpack.c.b16 %v487, %v479
    %v560 = vpack.c.b16 %v488, %v480
    %v561 = vpack.c.b16 %v489, %v481
    %v562 = vpack.c.b16 %v490, %v482
    %v563 = vpack.c.b16 %v491, %v483
    %v564 = vpack.c.b16 %v492, %v484
    %v565 = vpack.c.b16 %v493, %v485
    %v566 = vpack.c.b16 %v494, %v486
    %v567 = vpack.c.b16 %v503, %v495
    %v568 = vpack.c.b16 %v504, %v496
    %v569 = vpack.c.b16 %v505, %v497
    %v570 = vpack.c.b16 %v506, %v498
    %v571 = vpack.c.b16 %v507, %v499
    %v572 = vpack.c.b16 %v508, %v500
    %v573 = vpack.c.b16 %v509, %v501
    %v574 = vpack.c.b16 %v510, %v502
    %639 = vmatpush.bf16.msra.mxu0 %v567
    %640 = vmatpush.bf16.msra.mxu0 %v559
    %641 = vmatpush.bf16.msra.mxu0 %v551
    %642 = vmatpush.bf16.msra.mxu0 %v543
    %643 = vmatpush.bf16.msra.mxu0 %v535
    %644 = vmatpush.bf16.msra.mxu0 %v527
    %645 = vmatpush.bf16.msra.mxu0 %v519
    %646 = vmatpush.bf16.msra.mxu0 %v511
    %647 = vmatmul.bf16.gmra.mxu0 %v236
    %v648 = vpop.f32.mrf.mxu0
    %v649 = vadd.f32 %v303, %v648
    %v650 = vpop.f32.mrf.mxu0
    %v651 = vadd.f32 %v303, %v650
    %652 = vdwg.mxu0
    %653 = vmatpush.bf16.msra.mxu0 %v568
    %654 = vmatpush.bf16.msra.mxu0 %v560
    %655 = vmatpush.bf16.msra.mxu0 %v552
    %656 = vmatpush.bf16.msra.mxu0 %v544
    %657 = vmatpush.bf16.msra.mxu0 %v536
    %658 = vmatpush.bf16.msra.mxu0 %v528
    %659 = vmatpush.bf16.msra.mxu0 %v520
    %660 = vmatpush.bf16.msra.mxu0 %v512
    %661 = vmatmul.bf16.gmra.mxu0 %v236
    %v662 = vpop.f32.mrf.mxu0
    %v663 = vadd.f32 %v304, %v662
    %v664 = vpop.f32.mrf.mxu0
    %v665 = vadd.f32 %v304, %v664
    %666 = vdwg.mxu0
    %667 = vmatpush.bf16.msra.mxu0 %v569
    %668 = vmatpush.bf16.msra.mxu0 %v561
    %669 = vmatpush.bf16.msra.mxu0 %v553
    %670 = vmatpush.bf16.msra.mxu0 %v545
    %671 = vmatpush.bf16.msra.mxu0 %v537
    %672 = vmatpush.bf16.msra.mxu0 %v529
    %673 = vmatpush.bf16.msra.mxu0 %v521
    %674 = vmatpush.bf16.msra.mxu0 %v513
    %675 = vmatmul.bf16.gmra.mxu0 %v236
    %v676 = vpop.f32.mrf.mxu0
    %v677 = vadd.f32 %v305, %v676
    %v678 = vpop.f32.mrf.mxu0
    %v679 = vadd.f32 %v305, %v678
    %680 = vdwg.mxu0
    %681 = vmatpush.bf16.msra.mxu0 %v570
    %682 = vmatpush.bf16.msra.mxu0 %v562
    %683 = vmatpush.bf16.msra.mxu0 %v554
    %684 = vmatpush.bf16.msra.mxu0 %v546
    %685 = vmatpush.bf16.msra.mxu0 %v538
    %686 = vmatpush.bf16.msra.mxu0 %v530
    %687 = vmatpush.bf16.msra.mxu0 %v522
    %688 = vmatpush.bf16.msra.mxu0 %v514
    %689 = vmatmul.bf16.gmra.mxu0 %v236
    %v690 = vpop.f32.mrf.mxu0
    %v691 = vadd.f32 %v306, %v690
    %v692 = vpop.f32.mrf.mxu0
    %v693 = vadd.f32 %v306, %v692
    %694 = vdwg.mxu0
    %695 = vmatpush.bf16.msra.mxu0 %v571
    %696 = vmatpush.bf16.msra.mxu0 %v563
    %697 = vmatpush.bf16.msra.mxu0 %v555
    %698 = vmatpush.bf16.msra.mxu0 %v547
    %699 = vmatpush.bf16.msra.mxu0 %v539
    %700 = vmatpush.bf16.msra.mxu0 %v531
    %701 = vmatpush.bf16.msra.mxu0 %v523
    %702 = vmatpush.bf16.msra.mxu0 %v515
    %703 = vmatmul.bf16.gmra.mxu0 %v236
    %v704 = vpop.f32.mrf.mxu0
    %v705 = vadd.f32 %v307, %v704
    %v706 = vpop.f32.mrf.mxu0
    %v707 = vadd.f32 %v307, %v706
    %708 = vdwg.mxu0
    %709 = vmatpush.bf16.msra.mxu0 %v572
    %710 = vmatpush.bf16.msra.mxu0 %v564
    %711 = vmatpush.bf16.msra.mxu0 %v556
    %712 = vmatpush.bf16.msra.mxu0 %v548
    %713 = vmatpush.bf16.msra.mxu0 %v540
    %714 = vmatpush.bf16.msra.mxu0 %v532
    %715 = vmatpush.bf16.msra.mxu0 %v524
    %716 = vmatpush.bf16.msra.mxu0 %v516
    %717 = vmatmul.bf16.gmra.mxu0 %v236
    %v718 = vpop.f32.mrf.mxu0
    %v719 = vadd.f32 %v308, %v718
    %v720 = vpop.f32.mrf.mxu0
    %v721 = vadd.f32 %v308, %v720
    %722 = vdwg.mxu0
    %723 = vmatpush.bf16.msra.mxu0 %v573
    %724 = vmatpush.bf16.msra.mxu0 %v565
    %725 = vmatpush.bf16.msra.mxu0 %v557
    %726 = vmatpush.bf16.msra.mxu0 %v549
    %727 = vmatpush.bf16.msra.mxu0 %v541
    %728 = vmatpush.bf16.msra.mxu0 %v533
    %729 = vmatpush.bf16.msra.mxu0 %v525
    %730 = vmatpush.bf16.msra.mxu0 %v517
    %731 = vmatmul.bf16.gmra.mxu0 %v236
    %v732 = vpop.f32.mrf.mxu0
    %v733 = vadd.f32 %v309, %v732
    %v734 = vpop.f32.mrf.mxu0
    %v735 = vadd.f32 %v309, %v734
    %736 = vdwg.mxu0
    %737 = vmatpush.bf16.msra.mxu0 %v574
    %738 = vmatpush.bf16.msra.mxu0 %v566
    %739 = vmatpush.bf16.msra.mxu0 %v558
    %740 = vmatpush.bf16.msra.mxu0 %v550
    %741 = vmatpush.bf16.msra.mxu0 %v542
    %742 = vmatpush.bf16.msra.mxu0 %v534
    %743 = vmatpush.bf16.msra.mxu0 %v526
    %744 = vmatpush.bf16.msra.mxu0 %v518
    %745 = vmatmul.bf16.gmra.mxu0 %v236
    %v746 = vpop.f32.mrf.mxu0
    %v747 = vadd.f32 %v310, %v746
    %v748 = vpop.f32.mrf.mxu0
    %v749 = vadd.f32 %v310, %v748
    %750 = vdwg.mxu0
    %vm751 = vcmp.gt.f32.partialorder %v649, 0.0
    %vm752 = vcmp.gt.f32.partialorder %v663, 0.0
    %vm753 = vcmp.gt.f32.partialorder %v677, 0.0
    %vm754 = vcmp.gt.f32.partialorder %v691, 0.0
    %vm755 = vcmp.gt.f32.partialorder %v705, 0.0
    %vm756 = vcmp.gt.f32.partialorder %v719, 0.0
    %vm757 = vcmp.gt.f32.partialorder %v733, 0.0
    %vm758 = vcmp.gt.f32.partialorder %v747, 0.0
    %vm759 = vcmp.gt.f32.partialorder %v651, 0.0
    %vm760 = vcmp.gt.f32.partialorder %v665, 0.0
    %vm761 = vcmp.gt.f32.partialorder %v679, 0.0
    %vm762 = vcmp.gt.f32.partialorder %v693, 0.0
    %vm763 = vcmp.gt.f32.partialorder %v707, 0.0
    %vm764 = vcmp.gt.f32.partialorder %v721, 0.0
    %vm765 = vcmp.gt.f32.partialorder %v735, 0.0
    %vm766 = vcmp.gt.f32.partialorder %v749, 0.0
    %v767 = vmul.f32 %v649, 0.01
    %v768 = vmul.f32 %v663, 0.01
    %v769 = vmul.f32 %v677, 0.01
    %v770 = vmul.f32 %v691, 0.01
    %v771 = vmul.f32 %v705, 0.01
    %v772 = vmul.f32 %v719, 0.01
    %v773 = vmul.f32 %v733, 0.01
    %v774 = vmul.f32 %v747, 0.01
    %v775 = vmul.f32 %v651, 0.01
    %v776 = vmul.f32 %v665, 0.01
    %v777 = vmul.f32 %v679, 0.01
    %v778 = vmul.f32 %v693, 0.01
    %v779 = vmul.f32 %v707, 0.01
    %v780 = vmul.f32 %v721, 0.01
    %v781 = vmul.f32 %v735, 0.01
    %v782 = vmul.f32 %v749, 0.01
    %v783 = vsel %vm751, %v649, %v767
    %v784 = vsel %vm752, %v663, %v768
    %v785 = vsel %vm753, %v677, %v769
    %v786 = vsel %vm754, %v691, %v770
    %v787 = vsel %vm755, %v705, %v771
    %v788 = vsel %vm756, %v719, %v772
    %v789 = vsel %vm757, %v733, %v773
    %v790 = vsel %vm758, %v747, %v774
    %v791 = vsel %vm759, %v651, %v775
    %v792 = vsel %vm760, %v665, %v776
    %v793 = vsel %vm761, %v679, %v777
    %v794 = vsel %vm762, %v693, %v778
    %v795 = vsel %vm763, %v707, %v779
    %v796 = vsel %vm764, %v721, %v780
    %v797 = vsel %vm765, %v735, %v781
    %v798 = vsel %vm766, %v749, %v782
    %v799 = vpack.c.bf16 %v791, %v783
    %v800 = vpack.c.bf16 %v792, %v784
    %v801 = vpack.c.bf16 %v793, %v785
    %v802 = vpack.c.bf16 %v794, %v786
    %v803 = vpack.c.bf16 %v795, %v787
    %v804 = vpack.c.bf16 %v796, %v788
    %v805 = vpack.c.bf16 %v797, %v789
    %v806 = vpack.c.bf16 %v798, %v790
    %v807 = vld [vmem:[#allocation6] sm:$0xff]
    %v808 = vld [vmem:[#allocation6 + $0x8] sm:$0xff]
    %v809 = vld [vmem:[#allocation6 + $0x10] sm:$0xff]
    %v810 = vld [vmem:[#allocation6 + $0x18] sm:$0xff]
    %v811 = vld [vmem:[#allocation6 + $0x20] sm:$0xff]
    %v812 = vld [vmem:[#allocation6 + $0x28] sm:$0xff]
    %v813 = vld [vmem:[#allocation6 + $0x30] sm:$0xff]
    %v814 = vld [vmem:[#allocation6 + $0x38] sm:$0xff]
    %v815 = vld [vmem:[#allocation6 + $0x40] sm:$0xff]
    %v816 = vld [vmem:[#allocation6 + $0x48] sm:$0xff]
    %v817 = vld [vmem:[#allocation6 + $0x50] sm:$0xff]
    %v818 = vld [vmem:[#allocation6 + $0x58] sm:$0xff]
    %v819 = vld [vmem:[#allocation6 + $0x60] sm:$0xff]
    %v820 = vld [vmem:[#allocation6 + $0x68] sm:$0xff]
    %v821 = vld [vmem:[#allocation6 + $0x70] sm:$0xff]
    %v822 = vld [vmem:[#allocation6 + $0x78] sm:$0xff]
    %v823 = vld [vmem:[#allocation6 + $0x80] sm:$0xff]
    %v824 = vld [vmem:[#allocation6 + $0x88] sm:$0xff]
    %v825 = vld [vmem:[#allocation6 + $0x90] sm:$0xff]
    %v826 = vld [vmem:[#allocation6 + $0x98] sm:$0xff]
    %v827 = vld [vmem:[#allocation6 + $0xa0] sm:$0xff]
    %v828 = vld [vmem:[#allocation6 + $0xa8] sm:$0xff]
    %v829 = vld [vmem:[#allocation6 + $0xb0] sm:$0xff]
    %v830 = vld [vmem:[#allocation6 + $0xb8] sm:$0xff]
    %v831 = vld [vmem:[#allocation6 + $0xc0] sm:$0xff]
    %v832 = vld [vmem:[#allocation6 + $0xc8] sm:$0xff]
    %v833 = vld [vmem:[#allocation6 + $0xd0] sm:$0xff]
    %v834 = vld [vmem:[#allocation6 + $0xd8] sm:$0xff]
    %v835 = vld [vmem:[#allocation6 + $0xe0] sm:$0xff]
    %v836 = vld [vmem:[#allocation6 + $0xe8] sm:$0xff]
    %v837 = vld [vmem:[#allocation6 + $0xf0] sm:$0xff]
    %v838 = vld [vmem:[#allocation6 + $0xf8] sm:$0xff]
    %v839 = vld [vmem:[#allocation6 + $0x100] sm:$0xff]
    %v840 = vld [vmem:[#allocation6 + $0x108] sm:$0xff]
    %v841 = vld [vmem:[#allocation6 + $0x110] sm:$0xff]
    %v842 = vld [vmem:[#allocation6 + $0x118] sm:$0xff]
    %v843 = vld [vmem:[#allocation6 + $0x120] sm:$0xff]
    %v844 = vld [vmem:[#allocation6 + $0x128] sm:$0xff]
    %v845 = vld [vmem:[#allocation6 + $0x130] sm:$0xff]
    %v846 = vld [vmem:[#allocation6 + $0x138] sm:$0xff]
    %v847 = vld [vmem:[#allocation6 + $0x140] sm:$0xff]
    %v848 = vld [vmem:[#allocation6 + $0x148] sm:$0xff]
    %v849 = vld [vmem:[#allocation6 + $0x150] sm:$0xff]
    %v850 = vld [vmem:[#allocation6 + $0x158] sm:$0xff]
    %v851 = vld [vmem:[#allocation6 + $0x160] sm:$0xff]
    %v852 = vld [vmem:[#allocation6 + $0x168] sm:$0xff]
    %v853 = vld [vmem:[#allocation6 + $0x170] sm:$0xff]
    %v854 = vld [vmem:[#allocation6 + $0x178] sm:$0xff]
    %v855 = vld [vmem:[#allocation6 + $0x180] sm:$0xff]
    %v856 = vld [vmem:[#allocation6 + $0x188] sm:$0xff]
    %v857 = vld [vmem:[#allocation6 + $0x190] sm:$0xff]
    %v858 = vld [vmem:[#allocation6 + $0x198] sm:$0xff]
    %v859 = vld [vmem:[#allocation6 + $0x1a0] sm:$0xff]
    %v860 = vld [vmem:[#allocation6 + $0x1a8] sm:$0xff]
    %v861 = vld [vmem:[#allocation6 + $0x1b0] sm:$0xff]
    %v862 = vld [vmem:[#allocation6 + $0x1b8] sm:$0xff]
    %v863 = vld [vmem:[#allocation6 + $0x1c0] sm:$0xff]
    %v864 = vld [vmem:[#allocation6 + $0x1c8] sm:$0xff]
    %v865 = vld [vmem:[#allocation6 + $0x1d0] sm:$0xff]
    %v866 = vld [vmem:[#allocation6 + $0x1d8] sm:$0xff]
    %v867 = vld [vmem:[#allocation6 + $0x1e0] sm:$0xff]
    %v868 = vld [vmem:[#allocation6 + $0x1e8] sm:$0xff]
    %v869 = vld [vmem:[#allocation6 + $0x1f0] sm:$0xff]
    %v870 = vld [vmem:[#allocation6 + $0x1f8] sm:$0xff]
    %v871 = vld [vmem:[#allocation6 + $0x200] sm:$0xff]
    %v872 = vld [vmem:[#allocation6 + $0x208] sm:$0xff]
    %v873 = vld [vmem:[#allocation6 + $0x210] sm:$0xff]
    %v874 = vld [vmem:[#allocation6 + $0x218] sm:$0xff]
    %v875 = vld [vmem:[#allocation6 + $0x220] sm:$0xff]
    %v876 = vld [vmem:[#allocation6 + $0x228] sm:$0xff]
    %v877 = vld [vmem:[#allocation6 + $0x230] sm:$0xff]
    %v878 = vld [vmem:[#allocation6 + $0x238] sm:$0xff]
    %v879 = vld [vmem:[#allocation6 + $0x240] sm:$0xff]
    %v880 = vld [vmem:[#allocation6 + $0x248] sm:$0xff]
    %v881 = vld [vmem:[#allocation6 + $0x250] sm:$0xff]
    %v882 = vld [vmem:[#allocation6 + $0x258] sm:$0xff]
    %v883 = vld [vmem:[#allocation6 + $0x260] sm:$0xff]
    %v884 = vld [vmem:[#allocation6 + $0x268] sm:$0xff]
    %v885 = vld [vmem:[#allocation6 + $0x270] sm:$0xff]
    %v886 = vld [vmem:[#allocation6 + $0x278] sm:$0xff]
    %v887 = vld [vmem:[#allocation6 + $0x280] sm:$0xff]
    %v888 = vld [vmem:[#allocation6 + $0x288] sm:$0xff]
    %v889 = vld [vmem:[#allocation6 + $0x290] sm:$0xff]
    %v890 = vld [vmem:[#allocation6 + $0x298] sm:$0xff]
    %v891 = vld [vmem:[#allocation6 + $0x2a0] sm:$0xff]
    %v892 = vld [vmem:[#allocation6 + $0x2a8] sm:$0xff]
    %v893 = vld [vmem:[#allocation6 + $0x2b0] sm:$0xff]
    %v894 = vld [vmem:[#allocation6 + $0x2b8] sm:$0xff]
    %v895 = vld [vmem:[#allocation6 + $0x2c0] sm:$0xff]
    %v896 = vld [vmem:[#allocation6 + $0x2c8] sm:$0xff]
    %v897 = vld [vmem:[#allocation6 + $0x2d0] sm:$0xff]
    %v898 = vld [vmem:[#allocation6 + $0x2d8] sm:$0xff]
    %v899 = vld [vmem:[#allocation6 + $0x2e0] sm:$0xff]
    %v900 = vld [vmem:[#allocation6 + $0x2e8] sm:$0xff]
    %v901 = vld [vmem:[#allocation6 + $0x2f0] sm:$0xff]
    %v902 = vld [vmem:[#allocation6 + $0x2f8] sm:$0xff]
    %v903 = vld [vmem:[#allocation6 + $0x300] sm:$0xff]
    %v904 = vld [vmem:[#allocation6 + $0x308] sm:$0xff]
    %v905 = vld [vmem:[#allocation6 + $0x310] sm:$0xff]
    %v906 = vld [vmem:[#allocation6 + $0x318] sm:$0xff]
    %v907 = vld [vmem:[#allocation6 + $0x320] sm:$0xff]
    %v908 = vld [vmem:[#allocation6 + $0x328] sm:$0xff]
    %v909 = vld [vmem:[#allocation6 + $0x330] sm:$0xff]
    %v910 = vld [vmem:[#allocation6 + $0x338] sm:$0xff]
    %v911 = vld [vmem:[#allocation6 + $0x340] sm:$0xff]
    %v912 = vld [vmem:[#allocation6 + $0x348] sm:$0xff]
    %v913 = vld [vmem:[#allocation6 + $0x350] sm:$0xff]
    %v914 = vld [vmem:[#allocation6 + $0x358] sm:$0xff]
    %v915 = vld [vmem:[#allocation6 + $0x360] sm:$0xff]
    %v916 = vld [vmem:[#allocation6 + $0x368] sm:$0xff]
    %v917 = vld [vmem:[#allocation6 + $0x370] sm:$0xff]
    %v918 = vld [vmem:[#allocation6 + $0x378] sm:$0xff]
    %v919 = vld [vmem:[#allocation6 + $0x380] sm:$0xff]
    %v920 = vld [vmem:[#allocation6 + $0x388] sm:$0xff]
    %v921 = vld [vmem:[#allocation6 + $0x390] sm:$0xff]
    %v922 = vld [vmem:[#allocation6 + $0x398] sm:$0xff]
    %v923 = vld [vmem:[#allocation6 + $0x3a0] sm:$0xff]
    %v924 = vld [vmem:[#allocation6 + $0x3a8] sm:$0xff]
    %v925 = vld [vmem:[#allocation6 + $0x3b0] sm:$0xff]
    %v926 = vld [vmem:[#allocation6 + $0x3b8] sm:$0xff]
    %v927 = vld [vmem:[#allocation6 + $0x3c0] sm:$0xff]
    %v928 = vld [vmem:[#allocation6 + $0x3c8] sm:$0xff]
    %v929 = vld [vmem:[#allocation6 + $0x3d0] sm:$0xff]
    %v930 = vld [vmem:[#allocation6 + $0x3d8] sm:$0xff]
    %v931 = vld [vmem:[#allocation6 + $0x3e0] sm:$0xff]
    %v932 = vld [vmem:[#allocation6 + $0x3e8] sm:$0xff]
    %v933 = vld [vmem:[#allocation6 + $0x3f0] sm:$0xff]
    %v934 = vld [vmem:[#allocation6 + $0x3f8] sm:$0xff]
    %v935 = vld [vmem:[#allocation6 + $0x400] sm:$0xff]
    %v936 = vld [vmem:[#allocation6 + $0x408] sm:$0xff]
    %v937 = vld [vmem:[#allocation6 + $0x410] sm:$0xff]
    %v938 = vld [vmem:[#allocation6 + $0x418] sm:$0xff]
    %v939 = vld [vmem:[#allocation6 + $0x420] sm:$0xff]
    %v940 = vld [vmem:[#allocation6 + $0x428] sm:$0xff]
    %v941 = vld [vmem:[#allocation6 + $0x430] sm:$0xff]
    %v942 = vld [vmem:[#allocation6 + $0x438] sm:$0xff]
    %v943 = vld [vmem:[#allocation6 + $0x440] sm:$0xff]
    %v944 = vld [vmem:[#allocation6 + $0x448] sm:$0xff]
    %v945 = vld [vmem:[#allocation6 + $0x450] sm:$0xff]
    %v946 = vld [vmem:[#allocation6 + $0x458] sm:$0xff]
    %v947 = vld [vmem:[#allocation6 + $0x460] sm:$0xff]
    %v948 = vld [vmem:[#allocation6 + $0x468] sm:$0xff]
    %v949 = vld [vmem:[#allocation6 + $0x470] sm:$0xff]
    %v950 = vld [vmem:[#allocation6 + $0x478] sm:$0xff]
    %v951 = vld [vmem:[#allocation6 + $0x480] sm:$0xff]
    %v952 = vld [vmem:[#allocation6 + $0x488] sm:$0xff]
    %v953 = vld [vmem:[#allocation6 + $0x490] sm:$0xff]
    %v954 = vld [vmem:[#allocation6 + $0x498] sm:$0xff]
    %v955 = vld [vmem:[#allocation6 + $0x4a0] sm:$0xff]
    %v956 = vld [vmem:[#allocation6 + $0x4a8] sm:$0xff]
    %v957 = vld [vmem:[#allocation6 + $0x4b0] sm:$0xff]
    %v958 = vld [vmem:[#allocation6 + $0x4b8] sm:$0xff]
    %v959 = vld [vmem:[#allocation6 + $0x4c0] sm:$0xff]
    %v960 = vld [vmem:[#allocation6 + $0x4c8] sm:$0xff]
    %v961 = vld [vmem:[#allocation6 + $0x4d0] sm:$0xff]
    %v962 = vld [vmem:[#allocation6 + $0x4d8] sm:$0xff]
    %v963 = vld [vmem:[#allocation6 + $0x4e0] sm:$0xff]
    %v964 = vld [vmem:[#allocation6 + $0x4e8] sm:$0xff]
    %v965 = vld [vmem:[#allocation6 + $0x4f0] sm:$0xff]
    %v966 = vld [vmem:[#allocation6 + $0x4f8] sm:$0xff]
    %v967 = vld [vmem:[#allocation6 + $0x500] sm:$0xff]
    %v968 = vld [vmem:[#allocation6 + $0x508] sm:$0xff]
    %v969 = vld [vmem:[#allocation6 + $0x510] sm:$0xff]
    %v970 = vld [vmem:[#allocation6 + $0x518] sm:$0xff]
    %v971 = vld [vmem:[#allocation6 + $0x520] sm:$0xff]
    %v972 = vld [vmem:[#allocation6 + $0x528] sm:$0xff]
    %v973 = vld [vmem:[#allocation6 + $0x530] sm:$0xff]
    %v974 = vld [vmem:[#allocation6 + $0x538] sm:$0xff]
    %v975 = vld [vmem:[#allocation6 + $0x540] sm:$0xff]
    %v976 = vld [vmem:[#allocation6 + $0x548] sm:$0xff]
    %v977 = vld [vmem:[#allocation6 + $0x550] sm:$0xff]
    %v978 = vld [vmem:[#allocation6 + $0x558] sm:$0xff]
    %v979 = vld [vmem:[#allocation6 + $0x560] sm:$0xff]
    %v980 = vld [vmem:[#allocation6 + $0x568] sm:$0xff]
    %v981 = vld [vmem:[#allocation6 + $0x570] sm:$0xff]
    %v982 = vld [vmem:[#allocation6 + $0x578] sm:$0xff]
    %v983 = vld [vmem:[#allocation6 + $0x580] sm:$0xff]
    %v984 = vld [vmem:[#allocation6 + $0x588] sm:$0xff]
    %v985 = vld [vmem:[#allocation6 + $0x590] sm:$0xff]
    %v986 = vld [vmem:[#allocation6 + $0x598] sm:$0xff]
    %v987 = vld [vmem:[#allocation6 + $0x5a0] sm:$0xff]
    %v988 = vld [vmem:[#allocation6 + $0x5a8] sm:$0xff]
    %v989 = vld [vmem:[#allocation6 + $0x5b0] sm:$0xff]
    %v990 = vld [vmem:[#allocation6 + $0x5b8] sm:$0xff]
    %v991 = vld [vmem:[#allocation6 + $0x5c0] sm:$0xff]
    %v992 = vld [vmem:[#allocation6 + $0x5c8] sm:$0xff]
    %v993 = vld [vmem:[#allocation6 + $0x5d0] sm:$0xff]
    %v994 = vld [vmem:[#allocation6 + $0x5d8] sm:$0xff]
    %v995 = vld [vmem:[#allocation6 + $0x5e0] sm:$0xff]
    %v996 = vld [vmem:[#allocation6 + $0x5e8] sm:$0xff]
    %v997 = vld [vmem:[#allocation6 + $0x5f0] sm:$0xff]
    %v998 = vld [vmem:[#allocation6 + $0x5f8] sm:$0xff]
    %v999 = vld [vmem:[#allocation6 + $0x600] sm:$0xff]
    %v1000 = vld [vmem:[#allocation6 + $0x608] sm:$0xff]
    %v1001 = vld [vmem:[#allocation6 + $0x610] sm:$0xff]
    %v1002 = vld [vmem:[#allocation6 + $0x618] sm:$0xff]
    %v1003 = vld [vmem:[#allocation6 + $0x620] sm:$0xff]
    %v1004 = vld [vmem:[#allocation6 + $0x628] sm:$0xff]
    %v1005 = vld [vmem:[#allocation6 + $0x630] sm:$0xff]
    %v1006 = vld [vmem:[#allocation6 + $0x638] sm:$0xff]
    %v1007 = vld [vmem:[#allocation6 + $0x640] sm:$0xff]
    %v1008 = vld [vmem:[#allocation6 + $0x648] sm:$0xff]
    %v1009 = vld [vmem:[#allocation6 + $0x650] sm:$0xff]
    %v1010 = vld [vmem:[#allocation6 + $0x658] sm:$0xff]
    %v1011 = vld [vmem:[#allocation6 + $0x660] sm:$0xff]
    %v1012 = vld [vmem:[#allocation6 + $0x668] sm:$0xff]
    %v1013 = vld [vmem:[#allocation6 + $0x670] sm:$0xff]
    %v1014 = vld [vmem:[#allocation6 + $0x678] sm:$0xff]
    %v1015 = vld [vmem:[#allocation6 + $0x680] sm:$0xff]
    %v1016 = vld [vmem:[#allocation6 + $0x688] sm:$0xff]
    %v1017 = vld [vmem:[#allocation6 + $0x690] sm:$0xff]
    %v1018 = vld [vmem:[#allocation6 + $0x698] sm:$0xff]
    %v1019 = vld [vmem:[#allocation6 + $0x6a0] sm:$0xff]
    %v1020 = vld [vmem:[#allocation6 + $0x6a8] sm:$0xff]
    %v1021 = vld [vmem:[#allocation6 + $0x6b0] sm:$0xff]
    %v1022 = vld [vmem:[#allocation6 + $0x6b8] sm:$0xff]
    %v1023 = vld [vmem:[#allocation6 + $0x6c0] sm:$0xff]
    %v1024 = vld [vmem:[#allocation6 + $0x6c8] sm:$0xff]
    %v1025 = vld [vmem:[#allocation6 + $0x6d0] sm:$0xff]
    %v1026 = vld [vmem:[#allocation6 + $0x6d8] sm:$0xff]
    %v1027 = vld [vmem:[#allocation6 + $0x6e0] sm:$0xff]
    %v1028 = vld [vmem:[#allocation6 + $0x6e8] sm:$0xff]
    %v1029 = vld [vmem:[#allocation6 + $0x6f0] sm:$0xff]
    %v1030 = vld [vmem:[#allocation6 + $0x6f8] sm:$0xff]
    %v1031 = vld [vmem:[#allocation6 + $0x700] sm:$0xff]
    %v1032 = vld [vmem:[#allocation6 + $0x708] sm:$0xff]
    %v1033 = vld [vmem:[#allocation6 + $0x710] sm:$0xff]
    %v1034 = vld [vmem:[#allocation6 + $0x718] sm:$0xff]
    %v1035 = vld [vmem:[#allocation6 + $0x720] sm:$0xff]
    %v1036 = vld [vmem:[#allocation6 + $0x728] sm:$0xff]
    %v1037 = vld [vmem:[#allocation6 + $0x730] sm:$0xff]
    %v1038 = vld [vmem:[#allocation6 + $0x738] sm:$0xff]
    %v1039 = vld [vmem:[#allocation6 + $0x740] sm:$0xff]
    %v1040 = vld [vmem:[#allocation6 + $0x748] sm:$0xff]
    %v1041 = vld [vmem:[#allocation6 + $0x750] sm:$0xff]
    %v1042 = vld [vmem:[#allocation6 + $0x758] sm:$0xff]
    %v1043 = vld [vmem:[#allocation6 + $0x760] sm:$0xff]
    %v1044 = vld [vmem:[#allocation6 + $0x768] sm:$0xff]
    %v1045 = vld [vmem:[#allocation6 + $0x770] sm:$0xff]
    %v1046 = vld [vmem:[#allocation6 + $0x778] sm:$0xff]
    %v1047 = vld [vmem:[#allocation6 + $0x780] sm:$0xff]
    %v1048 = vld [vmem:[#allocation6 + $0x788] sm:$0xff]
    %v1049 = vld [vmem:[#allocation6 + $0x790] sm:$0xff]
    %v1050 = vld [vmem:[#allocation6 + $0x798] sm:$0xff]
    %v1051 = vld [vmem:[#allocation6 + $0x7a0] sm:$0xff]
    %v1052 = vld [vmem:[#allocation6 + $0x7a8] sm:$0xff]
    %v1053 = vld [vmem:[#allocation6 + $0x7b0] sm:$0xff]
    %v1054 = vld [vmem:[#allocation6 + $0x7b8] sm:$0xff]
    %v1055 = vld [vmem:[#allocation6 + $0x7c0] sm:$0xff]
    %v1056 = vld [vmem:[#allocation6 + $0x7c8] sm:$0xff]
    %v1057 = vld [vmem:[#allocation6 + $0x7d0] sm:$0xff]
    %v1058 = vld [vmem:[#allocation6 + $0x7d8] sm:$0xff]
    %v1059 = vld [vmem:[#allocation6 + $0x7e0] sm:$0xff]
    %v1060 = vld [vmem:[#allocation6 + $0x7e8] sm:$0xff]
    %v1061 = vld [vmem:[#allocation6 + $0x7f0] sm:$0xff]
    %v1062 = vld [vmem:[#allocation6 + $0x7f8] sm:$0xff]
    %v1063 = vld [vmem:[%s6] sm:$0xf]
    %v1065 = vperm.slane %v1063, 0
    %v1066 = vperm.slane %v1063, 1
    %v1067 = vperm.slane %v1063, 2
    %v1068 = vperm.slane %v1063, 3
    %v1329 = vunpack.c.l.b16 %v807
    %v1330 = vunpack.c.h.b16 %v807
    %v1331 = vunpack.c.l.b16 %v808
    %v1332 = vunpack.c.h.b16 %v808
    %v1333 = vunpack.c.l.b16 %v809
    %v1334 = vunpack.c.h.b16 %v809
    %v1335 = vunpack.c.l.b16 %v810
    %v1336 = vunpack.c.h.b16 %v810
    %v1337 = vunpack.c.l.b16 %v811
    %v1338 = vunpack.c.h.b16 %v811
    %v1339 = vunpack.c.l.b16 %v812
    %v1340 = vunpack.c.h.b16 %v812
    %v1341 = vunpack.c.l.b16 %v813
    %v1342 = vunpack.c.h.b16 %v813
    %v1343 = vunpack.c.l.b16 %v814
    %v1344 = vunpack.c.h.b16 %v814
    %v1345 = vunpack.c.l.b16 %v815
    %v1346 = vunpack.c.h.b16 %v815
    %v1347 = vunpack.c.l.b16 %v816
    %v1348 = vunpack.c.h.b16 %v816
    %v1349 = vunpack.c.l.b16 %v817
    %v1350 = vunpack.c.h.b16 %v817
    %v1351 = vunpack.c.l.b16 %v818
    %v1352 = vunpack.c.h.b16 %v818
    %v1353 = vunpack.c.l.b16 %v819
    %v1354 = vunpack.c.h.b16 %v819
    %v1355 = vunpack.c.l.b16 %v820
    %v1356 = vunpack.c.h.b16 %v820
    %v1357 = vunpack.c.l.b16 %v821
    %v1358 = vunpack.c.h.b16 %v821
    %v1359 = vunpack.c.l.b16 %v822
    %v1360 = vunpack.c.h.b16 %v822
    %v1361 = vunpack.c.l.b16 %v823
    %v1362 = vunpack.c.h.b16 %v823
    %v1363 = vunpack.c.l.b16 %v824
    %v1364 = vunpack.c.h.b16 %v824
    %v1365 = vunpack.c.l.b16 %v825
    %v1366 = vunpack.c.h.b16 %v825
    %v1367 = vunpack.c.l.b16 %v826
    %v1368 = vunpack.c.h.b16 %v826
    %v1369 = vunpack.c.l.b16 %v827
    %v1370 = vunpack.c.h.b16 %v827
    %v1371 = vunpack.c.l.b16 %v828
    %v1372 = vunpack.c.h.b16 %v828
    %v1373 = vunpack.c.l.b16 %v829
    %v1374 = vunpack.c.h.b16 %v829
    %v1375 = vunpack.c.l.b16 %v830
    %v1376 = vunpack.c.h.b16 %v830
    %v1377 = vunpack.c.l.b16 %v831
    %v1378 = vunpack.c.h.b16 %v831
    %v1379 = vunpack.c.l.b16 %v832
    %v1380 = vunpack.c.h.b16 %v832
    %v1381 = vunpack.c.l.b16 %v833
    %v1382 = vunpack.c.h.b16 %v833
    %v1383 = vunpack.c.l.b16 %v834
    %v1384 = vunpack.c.h.b16 %v834
    %v1385 = vunpack.c.l.b16 %v835
    %v1386 = vunpack.c.h.b16 %v835
    %v1387 = vunpack.c.l.b16 %v836
    %v1388 = vunpack.c.h.b16 %v836
    %v1389 = vunpack.c.l.b16 %v837
    %v1390 = vunpack.c.h.b16 %v837
    %v1391 = vunpack.c.l.b16 %v838
    %v1392 = vunpack.c.h.b16 %v838
    %v1393 = vunpack.c.l.b16 %v839
    %v1394 = vunpack.c.h.b16 %v839
    %v1395 = vunpack.c.l.b16 %v840
    %v1396 = vunpack.c.h.b16 %v840
    %v1397 = vunpack.c.l.b16 %v841
    %v1398 = vunpack.c.h.b16 %v841
    %v1399 = vunpack.c.l.b16 %v842
    %v1400 = vunpack.c.h.b16 %v842
    %v1401 = vunpack.c.l.b16 %v843
    %v1402 = vunpack.c.h.b16 %v843
    %v1403 = vunpack.c.l.b16 %v844
    %v1404 = vunpack.c.h.b16 %v844
    %v1405 = vunpack.c.l.b16 %v845
    %v1406 = vunpack.c.h.b16 %v845
    %v1407 = vunpack.c.l.b16 %v846
    %v1408 = vunpack.c.h.b16 %v846
    %v1409 = vunpack.c.l.b16 %v847
    %v1410 = vunpack.c.h.b16 %v847
    %v1411 = vunpack.c.l.b16 %v848
    %v1412 = vunpack.c.h.b16 %v848
    %v1413 = vunpack.c.l.b16 %v849
    %v1414 = vunpack.c.h.b16 %v849
    %v1415 = vunpack.c.l.b16 %v850
    %v1416 = vunpack.c.h.b16 %v850
    %v1417 = vunpack.c.l.b16 %v851
    %v1418 = vunpack.c.h.b16 %v851
    %v1419 = vunpack.c.l.b16 %v852
    %v1420 = vunpack.c.h.b16 %v852
    %v1421 = vunpack.c.l.b16 %v853
    %v1422 = vunpack.c.h.b16 %v853
    %v1423 = vunpack.c.l.b16 %v854
    %v1424 = vunpack.c.h.b16 %v854
    %v1425 = vunpack.c.l.b16 %v855
    %v1426 = vunpack.c.h.b16 %v855
    %v1427 = vunpack.c.l.b16 %v856
    %v1428 = vunpack.c.h.b16 %v856
    %v1429 = vunpack.c.l.b16 %v857
    %v1430 = vunpack.c.h.b16 %v857
    %v1431 = vunpack.c.l.b16 %v858
    %v1432 = vunpack.c.h.b16 %v858
    %v1433 = vunpack.c.l.b16 %v859
    %v1434 = vunpack.c.h.b16 %v859
    %v1435 = vunpack.c.l.b16 %v860
    %v1436 = vunpack.c.h.b16 %v860
    %v1437 = vunpack.c.l.b16 %v861
    %v1438 = vunpack.c.h.b16 %v861
    %v1439 = vunpack.c.l.b16 %v862
    %v1440 = vunpack.c.h.b16 %v862
    %v1441 = vunpack.c.l.b16 %v863
    %v1442 = vunpack.c.h.b16 %v863
    %v1443 = vunpack.c.l.b16 %v864
    %v1444 = vunpack.c.h.b16 %v864
    %v1445 = vunpack.c.l.b16 %v865
    %v1446 = vunpack.c.h.b16 %v865
    %v1447 = vunpack.c.l.b16 %v866
    %v1448 = vunpack.c.h.b16 %v866
    %v1449 = vunpack.c.l.b16 %v867
    %v1450 = vunpack.c.h.b16 %v867
    %v1451 = vunpack.c.l.b16 %v868
    %v1452 = vunpack.c.h.b16 %v868
    %v1453 = vunpack.c.l.b16 %v869
    %v1454 = vunpack.c.h.b16 %v869
    %v1455 = vunpack.c.l.b16 %v870
    %v1456 = vunpack.c.h.b16 %v870
    %v1457 = vunpack.c.l.b16 %v871
    %v1458 = vunpack.c.h.b16 %v871
    %v1459 = vunpack.c.l.b16 %v872
    %v1460 = vunpack.c.h.b16 %v872
    %v1461 = vunpack.c.l.b16 %v873
    %v1462 = vunpack.c.h.b16 %v873
    %v1463 = vunpack.c.l.b16 %v874
    %v1464 = vunpack.c.h.b16 %v874
    %v1465 = vunpack.c.l.b16 %v875
    %v1466 = vunpack.c.h.b16 %v875
    %v1467 = vunpack.c.l.b16 %v876
    %v1468 = vunpack.c.h.b16 %v876
    %v1469 = vunpack.c.l.b16 %v877
    %v1470 = vunpack.c.h.b16 %v877
    %v1471 = vunpack.c.l.b16 %v878
    %v1472 = vunpack.c.h.b16 %v878
    %v1473 = vunpack.c.l.b16 %v879
    %v1474 = vunpack.c.h.b16 %v879
    %v1475 = vunpack.c.l.b16 %v880
    %v1476 = vunpack.c.h.b16 %v880
    %v1477 = vunpack.c.l.b16 %v881
    %v1478 = vunpack.c.h.b16 %v881
    %v1479 = vunpack.c.l.b16 %v882
    %v1480 = vunpack.c.h.b16 %v882
    %v1481 = vunpack.c.l.b16 %v883
    %v1482 = vunpack.c.h.b16 %v883
    %v1483 = vunpack.c.l.b16 %v884
    %v1484 = vunpack.c.h.b16 %v884
    %v1485 = vunpack.c.l.b16 %v885
    %v1486 = vunpack.c.h.b16 %v885
    %v1487 = vunpack.c.l.b16 %v886
    %v1488 = vunpack.c.h.b16 %v886
    %v1489 = vunpack.c.l.b16 %v887
    %v1490 = vunpack.c.h.b16 %v887
    %v1491 = vunpack.c.l.b16 %v888
    %v1492 = vunpack.c.h.b16 %v888
    %v1493 = vunpack.c.l.b16 %v889
    %v1494 = vunpack.c.h.b16 %v889
    %v1495 = vunpack.c.l.b16 %v890
    %v1496 = vunpack.c.h.b16 %v890
    %v1497 = vunpack.c.l.b16 %v891
    %v1498 = vunpack.c.h.b16 %v891
    %v1499 = vunpack.c.l.b16 %v892
    %v1500 = vunpack.c.h.b16 %v892
    %v1501 = vunpack.c.l.b16 %v893
    %v1502 = vunpack.c.h.b16 %v893
    %v1503 = vunpack.c.l.b16 %v894
    %v1504 = vunpack.c.h.b16 %v894
    %v1505 = vunpack.c.l.b16 %v895
    %v1506 = vunpack.c.h.b16 %v895
    %v1507 = vunpack.c.l.b16 %v896
    %v1508 = vunpack.c.h.b16 %v896
    %v1509 = vunpack.c.l.b16 %v897
    %v1510 = vunpack.c.h.b16 %v897
    %v1511 = vunpack.c.l.b16 %v898
    %v1512 = vunpack.c.h.b16 %v898
    %v1513 = vunpack.c.l.b16 %v899
    %v1514 = vunpack.c.h.b16 %v899
    %v1515 = vunpack.c.l.b16 %v900
    %v1516 = vunpack.c.h.b16 %v900
    %v1517 = vunpack.c.l.b16 %v901
    %v1518 = vunpack.c.h.b16 %v901
    %v1519 = vunpack.c.l.b16 %v902
    %v1520 = vunpack.c.h.b16 %v902
    %v1521 = vunpack.c.l.b16 %v903
    %v1522 = vunpack.c.h.b16 %v903
    %v1523 = vunpack.c.l.b16 %v904
    %v1524 = vunpack.c.h.b16 %v904
    %v1525 = vunpack.c.l.b16 %v905
    %v1526 = vunpack.c.h.b16 %v905
    %v1527 = vunpack.c.l.b16 %v906
    %v1528 = vunpack.c.h.b16 %v906
    %v1529 = vunpack.c.l.b16 %v907
    %v1530 = vunpack.c.h.b16 %v907
    %v1531 = vunpack.c.l.b16 %v908
    %v1532 = vunpack.c.h.b16 %v908
    %v1533 = vunpack.c.l.b16 %v909
    %v1534 = vunpack.c.h.b16 %v909
    %v1535 = vunpack.c.l.b16 %v910
    %v1536 = vunpack.c.h.b16 %v910
    %v1537 = vunpack.c.l.b16 %v911
    %v1538 = vunpack.c.h.b16 %v911
    %v1539 = vunpack.c.l.b16 %v912
    %v1540 = vunpack.c.h.b16 %v912
    %v1541 = vunpack.c.l.b16 %v913
    %v1542 = vunpack.c.h.b16 %v913
    %v1543 = vunpack.c.l.b16 %v914
    %v1544 = vunpack.c.h.b16 %v914
    %v1545 = vunpack.c.l.b16 %v915
    %v1546 = vunpack.c.h.b16 %v915
    %v1547 = vunpack.c.l.b16 %v916
    %v1548 = vunpack.c.h.b16 %v916
    %v1549 = vunpack.c.l.b16 %v917
    %v1550 = vunpack.c.h.b16 %v917
    %v1551 = vunpack.c.l.b16 %v918
    %v1552 = vunpack.c.h.b16 %v918
    %v1553 = vunpack.c.l.b16 %v919
    %v1554 = vunpack.c.h.b16 %v919
    %v1555 = vunpack.c.l.b16 %v920
    %v1556 = vunpack.c.h.b16 %v920
    %v1557 = vunpack.c.l.b16 %v921
    %v1558 = vunpack.c.h.b16 %v921
    %v1559 = vunpack.c.l.b16 %v922
    %v1560 = vunpack.c.h.b16 %v922
    %v1561 = vunpack.c.l.b16 %v923
    %v1562 = vunpack.c.h.b16 %v923
    %v1563 = vunpack.c.l.b16 %v924
    %v1564 = vunpack.c.h.b16 %v924
    %v1565 = vunpack.c.l.b16 %v925
    %v1566 = vunpack.c.h.b16 %v925
    %v1567 = vunpack.c.l.b16 %v926
    %v1568 = vunpack.c.h.b16 %v926
    %v1569 = vunpack.c.l.b16 %v927
    %v1570 = vunpack.c.h.b16 %v927
    %v1571 = vunpack.c.l.b16 %v928
    %v1572 = vunpack.c.h.b16 %v928
    %v1573 = vunpack.c.l.b16 %v929
    %v1574 = vunpack.c.h.b16 %v929
    %v1575 = vunpack.c.l.b16 %v930
    %v1576 = vunpack.c.h.b16 %v930
    %v1577 = vunpack.c.l.b16 %v931
    %v1578 = vunpack.c.h.b16 %v931
    %v1579 = vunpack.c.l.b16 %v932
    %v1580 = vunpack.c.h.b16 %v932
    %v1581 = vunpack.c.l.b16 %v933
    %v1582 = vunpack.c.h.b16 %v933
    %v1583 = vunpack.c.l.b16 %v934
    %v1584 = vunpack.c.h.b16 %v934
    %v1585 = vunpack.c.l.b16 %v935
    %v1586 = vunpack.c.h.b16 %v935
    %v1587 = vunpack.c.l.b16 %v936
    %v1588 = vunpack.c.h.b16 %v936
    %v1589 = vunpack.c.l.b16 %v937
    %v1590 = vunpack.c.h.b16 %v937
    %v1591 = vunpack.c.l.b16 %v938
    %v1592 = vunpack.c.h.b16 %v938
    %v1593 = vunpack.c.l.b16 %v939
    %v1594 = vunpack.c.h.b16 %v939
    %v1595 = vunpack.c.l.b16 %v940
    %v1596 = vunpack.c.h.b16 %v940
    %v1597 = vunpack.c.l.b16 %v941
    %v1598 = vunpack.c.h.b16 %v941
    %v1599 = vunpack.c.l.b16 %v942
    %v1600 = vunpack.c.h.b16 %v942
    %v1601 = vunpack.c.l.b16 %v943
    %v1602 = vunpack.c.h.b16 %v943
    %v1603 = vunpack.c.l.b16 %v944
    %v1604 = vunpack.c.h.b16 %v944
    %v1605 = vunpack.c.l.b16 %v945
    %v1606 = vunpack.c.h.b16 %v945
    %v1607 = vunpack.c.l.b16 %v946
    %v1608 = vunpack.c.h.b16 %v946
    %v1609 = vunpack.c.l.b16 %v947
    %v1610 = vunpack.c.h.b16 %v947
    %v1611 = vunpack.c.l.b16 %v948
    %v1612 = vunpack.c.h.b16 %v948
    %v1613 = vunpack.c.l.b16 %v949
    %v1614 = vunpack.c.h.b16 %v949
    %v1615 = vunpack.c.l.b16 %v950
    %v1616 = vunpack.c.h.b16 %v950
    %v1617 = vunpack.c.l.b16 %v951
    %v1618 = vunpack.c.h.b16 %v951
    %v1619 = vunpack.c.l.b16 %v952
    %v1620 = vunpack.c.h.b16 %v952
    %v1621 = vunpack.c.l.b16 %v953
    %v1622 = vunpack.c.h.b16 %v953
    %v1623 = vunpack.c.l.b16 %v954
    %v1624 = vunpack.c.h.b16 %v954
    %v1625 = vunpack.c.l.b16 %v955
    %v1626 = vunpack.c.h.b16 %v955
    %v1627 = vunpack.c.l.b16 %v956
    %v1628 = vunpack.c.h.b16 %v956
    %v1629 = vunpack.c.l.b16 %v957
    %v1630 = vunpack.c.h.b16 %v957
    %v1631 = vunpack.c.l.b16 %v958
    %v1632 = vunpack.c.h.b16 %v958
    %v1633 = vunpack.c.l.b16 %v959
    %v1634 = vunpack.c.h.b16 %v959
    %v1635 = vunpack.c.l.b16 %v960
    %v1636 = vunpack.c.h.b16 %v960
    %v1637 = vunpack.c.l.b16 %v961
    %v1638 = vunpack.c.h.b16 %v961
    %v1639 = vunpack.c.l.b16 %v962
    %v1640 = vunpack.c.h.b16 %v962
    %v1641 = vunpack.c.l.b16 %v963
    %v1642 = vunpack.c.h.b16 %v963
    %v1643 = vunpack.c.l.b16 %v964
    %v1644 = vunpack.c.h.b16 %v964
    %v1645 = vunpack.c.l.b16 %v965
    %v1646 = vunpack.c.h.b16 %v965
    %v1647 = vunpack.c.l.b16 %v966
    %v1648 = vunpack.c.h.b16 %v966
    %v1649 = vunpack.c.l.b16 %v967
    %v1650 = vunpack.c.h.b16 %v967
    %v1651 = vunpack.c.l.b16 %v968
    %v1652 = vunpack.c.h.b16 %v968
    %v1653 = vunpack.c.l.b16 %v969
    %v1654 = vunpack.c.h.b16 %v969
    %v1655 = vunpack.c.l.b16 %v970
    %v1656 = vunpack.c.h.b16 %v970
    %v1657 = vunpack.c.l.b16 %v971
    %v1658 = vunpack.c.h.b16 %v971
    %v1659 = vunpack.c.l.b16 %v972
    %v1660 = vunpack.c.h.b16 %v972
    %v1661 = vunpack.c.l.b16 %v973
    %v1662 = vunpack.c.h.b16 %v973
    %v1663 = vunpack.c.l.b16 %v974
    %v1664 = vunpack.c.h.b16 %v974
    %v1665 = vunpack.c.l.b16 %v975
    %v1666 = vunpack.c.h.b16 %v975
    %v1667 = vunpack.c.l.b16 %v976
    %v1668 = vunpack.c.h.b16 %v976
    %v1669 = vunpack.c.l.b16 %v977
    %v1670 = vunpack.c.h.b16 %v977
    %v1671 = vunpack.c.l.b16 %v978
    %v1672 = vunpack.c.h.b16 %v978
    %v1673 = vunpack.c.l.b16 %v979
    %v1674 = vunpack.c.h.b16 %v979
    %v1675 = vunpack.c.l.b16 %v980
    %v1676 = vunpack.c.h.b16 %v980
    %v1677 = vunpack.c.l.b16 %v981
    %v1678 = vunpack.c.h.b16 %v981
    %v1679 = vunpack.c.l.b16 %v982
    %v1680 = vunpack.c.h.b16 %v982
    %v1681 = vunpack.c.l.b16 %v983
    %v1682 = vunpack.c.h.b16 %v983
    %v1683 = vunpack.c.l.b16 %v984
    %v1684 = vunpack.c.h.b16 %v984
    %v1685 = vunpack.c.l.b16 %v985
    %v1686 = vunpack.c.h.b16 %v985
    %v1687 = vunpack.c.l.b16 %v986
    %v1688 = vunpack.c.h.b16 %v986
    %v1689 = vunpack.c.l.b16 %v987
    %v1690 = vunpack.c.h.b16 %v987
    %v1691 = vunpack.c.l.b16 %v988
    %v1692 = vunpack.c.h.b16 %v988
    %v1693 = vunpack.c.l.b16 %v989
    %v1694 = vunpack.c.h.b16 %v989
    %v1695 = vunpack.c.l.b16 %v990
    %v1696 = vunpack.c.h.b16 %v990
    %v1697 = vunpack.c.l.b16 %v991
    %v1698 = vunpack.c.h.b16 %v991
    %v1699 = vunpack.c.l.b16 %v992
    %v1700 = vunpack.c.h.b16 %v992
    %v1701 = vunpack.c.l.b16 %v993
    %v1702 = vunpack.c.h.b16 %v993
    %v1703 = vunpack.c.l.b16 %v994
    %v1704 = vunpack.c.h.b16 %v994
    %v1705 = vunpack.c.l.b16 %v995
    %v1706 = vunpack.c.h.b16 %v995
    %v1707 = vunpack.c.l.b16 %v996
    %v1708 = vunpack.c.h.b16 %v996
    %v1709 = vunpack.c.l.b16 %v997
    %v1710 = vunpack.c.h.b16 %v997
    %v1711 = vunpack.c.l.b16 %v998
    %v1712 = vunpack.c.h.b16 %v998
    %v1713 = vunpack.c.l.b16 %v999
    %v1714 = vunpack.c.h.b16 %v999
    %v1715 = vunpack.c.l.b16 %v1000
    %v1716 = vunpack.c.h.b16 %v1000
    %v1717 = vunpack.c.l.b16 %v1001
    %v1718 = vunpack.c.h.b16 %v1001
    %v1719 = vunpack.c.l.b16 %v1002
    %v1720 = vunpack.c.h.b16 %v1002
    %v1721 = vunpack.c.l.b16 %v1003
    %v1722 = vunpack.c.h.b16 %v1003
    %v1723 = vunpack.c.l.b16 %v1004
    %v1724 = vunpack.c.h.b16 %v1004
    %v1725 = vunpack.c.l.b16 %v1005
    %v1726 = vunpack.c.h.b16 %v1005
    %v1727 = vunpack.c.l.b16 %v1006
    %v1728 = vunpack.c.h.b16 %v1006
    %v1729 = vunpack.c.l.b16 %v1007
    %v1730 = vunpack.c.h.b16 %v1007
    %v1731 = vunpack.c.l.b16 %v1008
    %v1732 = vunpack.c.h.b16 %v1008
    %v1733 = vunpack.c.l.b16 %v1009
    %v1734 = vunpack.c.h.b16 %v1009
    %v1735 = vunpack.c.l.b16 %v1010
    %v1736 = vunpack.c.h.b16 %v1010
    %v1737 = vunpack.c.l.b16 %v1011
    %v1738 = vunpack.c.h.b16 %v1011
    %v1739 = vunpack.c.l.b16 %v1012
    %v1740 = vunpack.c.h.b16 %v1012
    %v1741 = vunpack.c.l.b16 %v1013
    %v1742 = vunpack.c.h.b16 %v1013
    %v1743 = vunpack.c.l.b16 %v1014
    %v1744 = vunpack.c.h.b16 %v1014
    %v1745 = vunpack.c.l.b16 %v1015
    %v1746 = vunpack.c.h.b16 %v1015
    %v1747 = vunpack.c.l.b16 %v1016
    %v1748 = vunpack.c.h.b16 %v1016
    %v1749 = vunpack.c.l.b16 %v1017
    %v1750 = vunpack.c.h.b16 %v1017
    %v1751 = vunpack.c.l.b16 %v1018
    %v1752 = vunpack.c.h.b16 %v1018
    %v1753 = vunpack.c.l.b16 %v1019
    %v1754 = vunpack.c.h.b16 %v1019
    %v1755 = vunpack.c.l.b16 %v1020
    %v1756 = vunpack.c.h.b16 %v1020
    %v1757 = vunpack.c.l.b16 %v1021
    %v1758 = vunpack.c.h.b16 %v1021
    %v1759 = vunpack.c.l.b16 %v1022
    %v1760 = vunpack.c.h.b16 %v1022
    %v1761 = vunpack.c.l.b16 %v1023
    %v1762 = vunpack.c.h.b16 %v1023
    %v1763 = vunpack.c.l.b16 %v1024
    %v1764 = vunpack.c.h.b16 %v1024
    %v1765 = vunpack.c.l.b16 %v1025
    %v1766 = vunpack.c.h.b16 %v1025
    %v1767 = vunpack.c.l.b16 %v1026
    %v1768 = vunpack.c.h.b16 %v1026
    %v1769 = vunpack.c.l.b16 %v1027
    %v1770 = vunpack.c.h.b16 %v1027
    %v1771 = vunpack.c.l.b16 %v1028
    %v1772 = vunpack.c.h.b16 %v1028
    %v1773 = vunpack.c.l.b16 %v1029
    %v1774 = vunpack.c.h.b16 %v1029
    %v1775 = vunpack.c.l.b16 %v1030
    %v1776 = vunpack.c.h.b16 %v1030
    %v1777 = vunpack.c.l.b16 %v1031
    %v1778 = vunpack.c.h.b16 %v1031
    %v1779 = vunpack.c.l.b16 %v1032
    %v1780 = vunpack.c.h.b16 %v1032
    %v1781 = vunpack.c.l.b16 %v1033
    %v1782 = vunpack.c.h.b16 %v1033
    %v1783 = vunpack.c.l.b16 %v1034
    %v1784 = vunpack.c.h.b16 %v1034
    %v1785 = vunpack.c.l.b16 %v1035
    %v1786 = vunpack.c.h.b16 %v1035
    %v1787 = vunpack.c.l.b16 %v1036
    %v1788 = vunpack.c.h.b16 %v1036
    %v1789 = vunpack.c.l.b16 %v1037
    %v1790 = vunpack.c.h.b16 %v1037
    %v1791 = vunpack.c.l.b16 %v1038
    %v1792 = vunpack.c.h.b16 %v1038
    %v1793 = vunpack.c.l.b16 %v1039
    %v1794 = vunpack.c.h.b16 %v1039
    %v1795 = vunpack.c.l.b16 %v1040
    %v1796 = vunpack.c.h.b16 %v1040
    %v1797 = vunpack.c.l.b16 %v1041
    %v1798 = vunpack.c.h.b16 %v1041
    %v1799 = vunpack.c.l.b16 %v1042
    %v1800 = vunpack.c.h.b16 %v1042
    %v1801 = vunpack.c.l.b16 %v1043
    %v1802 = vunpack.c.h.b16 %v1043
    %v1803 = vunpack.c.l.b16 %v1044
    %v1804 = vunpack.c.h.b16 %v1044
    %v1805 = vunpack.c.l.b16 %v1045
    %v1806 = vunpack.c.h.b16 %v1045
    %v1807 = vunpack.c.l.b16 %v1046
    %v1808 = vunpack.c.h.b16 %v1046
    %v1809 = vunpack.c.l.b16 %v1047
    %v1810 = vunpack.c.h.b16 %v1047
    %v1811 = vunpack.c.l.b16 %v1048
    %v1812 = vunpack.c.h.b16 %v1048
    %v1813 = vunpack.c.l.b16 %v1049
    %v1814 = vunpack.c.h.b16 %v1049
    %v1815 = vunpack.c.l.b16 %v1050
    %v1816 = vunpack.c.h.b16 %v1050
    %v1817 = vunpack.c.l.b16 %v1051
    %v1818 = vunpack.c.h.b16 %v1051
    %v1819 = vunpack.c.l.b16 %v1052
    %v1820 = vunpack.c.h.b16 %v1052
    %v1821 = vunpack.c.l.b16 %v1053
    %v1822 = vunpack.c.h.b16 %v1053
    %v1823 = vunpack.c.l.b16 %v1054
    %v1824 = vunpack.c.h.b16 %v1054
    %v1825 = vunpack.c.l.b16 %v1055
    %v1826 = vunpack.c.h.b16 %v1055
    %v1827 = vunpack.c.l.b16 %v1056
    %v1828 = vunpack.c.h.b16 %v1056
    %v1829 = vunpack.c.l.b16 %v1057
    %v1830 = vunpack.c.h.b16 %v1057
    %v1831 = vunpack.c.l.b16 %v1058
    %v1832 = vunpack.c.h.b16 %v1058
    %v1833 = vunpack.c.l.b16 %v1059
    %v1834 = vunpack.c.h.b16 %v1059
    %v1835 = vunpack.c.l.b16 %v1060
    %v1836 = vunpack.c.h.b16 %v1060
    %v1837 = vunpack.c.l.b16 %v1061
    %v1838 = vunpack.c.h.b16 %v1061
    %v1839 = vunpack.c.l.b16 %v1062
    %v1840 = vunpack.c.h.b16 %v1062
    %v1841 = vpack.c.b16 %v1333, %v1329
    %v1842 = vpack.c.b16 %v1334, %v1330
    %v1843 = vpack.c.b16 %v1335, %v1331
    %v1844 = vpack.c.b16 %v1336, %v1332
    %v1845 = vpack.c.b16 %v1341, %v1337
    %v1846 = vpack.c.b16 %v1342, %v1338
    %v1847 = vpack.c.b16 %v1343, %v1339
    %v1848 = vpack.c.b16 %v1344, %v1340
    %v1849 = vpack.c.b16 %v1349, %v1345
    %v1850 = vpack.c.b16 %v1350, %v1346
    %v1851 = vpack.c.b16 %v1351, %v1347
    %v1852 = vpack.c.b16 %v1352, %v1348
    %v1853 = vpack.c.b16 %v1357, %v1353
    %v1854 = vpack.c.b16 %v1358, %v1354
    %v1855 = vpack.c.b16 %v1359, %v1355
    %v1856 = vpack.c.b16 %v1360, %v1356
    %v1857 = vpack.c.b16 %v1365, %v1361
    %v1858 = vpack.c.b16 %v1366, %v1362
    %v1859 = vpack.c.b16 %v1367, %v1363
    %v1860 = vpack.c.b16 %v1368, %v1364
    %v1861 = vpack.c.b16 %v1373, %v1369
    %v1862 = vpack.c.b16 %v1374, %v1370
    %v1863 = vpack.c.b16 %v1375, %v1371
    %v1864 = vpack.c.b16 %v1376, %v1372
    %v1865 = vpack.c.b16 %v1381, %v1377
    %v1866 = vpack.c.b16 %v1382, %v1378
    %v1867 = vpack.c.b16 %v1383, %v1379
    %v1868 = vpack.c.b16 %v1384, %v1380
    %v1869 = vpack.c.b16 %v1389, %v1385
    %v1870 = vpack.c.b16 %v1390, %v1386
    %v1871 = vpack.c.b16 %v1391, %v1387
    %v1872 = vpack.c.b16 %v1392, %v1388
    %v1873 = vpack.c.b16 %v1397, %v1393
    %v1874 = vpack.c.b16 %v1398, %v1394
    %v1875 = vpack.c.b16 %v1399, %v1395
    %v1876 = vpack.c.b16 %v1400, %v1396
    %v1877 = vpack.c.b16 %v1405, %v1401
    %v1878 = vpack.c.b16 %v1406, %v1402
    %v1879 = vpack.c.b16 %v1407, %v1403
    %v1880 = vpack.c.b16 %v1408, %v1404
    %v1881 = vpack.c.b16 %v1413, %v1409
    %v1882 = vpack.c.b16 %v1414, %v1410
    %v1883 = vpack.c.b16 %v1415, %v1411
    %v1884 = vpack.c.b16 %v1416, %v1412
    %v1885 = vpack.c.b16 %v1421, %v1417
    %v1886 = vpack.c.b16 %v1422, %v1418
    %v1887 = vpack.c.b16 %v1423, %v1419
    %v1888 = vpack.c.b16 %v1424, %v1420
    %v1889 = vpack.c.b16 %v1429, %v1425
    %v1890 = vpack.c.b16 %v1430, %v1426
    %v1891 = vpack.c.b16 %v1431, %v1427
    %v1892 = vpack.c.b16 %v1432, %v1428
    %v1893 = vpack.c.b16 %v1437, %v1433
    %v1894 = vpack.c.b16 %v1438, %v1434
    %v1895 = vpack.c.b16 %v1439, %v1435
    %v1896 = vpack.c.b16 %v1440, %v1436
    %v1897 = vpack.c.b16 %v1445, %v1441
    %v1898 = vpack.c.b16 %v1446, %v1442
    %v1899 = vpack.c.b16 %v1447, %v1443
    %v1900 = vpack.c.b16 %v1448, %v1444
    %v1901 = vpack.c.b16 %v1453, %v1449
    %v1902 = vpack.c.b16 %v1454, %v1450
    %v1903 = vpack.c.b16 %v1455, %v1451
    %v1904 = vpack.c.b16 %v1456, %v1452
    %v1905 = vpack.c.b16 %v1461, %v1457
    %v1906 = vpack.c.b16 %v1462, %v1458
    %v1907 = vpack.c.b16 %v1463, %v1459
    %v1908 = vpack.c.b16 %v1464, %v1460
    %v1909 = vpack.c.b16 %v1469, %v1465
    %v1910 = vpack.c.b16 %v1470, %v1466
    %v1911 = vpack.c.b16 %v1471, %v1467
    %v1912 = vpack.c.b16 %v1472, %v1468
    %v1913 = vpack.c.b16 %v1477, %v1473
    %v1914 = vpack.c.b16 %v1478, %v1474
    %v1915 = vpack.c.b16 %v1479, %v1475
    %v1916 = vpack.c.b16 %v1480, %v1476
    %v1917 = vpack.c.b16 %v1485, %v1481
    %v1918 = vpack.c.b16 %v1486, %v1482
    %v1919 = vpack.c.b16 %v1487, %v1483
    %v1920 = vpack.c.b16 %v1488, %v1484
    %v1921 = vpack.c.b16 %v1493, %v1489
    %v1922 = vpack.c.b16 %v1494, %v1490
    %v1923 = vpack.c.b16 %v1495, %v1491
    %v1924 = vpack.c.b16 %v1496, %v1492
    %v1925 = vpack.c.b16 %v1501, %v1497
    %v1926 = vpack.c.b16 %v1502, %v1498
    %v1927 = vpack.c.b16 %v1503, %v1499
    %v1928 = vpack.c.b16 %v1504, %v1500
    %v1929 = vpack.c.b16 %v1509, %v1505
    %v1930 = vpack.c.b16 %v1510, %v1506
    %v1931 = vpack.c.b16 %v1511, %v1507
    %v1932 = vpack.c.b16 %v1512, %v1508
    %v1933 = vpack.c.b16 %v1517, %v1513
    %v1934 = vpack.c.b16 %v1518, %v1514
    %v1935 = vpack.c.b16 %v1519, %v1515
    %v1936 = vpack.c.b16 %v1520, %v1516
    %v1937 = vpack.c.b16 %v1525, %v1521
    %v1938 = vpack.c.b16 %v1526, %v1522
    %v1939 = vpack.c.b16 %v1527, %v1523
    %v1940 = vpack.c.b16 %v1528, %v1524
    %v1941 = vpack.c.b16 %v1533, %v1529
    %v1942 = vpack.c.b16 %v1534, %v1530
    %v1943 = vpack.c.b16 %v1535, %v1531
    %v1944 = vpack.c.b16 %v1536, %v1532
    %v1945 = vpack.c.b16 %v1541, %v1537
    %v1946 = vpack.c.b16 %v1542, %v1538
    %v1947 = vpack.c.b16 %v1543, %v1539
    %v1948 = vpack.c.b16 %v1544, %v1540
    %v1949 = vpack.c.b16 %v1549, %v1545
    %v1950 = vpack.c.b16 %v1550, %v1546
    %v1951 = vpack.c.b16 %v1551, %v1547
    %v1952 = vpack.c.b16 %v1552, %v1548
    %v1953 = vpack.c.b16 %v1557, %v1553
    %v1954 = vpack.c.b16 %v1558, %v1554
    %v1955 = vpack.c.b16 %v1559, %v1555
    %v1956 = vpack.c.b16 %v1560, %v1556
    %v1957 = vpack.c.b16 %v1565, %v1561
    %v1958 = vpack.c.b16 %v1566, %v1562
    %v1959 = vpack.c.b16 %v1567, %v1563
    %v1960 = vpack.c.b16 %v1568, %v1564
    %v1961 = vpack.c.b16 %v1573, %v1569
    %v1962 = vpack.c.b16 %v1574, %v1570
    %v1963 = vpack.c.b16 %v1575, %v1571
    %v1964 = vpack.c.b16 %v1576, %v1572
    %v1965 = vpack.c.b16 %v1581, %v1577
    %v1966 = vpack.c.b16 %v1582, %v1578
    %v1967 = vpack.c.b16 %v1583, %v1579
    %v1968 = vpack.c.b16 %v1584, %v1580
    %v1969 = vpack.c.b16 %v1589, %v1585
    %v1970 = vpack.c.b16 %v1590, %v1586
    %v1971 = vpack.c.b16 %v1591, %v1587
    %v1972 = vpack.c.b16 %v1592, %v1588
    %v1973 = vpack.c.b16 %v1597, %v1593
    %v1974 = vpack.c.b16 %v1598, %v1594
    %v1975 = vpack.c.b16 %v1599, %v1595
    %v1976 = vpack.c.b16 %v1600, %v1596
    %v1977 = vpack.c.b16 %v1605, %v1601
    %v1978 = vpack.c.b16 %v1606, %v1602
    %v1979 = vpack.c.b16 %v1607, %v1603
    %v1980 = vpack.c.b16 %v1608, %v1604
    %v1981 = vpack.c.b16 %v1613, %v1609
    %v1982 = vpack.c.b16 %v1614, %v1610
    %v1983 = vpack.c.b16 %v1615, %v1611
    %v1984 = vpack.c.b16 %v1616, %v1612
    %v1985 = vpack.c.b16 %v1621, %v1617
    %v1986 = vpack.c.b16 %v1622, %v1618
    %v1987 = vpack.c.b16 %v1623, %v1619
    %v1988 = vpack.c.b16 %v1624, %v1620
    %v1989 = vpack.c.b16 %v1629, %v1625
    %v1990 = vpack.c.b16 %v1630, %v1626
    %v1991 = vpack.c.b16 %v1631, %v1627
    %v1992 = vpack.c.b16 %v1632, %v1628
    %v1993 = vpack.c.b16 %v1637, %v1633
    %v1994 = vpack.c.b16 %v1638, %v1634
    %v1995 = vpack.c.b16 %v1639, %v1635
    %v1996 = vpack.c.b16 %v1640, %v1636
    %v1997 = vpack.c.b16 %v1645, %v1641
    %v1998 = vpack.c.b16 %v1646, %v1642
    %v1999 = vpack.c.b16 %v1647, %v1643
    %v2000 = vpack.c.b16 %v1648, %v1644
    %v2001 = vpack.c.b16 %v1653, %v1649
    %v2002 = vpack.c.b16 %v1654, %v1650
    %v2003 = vpack.c.b16 %v1655, %v1651
    %v2004 = vpack.c.b16 %v1656, %v1652
    %v2005 = vpack.c.b16 %v1661, %v1657
    %v2006 = vpack.c.b16 %v1662, %v1658
    %v2007 = vpack.c.b16 %v1663, %v1659
    %v2008 = vpack.c.b16 %v1664, %v1660
    %v2009 = vpack.c.b16 %v1669, %v1665
    %v2010 = vpack.c.b16 %v1670, %v1666
    %v2011 = vpack.c.b16 %v1671, %v1667
    %v2012 = vpack.c.b16 %v1672, %v1668
    %v2013 = vpack.c.b16 %v1677, %v1673
    %v2014 = vpack.c.b16 %v1678, %v1674
    %v2015 = vpack.c.b16 %v1679, %v1675
    %v2016 = vpack.c.b16 %v1680, %v1676
    %v2017 = vpack.c.b16 %v1685, %v1681
    %v2018 = vpack.c.b16 %v1686, %v1682
    %v2019 = vpack.c.b16 %v1687, %v1683
    %v2020 = vpack.c.b16 %v1688, %v1684
    %v2021 = vpack.c.b16 %v1693, %v1689
    %v2022 = vpack.c.b16 %v1694, %v1690
    %v2023 = vpack.c.b16 %v1695, %v1691
    %v2024 = vpack.c.b16 %v1696, %v1692
    %v2025 = vpack.c.b16 %v1701, %v1697
    %v2026 = vpack.c.b16 %v1702, %v1698
    %v2027 = vpack.c.b16 %v1703, %v1699
    %v2028 = vpack.c.b16 %v1704, %v1700
    %v2029 = vpack.c.b16 %v1709, %v1705
    %v2030 = vpack.c.b16 %v1710, %v1706
    %v2031 = vpack.c.b16 %v1711, %v1707
    %v2032 = vpack.c.b16 %v1712, %v1708
    %v2033 = vpack.c.b16 %v1717, %v1713
    %v2034 = vpack.c.b16 %v1718, %v1714
    %v2035 = vpack.c.b16 %v1719, %v1715
    %v2036 = vpack.c.b16 %v1720, %v1716
    %v2037 = vpack.c.b16 %v1725, %v1721
    %v2038 = vpack.c.b16 %v1726, %v1722
    %v2039 = vpack.c.b16 %v1727, %v1723
    %v2040 = vpack.c.b16 %v1728, %v1724
    %v2041 = vpack.c.b16 %v1733, %v1729
    %v2042 = vpack.c.b16 %v1734, %v1730
    %v2043 = vpack.c.b16 %v1735, %v1731
    %v2044 = vpack.c.b16 %v1736, %v1732
    %v2045 = vpack.c.b16 %v1741, %v1737
    %v2046 = vpack.c.b16 %v1742, %v1738
    %v2047 = vpack.c.b16 %v1743, %v1739
    %v2048 = vpack.c.b16 %v1744, %v1740
    %v2049 = vpack.c.b16 %v1749, %v1745
    %v2050 = vpack.c.b16 %v1750, %v1746
    %v2051 = vpack.c.b16 %v1751, %v1747
    %v2052 = vpack.c.b16 %v1752, %v1748
    %v2053 = vpack.c.b16 %v1757, %v1753
    %v2054 = vpack.c.b16 %v1758, %v1754
    %v2055 = vpack.c.b16 %v1759, %v1755
    %v2056 = vpack.c.b16 %v1760, %v1756
    %v2057 = vpack.c.b16 %v1765, %v1761
    %v2058 = vpack.c.b16 %v1766, %v1762
    %v2059 = vpack.c.b16 %v1767, %v1763
    %v2060 = vpack.c.b16 %v1768, %v1764
    %v2061 = vpack.c.b16 %v1773, %v1769
    %v2062 = vpack.c.b16 %v1774, %v1770
    %v2063 = vpack.c.b16 %v1775, %v1771
    %v2064 = vpack.c.b16 %v1776, %v1772
    %v2065 = vpack.c.b16 %v1781, %v1777
    %v2066 = vpack.c.b16 %v1782, %v1778
    %v2067 = vpack.c.b16 %v1783, %v1779
    %v2068 = vpack.c.b16 %v1784, %v1780
    %v2069 = vpack.c.b16 %v1789, %v1785
    %v2070 = vpack.c.b16 %v1790, %v1786
    %v2071 = vpack.c.b16 %v1791, %v1787
    %v2072 = vpack.c.b16 %v1792, %v1788
    %v2073 = vpack.c.b16 %v1797, %v1793
    %v2074 = vpack.c.b16 %v1798, %v1794
    %v2075 = vpack.c.b16 %v1799, %v1795
    %v2076 = vpack.c.b16 %v1800, %v1796
    %v2077 = vpack.c.b16 %v1805, %v1801
    %v2078 = vpack.c.b16 %v1806, %v1802
    %v2079 = vpack.c.b16 %v1807, %v1803
    %v2080 = vpack.c.b16 %v1808, %v1804
    %v2081 = vpack.c.b16 %v1813, %v1809
    %v2082 = vpack.c.b16 %v1814, %v1810
    %v2083 = vpack.c.b16 %v1815, %v1811
    %v2084 = vpack.c.b16 %v1816, %v1812
    %v2085 = vpack.c.b16 %v1821, %v1817
    %v2086 = vpack.c.b16 %v1822, %v1818
    %v2087 = vpack.c.b16 %v1823, %v1819
    %v2088 = vpack.c.b16 %v1824, %v1820
    %v2089 = vpack.c.b16 %v1829, %v1825
    %v2090 = vpack.c.b16 %v1830, %v1826
    %v2091 = vpack.c.b16 %v1831, %v1827
    %v2092 = vpack.c.b16 %v1832, %v1828
    %v2093 = vpack.c.b16 %v1837, %v1833
    %v2094 = vpack.c.b16 %v1838, %v1834
    %v2095 = vpack.c.b16 %v1839, %v1835
    %v2096 = vpack.c.b16 %v1840, %v1836
    %2353 = vmatpush.bf16.msra.mxu0 %v1869
    %2354 = vmatpush.bf16.msra.mxu0 %v1865
    %2355 = vmatpush.bf16.msra.mxu0 %v1861
    %2356 = vmatpush.bf16.msra.mxu0 %v1857
    %2357 = vmatpush.bf16.msra.mxu0 %v1853
    %2358 = vmatpush.bf16.msra.mxu0 %v1849
    %2359 = vmatpush.bf16.msra.mxu0 %v1845
    %2360 = vmatpush.bf16.msra.mxu0 %v1841
    %2361 = vmatmul.bf16.gmra.mxu0 %v799
    %v2362 = vpop.f32.mrf.mxu0
    %v2363 = vadd.f32 %v1065, %v2362
    %v2364 = vpop.f32.mrf.mxu0
    %v2365 = vadd.f32 %v1065, %v2364
    %2366 = vdwg.mxu0
    %2367 = vmatpush.bf16.msra.mxu0 %v1901
    %2368 = vmatpush.bf16.msra.mxu0 %v1897
    %2369 = vmatpush.bf16.msra.mxu0 %v1893
    %2370 = vmatpush.bf16.msra.mxu0 %v1889
    %2371 = vmatpush.bf16.msra.mxu0 %v1885
    %2372 = vmatpush.bf16.msra.mxu0 %v1881
    %2373 = vmatpush.bf16.msra.mxu0 %v1877
    %2374 = vmatpush.bf16.msra.mxu0 %v1873
    %2375 = vmatmul.bf16.gmra.mxu0 %v800
    %v2376 = vpop.f32.mrf.mxu0
    %v2377 = vadd.f32 %v2363, %v2376
    %v2378 = vpop.f32.mrf.mxu0
    %v2379 = vadd.f32 %v2365, %v2378
    %2380 = vdwg.mxu0
    %2381 = vmatpush.bf16.msra.mxu0 %v1933
    %2382 = vmatpush.bf16.msra.mxu0 %v1929
    %2383 = vmatpush.bf16.msra.mxu0 %v1925
    %2384 = vmatpush.bf16.msra.mxu0 %v1921
    %2385 = vmatpush.bf16.msra.mxu0 %v1917
    %2386 = vmatpush.bf16.msra.mxu0 %v1913
    %2387 = vmatpush.bf16.msra.mxu0 %v1909
    %2388 = vmatpush.bf16.msra.mxu0 %v1905
    %2389 = vmatmul.bf16.gmra.mxu0 %v801
    %v2390 = vpop.f32.mrf.mxu0
    %v2391 = vadd.f32 %v2377, %v2390
    %v2392 = vpop.f32.mrf.mxu0
    %v2393 = vadd.f32 %v2379, %v2392
    %2394 = vdwg.mxu0
    %2395 = vmatpush.bf16.msra.mxu0 %v1965
    %2396 = vmatpush.bf16.msra.mxu0 %v1961
    %2397 = vmatpush.bf16.msra.mxu0 %v1957
    %2398 = vmatpush.bf16.msra.mxu0 %v1953
    %2399 = vmatpush.bf16.msra.mxu0 %v1949
    %2400 = vmatpush.bf16.msra.mxu0 %v1945
    %2401 = vmatpush.bf16.msra.mxu0 %v1941
    %2402 = vmatpush.bf16.msra.mxu0 %v1937
    %2403 = vmatmul.bf16.gmra.mxu0 %v802
    %v2404 = vpop.f32.mrf.mxu0
    %v2405 = vadd.f32 %v2391, %v2404
    %v2406 = vpop.f32.mrf.mxu0
    %v2407 = vadd.f32 %v2393, %v2406
    %2408 = vdwg.mxu0
    %2409 = vmatpush.bf16.msra.mxu0 %v1997
    %2410 = vmatpush.bf16.msra.mxu0 %v1993
    %2411 = vmatpush.bf16.msra.mxu0 %v1989
    %2412 = vmatpush.bf16.msra.mxu0 %v1985
    %2413 = vmatpush.bf16.msra.mxu0 %v1981
    %2414 = vmatpush.bf16.msra.mxu0 %v1977
    %2415 = vmatpush.bf16.msra.mxu0 %v1973
    %2416 = vmatpush.bf16.msra.mxu0 %v1969
    %2417 = vmatmul.bf16.gmra.mxu0 %v803
    %v2418 = vpop.f32.mrf.mxu0
    %v2419 = vadd.f32 %v2405, %v2418
    %v2420 = vpop.f32.mrf.mxu0
    %v2421 = vadd.f32 %v2407, %v2420
    %2422 = vdwg.mxu0
    %2423 = vmatpush.bf16.msra.mxu0 %v2029
    %2424 = vmatpush.bf16.msra.mxu0 %v2025
    %2425 = vmatpush.bf16.msra.mxu0 %v2021
    %2426 = vmatpush.bf16.msra.mxu0 %v2017
    %2427 = vmatpush.bf16.msra.mxu0 %v2013
    %2428 = vmatpush.bf16.msra.mxu0 %v2009
    %2429 = vmatpush.bf16.msra.mxu0 %v2005
    %2430 = vmatpush.bf16.msra.mxu0 %v2001
    %2431 = vmatmul.bf16.gmra.mxu0 %v804
    %v2432 = vpop.f32.mrf.mxu0
    %v2433 = vadd.f32 %v2419, %v2432
    %v2434 = vpop.f32.mrf.mxu0
    %v2435 = vadd.f32 %v2421, %v2434
    %2436 = vdwg.mxu0
    %2437 = vmatpush.bf16.msra.mxu0 %v2061
    %2438 = vmatpush.bf16.msra.mxu0 %v2057
    %2439 = vmatpush.bf16.msra.mxu0 %v2053
    %2440 = vmatpush.bf16.msra.mxu0 %v2049
    %2441 = vmatpush.bf16.msra.mxu0 %v2045
    %2442 = vmatpush.bf16.msra.mxu0 %v2041
    %2443 = vmatpush.bf16.msra.mxu0 %v2037
    %2444 = vmatpush.bf16.msra.mxu0 %v2033
    %2445 = vmatmul.bf16.gmra.mxu0 %v805
    %v2446 = vpop.f32.mrf.mxu0
    %v2447 = vadd.f32 %v2433, %v2446
    %v2448 = vpop.f32.mrf.mxu0
    %v2449 = vadd.f32 %v2435, %v2448
    %2450 = vdwg.mxu0
    %2451 = vmatpush.bf16.msra.mxu0 %v2093
    %2452 = vmatpush.bf16.msra.mxu0 %v2089
    %2453 = vmatpush.bf16.msra.mxu0 %v2085
    %2454 = vmatpush.bf16.msra.mxu0 %v2081
    %2455 = vmatpush.bf16.msra.mxu0 %v2077
    %2456 = vmatpush.bf16.msra.mxu0 %v2073
    %2457 = vmatpush.bf16.msra.mxu0 %v2069
    %2458 = vmatpush.bf16.msra.mxu0 %v2065
    %2459 = vmatmul.bf16.gmra.mxu0 %v806
    %v2460 = vpop.f32.mrf.mxu0
    %v2461 = vadd.f32 %v2447, %v2460
    %v2462 = vpop.f32.mrf.mxu0
    %v2463 = vadd.f32 %v2449, %v2462
    %2464 = vdwg.mxu0
    %2465 = vmatpush.bf16.msra.mxu0 %v1870
    %2466 = vmatpush.bf16.msra.mxu0 %v1866
    %2467 = vmatpush.bf16.msra.mxu0 %v1862
    %2468 = vmatpush.bf16.msra.mxu0 %v1858
    %2469 = vmatpush.bf16.msra.mxu0 %v1854
    %2470 = vmatpush.bf16.msra.mxu0 %v1850
    %2471 = vmatpush.bf16.msra.mxu0 %v1846
    %2472 = vmatpush.bf16.msra.mxu0 %v1842
    %2473 = vmatmul.bf16.gmra.mxu0 %v799
    %v2474 = vpop.f32.mrf.mxu0
    %v2475 = vadd.f32 %v1066, %v2474
    %v2476 = vpop.f32.mrf.mxu0
    %v2477 = vadd.f32 %v1066, %v2476
    %2478 = vdwg.mxu0
    %2479 = vmatpush.bf16.msra.mxu0 %v1902
    %2480 = vmatpush.bf16.msra.mxu0 %v1898
    %2481 = vmatpush.bf16.msra.mxu0 %v1894
    %2482 = vmatpush.bf16.msra.mxu0 %v1890
    %2483 = vmatpush.bf16.msra.mxu0 %v1886
    %2484 = vmatpush.bf16.msra.mxu0 %v1882
    %2485 = vmatpush.bf16.msra.mxu0 %v1878
    %2486 = vmatpush.bf16.msra.mxu0 %v1874
    %2487 = vmatmul.bf16.gmra.mxu0 %v800
    %v2488 = vpop.f32.mrf.mxu0
    %v2489 = vadd.f32 %v2475, %v2488
    %v2490 = vpop.f32.mrf.mxu0
    %v2491 = vadd.f32 %v2477, %v2490
    %2492 = vdwg.mxu0
    %2493 = vmatpush.bf16.msra.mxu0 %v1934
    %2494 = vmatpush.bf16.msra.mxu0 %v1930
    %2495 = vmatpush.bf16.msra.mxu0 %v1926
    %2496 = vmatpush.bf16.msra.mxu0 %v1922
    %2497 = vmatpush.bf16.msra.mxu0 %v1918
    %2498 = vmatpush.bf16.msra.mxu0 %v1914
    %2499 = vmatpush.bf16.msra.mxu0 %v1910
    %2500 = vmatpush.bf16.msra.mxu0 %v1906
    %2501 = vmatmul.bf16.gmra.mxu0 %v801
    %v2502 = vpop.f32.mrf.mxu0
    %v2503 = vadd.f32 %v2489, %v2502
    %v2504 = vpop.f32.mrf.mxu0
    %v2505 = vadd.f32 %v2491, %v2504
    %2506 = vdwg.mxu0
    %2507 = vmatpush.bf16.msra.mxu0 %v1966
    %2508 = vmatpush.bf16.msra.mxu0 %v1962
    %2509 = vmatpush.bf16.msra.mxu0 %v1958
    %2510 = vmatpush.bf16.msra.mxu0 %v1954
    %2511 = vmatpush.bf16.msra.mxu0 %v1950
    %2512 = vmatpush.bf16.msra.mxu0 %v1946
    %2513 = vmatpush.bf16.msra.mxu0 %v1942
    %2514 = vmatpush.bf16.msra.mxu0 %v1938
    %2515 = vmatmul.bf16.gmra.mxu0 %v802
    %v2516 = vpop.f32.mrf.mxu0
    %v2517 = vadd.f32 %v2503, %v2516
    %v2518 = vpop.f32.mrf.mxu0
    %v2519 = vadd.f32 %v2505, %v2518
    %2520 = vdwg.mxu0
    %2521 = vmatpush.bf16.msra.mxu0 %v1998
    %2522 = vmatpush.bf16.msra.mxu0 %v1994
    %2523 = vmatpush.bf16.msra.mxu0 %v1990
    %2524 = vmatpush.bf16.msra.mxu0 %v1986
    %2525 = vmatpush.bf16.msra.mxu0 %v1982
    %2526 = vmatpush.bf16.msra.mxu0 %v1978
    %2527 = vmatpush.bf16.msra.mxu0 %v1974
    %2528 = vmatpush.bf16.msra.mxu0 %v1970
    %2529 = vmatmul.bf16.gmra.mxu0 %v803
    %v2530 = vpop.f32.mrf.mxu0
    %v2531 = vadd.f32 %v2517, %v2530
    %v2532 = vpop.f32.mrf.mxu0
    %v2533 = vadd.f32 %v2519, %v2532
    %2534 = vdwg.mxu0
    %2535 = vmatpush.bf16.msra.mxu0 %v2030
    %2536 = vmatpush.bf16.msra.mxu0 %v2026
    %2537 = vmatpush.bf16.msra.mxu0 %v2022
    %2538 = vmatpush.bf16.msra.mxu0 %v2018
    %2539 = vmatpush.bf16.msra.mxu0 %v2014
    %2540 = vmatpush.bf16.msra.mxu0 %v2010
    %2541 = vmatpush.bf16.msra.mxu0 %v2006
    %2542 = vmatpush.bf16.msra.mxu0 %v2002
    %2543 = vmatmul.bf16.gmra.mxu0 %v804
    %v2544 = vpop.f32.mrf.mxu0
    %v2545 = vadd.f32 %v2531, %v2544
    %v2546 = vpop.f32.mrf.mxu0
    %v2547 = vadd.f32 %v2533, %v2546
    %2548 = vdwg.mxu0
    %2549 = vmatpush.bf16.msra.mxu0 %v2062
    %2550 = vmatpush.bf16.msra.mxu0 %v2058
    %2551 = vmatpush.bf16.msra.mxu0 %v2054
    %2552 = vmatpush.bf16.msra.mxu0 %v2050
    %2553 = vmatpush.bf16.msra.mxu0 %v2046
    %2554 = vmatpush.bf16.msra.mxu0 %v2042
    %2555 = vmatpush.bf16.msra.mxu0 %v2038
    %2556 = vmatpush.bf16.msra.mxu0 %v2034
    %2557 = vmatmul.bf16.gmra.mxu0 %v805
    %v2558 = vpop.f32.mrf.mxu0
    %v2559 = vadd.f32 %v2545, %v2558
    %v2560 = vpop.f32.mrf.mxu0
    %v2561 = vadd.f32 %v2547, %v2560
    %2562 = vdwg.mxu0
    %2563 = vmatpush.bf16.msra.mxu0 %v2094
    %2564 = vmatpush.bf16.msra.mxu0 %v2090
    %2565 = vmatpush.bf16.msra.mxu0 %v2086
    %2566 = vmatpush.bf16.msra.mxu0 %v2082
    %2567 = vmatpush.bf16.msra.mxu0 %v2078
    %2568 = vmatpush.bf16.msra.mxu0 %v2074
    %2569 = vmatpush.bf16.msra.mxu0 %v2070
    %2570 = vmatpush.bf16.msra.mxu0 %v2066
    %2571 = vmatmul.bf16.gmra.mxu0 %v806
    %v2572 = vpop.f32.mrf.mxu0
    %v2573 = vadd.f32 %v2559, %v2572
    %v2574 = vpop.f32.mrf.mxu0
    %v2575 = vadd.f32 %v2561, %v2574
    %2576 = vdwg.mxu0
    %2577 = vmatpush.bf16.msra.mxu0 %v1871
    %2578 = vmatpush.bf16.msra.mxu0 %v1867
    %2579 = vmatpush.bf16.msra.mxu0 %v1863
    %2580 = vmatpush.bf16.msra.mxu0 %v1859
    %2581 = vmatpush.bf16.msra.mxu0 %v1855
    %2582 = vmatpush.bf16.msra.mxu0 %v1851
    %2583 = vmatpush.bf16.msra.mxu0 %v1847
    %2584 = vmatpush.bf16.msra.mxu0 %v1843
    %2585 = vmatmul.bf16.gmra.mxu0 %v799
    %v2586 = vpop.f32.mrf.mxu0
    %v2587 = vadd.f32 %v1067, %v2586
    %v2588 = vpop.f32.mrf.mxu0
    %v2589 = vadd.f32 %v1067, %v2588
    %2590 = vdwg.mxu0
    %2591 = vmatpush.bf16.msra.mxu0 %v1903
    %2592 = vmatpush.bf16.msra.mxu0 %v1899
    %2593 = vmatpush.bf16.msra.mxu0 %v1895
    %2594 = vmatpush.bf16.msra.mxu0 %v1891
    %2595 = vmatpush.bf16.msra.mxu0 %v1887
    %2596 = vmatpush.bf16.msra.mxu0 %v1883
    %2597 = vmatpush.bf16.msra.mxu0 %v1879
    %2598 = vmatpush.bf16.msra.mxu0 %v1875
    %2599 = vmatmul.bf16.gmra.mxu0 %v800
    %v2600 = vpop.f32.mrf.mxu0
    %v2601 = vadd.f32 %v2587, %v2600
    %v2602 = vpop.f32.mrf.mxu0
    %v2603 = vadd.f32 %v2589, %v2602
    %2604 = vdwg.mxu0
    %2605 = vmatpush.bf16.msra.mxu0 %v1935
    %2606 = vmatpush.bf16.msra.mxu0 %v1931
    %2607 = vmatpush.bf16.msra.mxu0 %v1927
    %2608 = vmatpush.bf16.msra.mxu0 %v1923
    %2609 = vmatpush.bf16.msra.mxu0 %v1919
    %2610 = vmatpush.bf16.msra.mxu0 %v1915
    %2611 = vmatpush.bf16.msra.mxu0 %v1911
    %2612 = vmatpush.bf16.msra.mxu0 %v1907
    %2613 = vmatmul.bf16.gmra.mxu0 %v801
    %v2614 = vpop.f32.mrf.mxu0
    %v2615 = vadd.f32 %v2601, %v2614
    %v2616 = vpop.f32.mrf.mxu0
    %v2617 = vadd.f32 %v2603, %v2616
    %2618 = vdwg.mxu0
    %2619 = vmatpush.bf16.msra.mxu0 %v1967
    %2620 = vmatpush.bf16.msra.mxu0 %v1963
    %2621 = vmatpush.bf16.msra.mxu0 %v1959
    %2622 = vmatpush.bf16.msra.mxu0 %v1955
    %2623 = vmatpush.bf16.msra.mxu0 %v1951
    %2624 = vmatpush.bf16.msra.mxu0 %v1947
    %2625 = vmatpush.bf16.msra.mxu0 %v1943
    %2626 = vmatpush.bf16.msra.mxu0 %v1939
    %2627 = vmatmul.bf16.gmra.mxu0 %v802
    %v2628 = vpop.f32.mrf.mxu0
    %v2629 = vadd.f32 %v2615, %v2628
    %v2630 = vpop.f32.mrf.mxu0
    %v2631 = vadd.f32 %v2617, %v2630
    %2632 = vdwg.mxu0
    %2633 = vmatpush.bf16.msra.mxu0 %v1999
    %2634 = vmatpush.bf16.msra.mxu0 %v1995
    %2635 = vmatpush.bf16.msra.mxu0 %v1991
    %2636 = vmatpush.bf16.msra.mxu0 %v1987
    %2637 = vmatpush.bf16.msra.mxu0 %v1983
    %2638 = vmatpush.bf16.msra.mxu0 %v1979
    %2639 = vmatpush.bf16.msra.mxu0 %v1975
    %2640 = vmatpush.bf16.msra.mxu0 %v1971
    %2641 = vmatmul.bf16.gmra.mxu0 %v803
    %v2642 = vpop.f32.mrf.mxu0
    %v2643 = vadd.f32 %v2629, %v2642
    %v2644 = vpop.f32.mrf.mxu0
    %v2645 = vadd.f32 %v2631, %v2644
    %2646 = vdwg.mxu0
    %2647 = vmatpush.bf16.msra.mxu0 %v2031
    %2648 = vmatpush.bf16.msra.mxu0 %v2027
    %2649 = vmatpush.bf16.msra.mxu0 %v2023
    %2650 = vmatpush.bf16.msra.mxu0 %v2019
    %2651 = vmatpush.bf16.msra.mxu0 %v2015
    %2652 = vmatpush.bf16.msra.mxu0 %v2011
    %2653 = vmatpush.bf16.msra.mxu0 %v2007
    %2654 = vmatpush.bf16.msra.mxu0 %v2003
    %2655 = vmatmul.bf16.gmra.mxu0 %v804
    %v2656 = vpop.f32.mrf.mxu0
    %v2657 = vadd.f32 %v2643, %v2656
    %v2658 = vpop.f32.mrf.mxu0
    %v2659 = vadd.f32 %v2645, %v2658
    %2660 = vdwg.mxu0
    %2661 = vmatpush.bf16.msra.mxu0 %v2063
    %2662 = vmatpush.bf16.msra.mxu0 %v2059
    %2663 = vmatpush.bf16.msra.mxu0 %v2055
    %2664 = vmatpush.bf16.msra.mxu0 %v2051
    %2665 = vmatpush.bf16.msra.mxu0 %v2047
    %2666 = vmatpush.bf16.msra.mxu0 %v2043
    %2667 = vmatpush.bf16.msra.mxu0 %v2039
    %2668 = vmatpush.bf16.msra.mxu0 %v2035
    %2669 = vmatmul.bf16.gmra.mxu0 %v805
    %v2670 = vpop.f32.mrf.mxu0
    %v2671 = vadd.f32 %v2657, %v2670
    %v2672 = vpop.f32.mrf.mxu0
    %v2673 = vadd.f32 %v2659, %v2672
    %2674 = vdwg.mxu0
    %2675 = vmatpush.bf16.msra.mxu0 %v2095
    %2676 = vmatpush.bf16.msra.mxu0 %v2091
    %2677 = vmatpush.bf16.msra.mxu0 %v2087
    %2678 = vmatpush.bf16.msra.mxu0 %v2083
    %2679 = vmatpush.bf16.msra.mxu0 %v2079
    %2680 = vmatpush.bf16.msra.mxu0 %v2075
    %2681 = vmatpush.bf16.msra.mxu0 %v2071
    %2682 = vmatpush.bf16.msra.mxu0 %v2067
    %2683 = vmatmul.bf16.gmra.mxu0 %v806
    %v2684 = vpop.f32.mrf.mxu0
    %v2685 = vadd.f32 %v2671, %v2684
    %v2686 = vpop.f32.mrf.mxu0
    %v2687 = vadd.f32 %v2673, %v2686
    %2688 = vdwg.mxu0
    %2689 = vmatpush.bf16.msra.mxu0 %v1872
    %2690 = vmatpush.bf16.msra.mxu0 %v1868
    %2691 = vmatpush.bf16.msra.mxu0 %v1864
    %2692 = vmatpush.bf16.msra.mxu0 %v1860
    %2693 = vmatpush.bf16.msra.mxu0 %v1856
    %2694 = vmatpush.bf16.msra.mxu0 %v1852
    %2695 = vmatpush.bf16.msra.mxu0 %v1848
    %2696 = vmatpush.bf16.msra.mxu0 %v1844
    %2697 = vmatmul.bf16.gmra.mxu0 %v799
    %v2698 = vpop.f32.mrf.mxu0
    %v2699 = vadd.f32 %v1068, %v2698
    %v2700 = vpop.f32.mrf.mxu0
    %v2701 = vadd.f32 %v1068, %v2700
    %2702 = vdwg.mxu0
    %2703 = vmatpush.bf16.msra.mxu0 %v1904
    %2704 = vmatpush.bf16.msra.mxu0 %v1900
    %2705 = vmatpush.bf16.msra.mxu0 %v1896
    %2706 = vmatpush.bf16.msra.mxu0 %v1892
    %2707 = vmatpush.bf16.msra.mxu0 %v1888
    %2708 = vmatpush.bf16.msra.mxu0 %v1884
    %2709 = vmatpush.bf16.msra.mxu0 %v1880
    %2710 = vmatpush.bf16.msra.mxu0 %v1876
    %2711 = vmatmul.bf16.gmra.mxu0 %v800
    %v2712 = vpop.f32.mrf.mxu0
    %v2713 = vadd.f32 %v2699, %v2712
    %v2714 = vpop.f32.mrf.mxu0
    %v2715 = vadd.f32 %v2701, %v2714
    %2716 = vdwg.mxu0
    %2717 = vmatpush.bf16.msra.mxu0 %v1936
    %2718 = vmatpush.bf16.msra.mxu0 %v1932
    %2719 = vmatpush.bf16.msra.mxu0 %v1928
    %2720 = vmatpush.bf16.msra.mxu0 %v1924
    %2721 = vmatpush.bf16.msra.mxu0 %v1920
    %2722 = vmatpush.bf16.msra.mxu0 %v1916
    %2723 = vmatpush.bf16.msra.mxu0 %v1912
    %2724 = vmatpush.bf16.msra.mxu0 %v1908
    %2725 = vmatmul.bf16.gmra.mxu0 %v801
    %v2726 = vpop.f32.mrf.mxu0
    %v2727 = vadd.f32 %v2713, %v2726
    %v2728 = vpop.f32.mrf.mxu0
    %v2729 = vadd.f32 %v2715, %v2728
    %2730 = vdwg.mxu0
    %2731 = vmatpush.bf16.msra.mxu0 %v1968
    %2732 = vmatpush.bf16.msra.mxu0 %v1964
    %2733 = vmatpush.bf16.msra.mxu0 %v1960
    %2734 = vmatpush.bf16.msra.mxu0 %v1956
    %2735 = vmatpush.bf16.msra.mxu0 %v1952
    %2736 = vmatpush.bf16.msra.mxu0 %v1948
    %2737 = vmatpush.bf16.msra.mxu0 %v1944
    %2738 = vmatpush.bf16.msra.mxu0 %v1940
    %2739 = vmatmul.bf16.gmra.mxu0 %v802
    %v2740 = vpop.f32.mrf.mxu0
    %v2741 = vadd.f32 %v2727, %v2740
    %v2742 = vpop.f32.mrf.mxu0
    %v2743 = vadd.f32 %v2729, %v2742
    %2744 = vdwg.mxu0
    %2745 = vmatpush.bf16.msra.mxu0 %v2000
    %2746 = vmatpush.bf16.msra.mxu0 %v1996
    %2747 = vmatpush.bf16.msra.mxu0 %v1992
    %2748 = vmatpush.bf16.msra.mxu0 %v1988
    %2749 = vmatpush.bf16.msra.mxu0 %v1984
    %2750 = vmatpush.bf16.msra.mxu0 %v1980
    %2751 = vmatpush.bf16.msra.mxu0 %v1976
    %2752 = vmatpush.bf16.msra.mxu0 %v1972
    %2753 = vmatmul.bf16.gmra.mxu0 %v803
    %v2754 = vpop.f32.mrf.mxu0
    %v2755 = vadd.f32 %v2741, %v2754
    %v2756 = vpop.f32.mrf.mxu0
    %v2757 = vadd.f32 %v2743, %v2756
    %2758 = vdwg.mxu0
    %2759 = vmatpush.bf16.msra.mxu0 %v2032
    %2760 = vmatpush.bf16.msra.mxu0 %v2028
    %2761 = vmatpush.bf16.msra.mxu0 %v2024
    %2762 = vmatpush.bf16.msra.mxu0 %v2020
    %2763 = vmatpush.bf16.msra.mxu0 %v2016
    %2764 = vmatpush.bf16.msra.mxu0 %v2012
    %2765 = vmatpush.bf16.msra.mxu0 %v2008
    %2766 = vmatpush.bf16.msra.mxu0 %v2004
    %2767 = vmatmul.bf16.gmra.mxu0 %v804
    %v2768 = vpop.f32.mrf.mxu0
    %v2769 = vadd.f32 %v2755, %v2768
    %v2770 = vpop.f32.mrf.mxu0
    %v2771 = vadd.f32 %v2757, %v2770
    %2772 = vdwg.mxu0
    %2773 = vmatpush.bf16.msra.mxu0 %v2064
    %2774 = vmatpush.bf16.msra.mxu0 %v2060
    %2775 = vmatpush.bf16.msra.mxu0 %v2056
    %2776 = vmatpush.bf16.msra.mxu0 %v2052
    %2777 = vmatpush.bf16.msra.mxu0 %v2048
    %2778 = vmatpush.bf16.msra.mxu0 %v2044
    %2779 = vmatpush.bf16.msra.mxu0 %v2040
    %2780 = vmatpush.bf16.msra.mxu0 %v2036
    %2781 = vmatmul.bf16.gmra.mxu0 %v805
    %v2782 = vpop.f32.mrf.mxu0
    %v2783 = vadd.f32 %v2769, %v2782
    %v2784 = vpop.f32.mrf.mxu0
    %v2785 = vadd.f32 %v2771, %v2784
    %2786 = vdwg.mxu0
    %2787 = vmatpush.bf16.msra.mxu0 %v2096
    %2788 = vmatpush.bf16.msra.mxu0 %v2092
    %2789 = vmatpush.bf16.msra.mxu0 %v2088
    %2790 = vmatpush.bf16.msra.mxu0 %v2084
    %2791 = vmatpush.bf16.msra.mxu0 %v2080
    %2792 = vmatpush.bf16.msra.mxu0 %v2076
    %2793 = vmatpush.bf16.msra.mxu0 %v2072
    %2794 = vmatpush.bf16.msra.mxu0 %v2068
    %2795 = vmatmul.bf16.gmra.mxu0 %v806
    %v2796 = vpop.f32.mrf.mxu0
    %v2797 = vadd.f32 %v2783, %v2796
    %v2798 = vpop.f32.mrf.mxu0
    %v2799 = vadd.f32 %v2785, %v2798
    %2800 = vdwg.mxu0
    %vm2801 = vcmp.gt.f32.partialorder %v2461, 0.0
    %vm2802 = vcmp.gt.f32.partialorder %v2573, 0.0
    %vm2803 = vcmp.gt.f32.partialorder %v2685, 0.0
    %vm2804 = vcmp.gt.f32.partialorder %v2797, 0.0
    %vm2805 = vcmp.gt.f32.partialorder %v2463, 0.0
    %vm2806 = vcmp.gt.f32.partialorder %v2575, 0.0
    %vm2807 = vcmp.gt.f32.partialorder %v2687, 0.0
    %vm2808 = vcmp.gt.f32.partialorder %v2799, 0.0
    %v2809 = vmul.f32 %v2461, 0.01
    %v2810 = vmul.f32 %v2573, 0.01
    %v2811 = vmul.f32 %v2685, 0.01
    %v2812 = vmul.f32 %v2797, 0.01
    %v2813 = vmul.f32 %v2463, 0.01
    %v2814 = vmul.f32 %v2575, 0.01
    %v2815 = vmul.f32 %v2687, 0.01
    %v2816 = vmul.f32 %v2799, 0.01
    %v2817 = vsel %vm2801, %v2461, %v2809
    %v2818 = vsel %vm2802, %v2573, %v2810
    %v2819 = vsel %vm2803, %v2685, %v2811
    %v2820 = vsel %vm2804, %v2797, %v2812
    %v2821 = vsel %vm2805, %v2463, %v2813
    %v2822 = vsel %vm2806, %v2575, %v2814
    %v2823 = vsel %vm2807, %v2687, %v2815
    %v2824 = vsel %vm2808, %v2799, %v2816
    %v2825 = vpack.c.bf16 %v2821, %v2817
    %v2826 = vpack.c.bf16 %v2822, %v2818
    %v2827 = vpack.c.bf16 %v2823, %v2819
    %v2828 = vpack.c.bf16 %v2824, %v2820
    %v2829 = vld [vmem:[#allocation7] sm:$0xff]
    %v2830 = vld [vmem:[#allocation7 + $0x8] sm:$0xff]
    %v2831 = vld [vmem:[#allocation7 + $0x10] sm:$0xff]
    %v2832 = vld [vmem:[#allocation7 + $0x18] sm:$0xff]
    %v2833 = vld [vmem:[#allocation7 + $0x20] sm:$0xff]
    %v2834 = vld [vmem:[#allocation7 + $0x28] sm:$0xff]
    %v2835 = vld [vmem:[#allocation7 + $0x30] sm:$0xff]
    %v2836 = vld [vmem:[#allocation7 + $0x38] sm:$0xff]
    %v2837 = vld [vmem:[#allocation7 + $0x40] sm:$0xff]
    %v2838 = vld [vmem:[#allocation7 + $0x48] sm:$0xff]
    %v2839 = vld [vmem:[#allocation7 + $0x50] sm:$0xff]
    %v2840 = vld [vmem:[#allocation7 + $0x58] sm:$0xff]
    %v2841 = vld [vmem:[#allocation7 + $0x60] sm:$0xff]
    %v2842 = vld [vmem:[#allocation7 + $0x68] sm:$0xff]
    %v2843 = vld [vmem:[#allocation7 + $0x70] sm:$0xff]
    %v2844 = vld [vmem:[#allocation7 + $0x78] sm:$0xff]
    %v2845 = vld [vmem:[#allocation7 + $0x80] sm:$0xff]
    %v2846 = vld [vmem:[#allocation7 + $0x88] sm:$0xff]
    %v2847 = vld [vmem:[#allocation7 + $0x90] sm:$0xff]
    %v2848 = vld [vmem:[#allocation7 + $0x98] sm:$0xff]
    %v2849 = vld [vmem:[#allocation7 + $0xa0] sm:$0xff]
    %v2850 = vld [vmem:[#allocation7 + $0xa8] sm:$0xff]
    %v2851 = vld [vmem:[#allocation7 + $0xb0] sm:$0xff]
    %v2852 = vld [vmem:[#allocation7 + $0xb8] sm:$0xff]
    %v2853 = vld [vmem:[#allocation7 + $0xc0] sm:$0xff]
    %v2854 = vld [vmem:[#allocation7 + $0xc8] sm:$0xff]
    %v2855 = vld [vmem:[#allocation7 + $0xd0] sm:$0xff]
    %v2856 = vld [vmem:[#allocation7 + $0xd8] sm:$0xff]
    %v2857 = vld [vmem:[#allocation7 + $0xe0] sm:$0xff]
    %v2858 = vld [vmem:[#allocation7 + $0xe8] sm:$0xff]
    %v2859 = vld [vmem:[#allocation7 + $0xf0] sm:$0xff]
    %v2860 = vld [vmem:[#allocation7 + $0xf8] sm:$0xff]
    %v2861 = vld [vmem:[#allocation7 + $0x100] sm:$0xff]
    %v2862 = vld [vmem:[#allocation7 + $0x108] sm:$0xff]
    %v2863 = vld [vmem:[#allocation7 + $0x110] sm:$0xff]
    %v2864 = vld [vmem:[#allocation7 + $0x118] sm:$0xff]
    %v2865 = vld [vmem:[#allocation7 + $0x120] sm:$0xff]
    %v2866 = vld [vmem:[#allocation7 + $0x128] sm:$0xff]
    %v2867 = vld [vmem:[#allocation7 + $0x130] sm:$0xff]
    %v2868 = vld [vmem:[#allocation7 + $0x138] sm:$0xff]
    %v2869 = vld [vmem:[#allocation7 + $0x140] sm:$0xff]
    %v2870 = vld [vmem:[#allocation7 + $0x148] sm:$0xff]
    %v2871 = vld [vmem:[#allocation7 + $0x150] sm:$0xff]
    %v2872 = vld [vmem:[#allocation7 + $0x158] sm:$0xff]
    %v2873 = vld [vmem:[#allocation7 + $0x160] sm:$0xff]
    %v2874 = vld [vmem:[#allocation7 + $0x168] sm:$0xff]
    %v2875 = vld [vmem:[#allocation7 + $0x170] sm:$0xff]
    %v2876 = vld [vmem:[#allocation7 + $0x178] sm:$0xff]
    %v2877 = vld [vmem:[#allocation7 + $0x180] sm:$0xff]
    %v2878 = vld [vmem:[#allocation7 + $0x188] sm:$0xff]
    %v2879 = vld [vmem:[#allocation7 + $0x190] sm:$0xff]
    %v2880 = vld [vmem:[#allocation7 + $0x198] sm:$0xff]
    %v2881 = vld [vmem:[#allocation7 + $0x1a0] sm:$0xff]
    %v2882 = vld [vmem:[#allocation7 + $0x1a8] sm:$0xff]
    %v2883 = vld [vmem:[#allocation7 + $0x1b0] sm:$0xff]
    %v2884 = vld [vmem:[#allocation7 + $0x1b8] sm:$0xff]
    %v2885 = vld [vmem:[#allocation7 + $0x1c0] sm:$0xff]
    %v2886 = vld [vmem:[#allocation7 + $0x1c8] sm:$0xff]
    %v2887 = vld [vmem:[#allocation7 + $0x1d0] sm:$0xff]
    %v2888 = vld [vmem:[#allocation7 + $0x1d8] sm:$0xff]
    %v2889 = vld [vmem:[#allocation7 + $0x1e0] sm:$0xff]
    %v2890 = vld [vmem:[#allocation7 + $0x1e8] sm:$0xff]
    %v2891 = vld [vmem:[#allocation7 + $0x1f0] sm:$0xff]
    %v2892 = vld [vmem:[#allocation7 + $0x1f8] sm:$0xff]
    %v2893 = vld [vmem:[%s8] sm:$0x3]
    %v2895 = vperm.slane %v2893, 0
    %v2896 = vperm.slane %v2893, 1
    %v2963 = vunpack.c.l.b16 %v2829
    %v2964 = vunpack.c.h.b16 %v2829
    %v2965 = vunpack.c.l.b16 %v2830
    %v2966 = vunpack.c.h.b16 %v2830
    %v2967 = vunpack.c.l.b16 %v2831
    %v2968 = vunpack.c.h.b16 %v2831
    %v2969 = vunpack.c.l.b16 %v2832
    %v2970 = vunpack.c.h.b16 %v2832
    %v2971 = vunpack.c.l.b16 %v2833
    %v2972 = vunpack.c.h.b16 %v2833
    %v2973 = vunpack.c.l.b16 %v2834
    %v2974 = vunpack.c.h.b16 %v2834
    %v2975 = vunpack.c.l.b16 %v2835
    %v2976 = vunpack.c.h.b16 %v2835
    %v2977 = vunpack.c.l.b16 %v2836
    %v2978 = vunpack.c.h.b16 %v2836
    %v2979 = vunpack.c.l.b16 %v2837
    %v2980 = vunpack.c.h.b16 %v2837
    %v2981 = vunpack.c.l.b16 %v2838
    %v2982 = vunpack.c.h.b16 %v2838
    %v2983 = vunpack.c.l.b16 %v2839
    %v2984 = vunpack.c.h.b16 %v2839
    %v2985 = vunpack.c.l.b16 %v2840
    %v2986 = vunpack.c.h.b16 %v2840
    %v2987 = vunpack.c.l.b16 %v2841
    %v2988 = vunpack.c.h.b16 %v2841
    %v2989 = vunpack.c.l.b16 %v2842
    %v2990 = vunpack.c.h.b16 %v2842
    %v2991 = vunpack.c.l.b16 %v2843
    %v2992 = vunpack.c.h.b16 %v2843
    %v2993 = vunpack.c.l.b16 %v2844
    %v2994 = vunpack.c.h.b16 %v2844
    %v2995 = vunpack.c.l.b16 %v2845
    %v2996 = vunpack.c.h.b16 %v2845
    %v2997 = vunpack.c.l.b16 %v2846
    %v2998 = vunpack.c.h.b16 %v2846
    %v2999 = vunpack.c.l.b16 %v2847
    %v3000 = vunpack.c.h.b16 %v2847
    %v3001 = vunpack.c.l.b16 %v2848
    %v3002 = vunpack.c.h.b16 %v2848
    %v3003 = vunpack.c.l.b16 %v2849
    %v3004 = vunpack.c.h.b16 %v2849
    %v3005 = vunpack.c.l.b16 %v2850
    %v3006 = vunpack.c.h.b16 %v2850
    %v3007 = vunpack.c.l.b16 %v2851
    %v3008 = vunpack.c.h.b16 %v2851
    %v3009 = vunpack.c.l.b16 %v2852
    %v3010 = vunpack.c.h.b16 %v2852
    %v3011 = vunpack.c.l.b16 %v2853
    %v3012 = vunpack.c.h.b16 %v2853
    %v3013 = vunpack.c.l.b16 %v2854
    %v3014 = vunpack.c.h.b16 %v2854
    %v3015 = vunpack.c.l.b16 %v2855
    %v3016 = vunpack.c.h.b16 %v2855
    %v3017 = vunpack.c.l.b16 %v2856
    %v3018 = vunpack.c.h.b16 %v2856
    %v3019 = vunpack.c.l.b16 %v2857
    %v3020 = vunpack.c.h.b16 %v2857
    %v3021 = vunpack.c.l.b16 %v2858
    %v3022 = vunpack.c.h.b16 %v2858
    %v3023 = vunpack.c.l.b16 %v2859
    %v3024 = vunpack.c.h.b16 %v2859
    %v3025 = vunpack.c.l.b16 %v2860
    %v3026 = vunpack.c.h.b16 %v2860
    %v3027 = vunpack.c.l.b16 %v2861
    %v3028 = vunpack.c.h.b16 %v2861
    %v3029 = vunpack.c.l.b16 %v2862
    %v3030 = vunpack.c.h.b16 %v2862
    %v3031 = vunpack.c.l.b16 %v2863
    %v3032 = vunpack.c.h.b16 %v2863
    %v3033 = vunpack.c.l.b16 %v2864
    %v3034 = vunpack.c.h.b16 %v2864
    %v3035 = vunpack.c.l.b16 %v2865
    %v3036 = vunpack.c.h.b16 %v2865
    %v3037 = vunpack.c.l.b16 %v2866
    %v3038 = vunpack.c.h.b16 %v2866
    %v3039 = vunpack.c.l.b16 %v2867
    %v3040 = vunpack.c.h.b16 %v2867
    %v3041 = vunpack.c.l.b16 %v2868
    %v3042 = vunpack.c.h.b16 %v2868
    %v3043 = vunpack.c.l.b16 %v2869
    %v3044 = vunpack.c.h.b16 %v2869
    %v3045 = vunpack.c.l.b16 %v2870
    %v3046 = vunpack.c.h.b16 %v2870
    %v3047 = vunpack.c.l.b16 %v2871
    %v3048 = vunpack.c.h.b16 %v2871
    %v3049 = vunpack.c.l.b16 %v2872
    %v3050 = vunpack.c.h.b16 %v2872
    %v3051 = vunpack.c.l.b16 %v2873
    %v3052 = vunpack.c.h.b16 %v2873
    %v3053 = vunpack.c.l.b16 %v2874
    %v3054 = vunpack.c.h.b16 %v2874
    %v3055 = vunpack.c.l.b16 %v2875
    %v3056 = vunpack.c.h.b16 %v2875
    %v3057 = vunpack.c.l.b16 %v2876
    %v3058 = vunpack.c.h.b16 %v2876
    %v3059 = vunpack.c.l.b16 %v2877
    %v3060 = vunpack.c.h.b16 %v2877
    %v3061 = vunpack.c.l.b16 %v2878
    %v3062 = vunpack.c.h.b16 %v2878
    %v3063 = vunpack.c.l.b16 %v2879
    %v3064 = vunpack.c.h.b16 %v2879
    %v3065 = vunpack.c.l.b16 %v2880
    %v3066 = vunpack.c.h.b16 %v2880
    %v3067 = vunpack.c.l.b16 %v2881
    %v3068 = vunpack.c.h.b16 %v2881
    %v3069 = vunpack.c.l.b16 %v2882
    %v3070 = vunpack.c.h.b16 %v2882
    %v3071 = vunpack.c.l.b16 %v2883
    %v3072 = vunpack.c.h.b16 %v2883
    %v3073 = vunpack.c.l.b16 %v2884
    %v3074 = vunpack.c.h.b16 %v2884
    %v3075 = vunpack.c.l.b16 %v2885
    %v3076 = vunpack.c.h.b16 %v2885
    %v3077 = vunpack.c.l.b16 %v2886
    %v3078 = vunpack.c.h.b16 %v2886
    %v3079 = vunpack.c.l.b16 %v2887
    %v3080 = vunpack.c.h.b16 %v2887
    %v3081 = vunpack.c.l.b16 %v2888
    %v3082 = vunpack.c.h.b16 %v2888
    %v3083 = vunpack.c.l.b16 %v2889
    %v3084 = vunpack.c.h.b16 %v2889
    %v3085 = vunpack.c.l.b16 %v2890
    %v3086 = vunpack.c.h.b16 %v2890
    %v3087 = vunpack.c.l.b16 %v2891
    %v3088 = vunpack.c.h.b16 %v2891
    %v3089 = vunpack.c.l.b16 %v2892
    %v3090 = vunpack.c.h.b16 %v2892
    %v3091 = vpack.c.b16 %v2965, %v2963
    %v3092 = vpack.c.b16 %v2966, %v2964
    %v3093 = vpack.c.b16 %v2969, %v2967
    %v3094 = vpack.c.b16 %v2970, %v2968
    %v3095 = vpack.c.b16 %v2973, %v2971
    %v3096 = vpack.c.b16 %v2974, %v2972
    %v3097 = vpack.c.b16 %v2977, %v2975
    %v3098 = vpack.c.b16 %v2978, %v2976
    %v3099 = vpack.c.b16 %v2981, %v2979
    %v3100 = vpack.c.b16 %v2982, %v2980
    %v3101 = vpack.c.b16 %v2985, %v2983
    %v3102 = vpack.c.b16 %v2986, %v2984
    %v3103 = vpack.c.b16 %v2989, %v2987
    %v3104 = vpack.c.b16 %v2990, %v2988
    %v3105 = vpack.c.b16 %v2993, %v2991
    %v3106 = vpack.c.b16 %v2994, %v2992
    %v3107 = vpack.c.b16 %v2997, %v2995
    %v3108 = vpack.c.b16 %v2998, %v2996
    %v3109 = vpack.c.b16 %v3001, %v2999
    %v3110 = vpack.c.b16 %v3002, %v3000
    %v3111 = vpack.c.b16 %v3005, %v3003
    %v3112 = vpack.c.b16 %v3006, %v3004
    %v3113 = vpack.c.b16 %v3009, %v3007
    %v3114 = vpack.c.b16 %v3010, %v3008
    %v3115 = vpack.c.b16 %v3013, %v3011
    %v3116 = vpack.c.b16 %v3014, %v3012
    %v3117 = vpack.c.b16 %v3017, %v3015
    %v3118 = vpack.c.b16 %v3018, %v3016
    %v3119 = vpack.c.b16 %v3021, %v3019
    %v3120 = vpack.c.b16 %v3022, %v3020
    %v3121 = vpack.c.b16 %v3025, %v3023
    %v3122 = vpack.c.b16 %v3026, %v3024
    %v3123 = vpack.c.b16 %v3029, %v3027
    %v3124 = vpack.c.b16 %v3030, %v3028
    %v3125 = vpack.c.b16 %v3033, %v3031
    %v3126 = vpack.c.b16 %v3034, %v3032
    %v3127 = vpack.c.b16 %v3037, %v3035
    %v3128 = vpack.c.b16 %v3038, %v3036
    %v3129 = vpack.c.b16 %v3041, %v3039
    %v3130 = vpack.c.b16 %v3042, %v3040
    %v3131 = vpack.c.b16 %v3045, %v3043
    %v3132 = vpack.c.b16 %v3046, %v3044
    %v3133 = vpack.c.b16 %v3049, %v3047
    %v3134 = vpack.c.b16 %v3050, %v3048
    %v3135 = vpack.c.b16 %v3053, %v3051
    %v3136 = vpack.c.b16 %v3054, %v3052
    %v3137 = vpack.c.b16 %v3057, %v3055
    %v3138 = vpack.c.b16 %v3058, %v3056
    %v3139 = vpack.c.b16 %v3061, %v3059
    %v3140 = vpack.c.b16 %v3062, %v3060
    %v3141 = vpack.c.b16 %v3065, %v3063
    %v3142 = vpack.c.b16 %v3066, %v3064
    %v3143 = vpack.c.b16 %v3069, %v3067
    %v3144 = vpack.c.b16 %v3070, %v3068
    %v3145 = vpack.c.b16 %v3073, %v3071
    %v3146 = vpack.c.b16 %v3074, %v3072
    %v3147 = vpack.c.b16 %v3077, %v3075
    %v3148 = vpack.c.b16 %v3078, %v3076
    %v3149 = vpack.c.b16 %v3081, %v3079
    %v3150 = vpack.c.b16 %v3082, %v3080
    %v3151 = vpack.c.b16 %v3085, %v3083
    %v3152 = vpack.c.b16 %v3086, %v3084
    %v3153 = vpack.c.b16 %v3089, %v3087
    %v3154 = vpack.c.b16 %v3090, %v3088
    %3219 = vmatpush.bf16.msra.mxu0 %v3105
    %3220 = vmatpush.bf16.msra.mxu0 %v3103
    %3221 = vmatpush.bf16.msra.mxu0 %v3101
    %3222 = vmatpush.bf16.msra.mxu0 %v3099
    %3223 = vmatpush.bf16.msra.mxu0 %v3097
    %3224 = vmatpush.bf16.msra.mxu0 %v3095
    %3225 = vmatpush.bf16.msra.mxu0 %v3093
    %3226 = vmatpush.bf16.msra.mxu0 %v3091
    %3227 = vmatmul.bf16.gmra.mxu0 %v2825
    %v3228 = vpop.f32.mrf.mxu0
    %v3229 = vadd.f32 %v2895, %v3228
    %v3230 = vpop.f32.mrf.mxu0
    %v3231 = vadd.f32 %v2895, %v3230
    %3232 = vdwg.mxu0
    %3233 = vmatpush.bf16.msra.mxu0 %v3121
    %3234 = vmatpush.bf16.msra.mxu0 %v3119
    %3235 = vmatpush.bf16.msra.mxu0 %v3117
    %3236 = vmatpush.bf16.msra.mxu0 %v3115
    %3237 = vmatpush.bf16.msra.mxu0 %v3113
    %3238 = vmatpush.bf16.msra.mxu0 %v3111
    %3239 = vmatpush.bf16.msra.mxu0 %v3109
    %3240 = vmatpush.bf16.msra.mxu0 %v3107
    %3241 = vmatmul.bf16.gmra.mxu0 %v2826
    %v3242 = vpop.f32.mrf.mxu0
    %v3243 = vadd.f32 %v3229, %v3242
    %v3244 = vpop.f32.mrf.mxu0
    %v3245 = vadd.f32 %v3231, %v3244
    %3246 = vdwg.mxu0
    %3247 = vmatpush.bf16.msra.mxu0 %v3137
    %3248 = vmatpush.bf16.msra.mxu0 %v3135
    %3249 = vmatpush.bf16.msra.mxu0 %v3133
    %3250 = vmatpush.bf16.msra.mxu0 %v3131
    %3251 = vmatpush.bf16.msra.mxu0 %v3129
    %3252 = vmatpush.bf16.msra.mxu0 %v3127
    %3253 = vmatpush.bf16.msra.mxu0 %v3125
    %3254 = vmatpush.bf16.msra.mxu0 %v3123
    %3255 = vmatmul.bf16.gmra.mxu0 %v2827
    %v3256 = vpop.f32.mrf.mxu0
    %v3257 = vadd.f32 %v3243, %v3256
    %v3258 = vpop.f32.mrf.mxu0
    %v3259 = vadd.f32 %v3245, %v3258
    %3260 = vdwg.mxu0
    %3261 = vmatpush.bf16.msra.mxu0 %v3153
    %3262 = vmatpush.bf16.msra.mxu0 %v3151
    %3263 = vmatpush.bf16.msra.mxu0 %v3149
    %3264 = vmatpush.bf16.msra.mxu0 %v3147
    %3265 = vmatpush.bf16.msra.mxu0 %v3145
    %3266 = vmatpush.bf16.msra.mxu0 %v3143
    %3267 = vmatpush.bf16.msra.mxu0 %v3141
    %3268 = vmatpush.bf16.msra.mxu0 %v3139
    %3269 = vmatmul.bf16.gmra.mxu0 %v2828
    %v3270 = vpop.f32.mrf.mxu0
    %v3271 = vadd.f32 %v3257, %v3270
    %v3272 = vpop.f32.mrf.mxu0
    %v3273 = vadd.f32 %v3259, %v3272
    %3274 = vdwg.mxu0
    %3275 = vmatpush.bf16.msra.mxu0 %v3106
    %3276 = vmatpush.bf16.msra.mxu0 %v3104
    %3277 = vmatpush.bf16.msra.mxu0 %v3102
    %3278 = vmatpush.bf16.msra.mxu0 %v3100
    %3279 = vmatpush.bf16.msra.mxu0 %v3098
    %3280 = vmatpush.bf16.msra.mxu0 %v3096
    %3281 = vmatpush.bf16.msra.mxu0 %v3094
    %3282 = vmatpush.bf16.msra.mxu0 %v3092
    %3283 = vmatmul.bf16.gmra.mxu0 %v2825
    %v3284 = vpop.f32.mrf.mxu0
    %v3285 = vadd.f32 %v2896, %v3284
    %v3286 = vpop.f32.mrf.mxu0
    %v3287 = vadd.f32 %v2896, %v3286
    %3288 = vdwg.mxu0
    %3289 = vmatpush.bf16.msra.mxu0 %v3122
    %3290 = vmatpush.bf16.msra.mxu0 %v3120
    %3291 = vmatpush.bf16.msra.mxu0 %v3118
    %3292 = vmatpush.bf16.msra.mxu0 %v3116
    %3293 = vmatpush.bf16.msra.mxu0 %v3114
    %3294 = vmatpush.bf16.msra.mxu0 %v3112
    %3295 = vmatpush.bf16.msra.mxu0 %v3110
    %3296 = vmatpush.bf16.msra.mxu0 %v3108
    %3297 = vmatmul.bf16.gmra.mxu0 %v2826
    %v3298 = vpop.f32.mrf.mxu0
    %v3299 = vadd.f32 %v3285, %v3298
    %v3300 = vpop.f32.mrf.mxu0
    %v3301 = vadd.f32 %v3287, %v3300
    %3302 = vdwg.mxu0
    %3303 = vmatpush.bf16.msra.mxu0 %v3138
    %3304 = vmatpush.bf16.msra.mxu0 %v3136
    %3305 = vmatpush.bf16.msra.mxu0 %v3134
    %3306 = vmatpush.bf16.msra.mxu0 %v3132
    %3307 = vmatpush.bf16.msra.mxu0 %v3130
    %3308 = vmatpush.bf16.msra.mxu0 %v3128
    %3309 = vmatpush.bf16.msra.mxu0 %v3126
    %3310 = vmatpush.bf16.msra.mxu0 %v3124
    %3311 = vmatmul.bf16.gmra.mxu0 %v2827
    %v3312 = vpop.f32.mrf.mxu0
    %v3313 = vadd.f32 %v3299, %v3312
    %v3314 = vpop.f32.mrf.mxu0
    %v3315 = vadd.f32 %v3301, %v3314
    %3316 = vdwg.mxu0
    %3317 = vmatpush.bf16.msra.mxu0 %v3154
    %3318 = vmatpush.bf16.msra.mxu0 %v3152
    %3319 = vmatpush.bf16.msra.mxu0 %v3150
    %3320 = vmatpush.bf16.msra.mxu0 %v3148
    %3321 = vmatpush.bf16.msra.mxu0 %v3146
    %3322 = vmatpush.bf16.msra.mxu0 %v3144
    %3323 = vmatpush.bf16.msra.mxu0 %v3142
    %3324 = vmatpush.bf16.msra.mxu0 %v3140
    %3325 = vmatmul.bf16.gmra.mxu0 %v2828
    %v3326 = vpop.f32.mrf.mxu0
    %v3327 = vadd.f32 %v3313, %v3326
    %v3328 = vpop.f32.mrf.mxu0
    %v3329 = vadd.f32 %v3315, %v3328
    %3330 = vdwg.mxu0
    %vm3331 = vcmp.gt.f32.partialorder %v3271, 0.0
    %vm3332 = vcmp.gt.f32.partialorder %v3327, 0.0
    %vm3333 = vcmp.gt.f32.partialorder %v3273, 0.0
    %vm3334 = vcmp.gt.f32.partialorder %v3329, 0.0
    %v3335 = vmul.f32 %v3271, 0.01
    %v3336 = vmul.f32 %v3327, 0.01
    %v3337 = vmul.f32 %v3273, 0.01
    %v3338 = vmul.f32 %v3329, 0.01
    %v3339 = vsel %vm3331, %v3271, %v3335
    %v3340 = vsel %vm3332, %v3327, %v3336
    %v3341 = vsel %vm3333, %v3273, %v3337
    %v3342 = vsel %vm3334, %v3329, %v3338
    %v3343 = vpack.c.bf16 %v3341, %v3339
    %v3344 = vpack.c.bf16 %v3342, %v3340
    %v3345 = vld [vmem:[#allocation9] sm:$0xf]
    %v3346 = vld [vmem:[#allocation9 + $0x4] sm:$0xf]
    %v3347 = vld [vmem:[#allocation9 + $0x8] sm:$0xf]
    %v3348 = vld [vmem:[#allocation9 + $0xc] sm:$0xf]
    %v3349 = vld [vmem:[#allocation9 + $0x10] sm:$0xf]
    %v3350 = vld [vmem:[#allocation9 + $0x14] sm:$0xf]
    %v3351 = vld [vmem:[#allocation9 + $0x18] sm:$0xf]
    %v3352 = vld [vmem:[#allocation9 + $0x1c] sm:$0xf]
    %v3353 = vld [vmem:[#allocation9 + $0x20] sm:$0xf]
    %v3354 = vld [vmem:[#allocation9 + $0x24] sm:$0xf]
    %v3355 = vld [vmem:[#allocation9 + $0x28] sm:$0xf]
    %v3356 = vld [vmem:[#allocation9 + $0x2c] sm:$0xf]
    %v3357 = vld [vmem:[#allocation9 + $0x30] sm:$0xf]
    %v3358 = vld [vmem:[#allocation9 + $0x34] sm:$0xf]
    %v3359 = vld [vmem:[#allocation9 + $0x38] sm:$0xf]
    %v3360 = vld [vmem:[#allocation9 + $0x3c] sm:$0xf]
    %v3361 = vld [vmem:[#allocation9 + $0x40] sm:$0xf]
    %v3362 = vld [vmem:[#allocation9 + $0x44] sm:$0xf]
    %v3363 = vld [vmem:[#allocation9 + $0x48] sm:$0xf]
    %v3364 = vld [vmem:[#allocation9 + $0x4c] sm:$0xf]
    %v3365 = vld [vmem:[#allocation9 + $0x50] sm:$0xf]
    %v3366 = vld [vmem:[#allocation9 + $0x54] sm:$0xf]
    %v3367 = vld [vmem:[#allocation9 + $0x58] sm:$0xf]
    %v3368 = vld [vmem:[#allocation9 + $0x5c] sm:$0xf]
    %v3369 = vld [vmem:[#allocation9 + $0x60] sm:$0xf]
    %v3370 = vld [vmem:[#allocation9 + $0x64] sm:$0xf]
    %v3371 = vld [vmem:[#allocation9 + $0x68] sm:$0xf]
    %v3372 = vld [vmem:[#allocation9 + $0x6c] sm:$0xf]
    %v3373 = vld [vmem:[#allocation9 + $0x70] sm:$0xf]
    %v3374 = vld [vmem:[#allocation9 + $0x74] sm:$0xf]
    %v3375 = vld [vmem:[#allocation9 + $0x78] sm:$0xf]
    %v3376 = vld [vmem:[#allocation9 + $0x7c] sm:$0xf]
    %v3377 = vld [vmem:[%s10] sm:$0x1]
    %v3379 = vperm.slane %v3377, 0
    %v3413 = vunpack.c.l.b16 %v3345
    %v3414 = vunpack.c.l.b16 %v3346
    %v3415 = vunpack.c.l.b16 %v3347
    %v3416 = vunpack.c.l.b16 %v3348
    %v3417 = vunpack.c.l.b16 %v3349
    %v3418 = vunpack.c.l.b16 %v3350
    %v3419 = vunpack.c.l.b16 %v3351
    %v3420 = vunpack.c.l.b16 %v3352
    %v3421 = vunpack.c.l.b16 %v3353
    %v3422 = vunpack.c.l.b16 %v3354
    %v3423 = vunpack.c.l.b16 %v3355
    %v3424 = vunpack.c.l.b16 %v3356
    %v3425 = vunpack.c.l.b16 %v3357
    %v3426 = vunpack.c.l.b16 %v3358
    %v3427 = vunpack.c.l.b16 %v3359
    %v3428 = vunpack.c.l.b16 %v3360
    %v3429 = vunpack.c.l.b16 %v3361
    %v3430 = vunpack.c.l.b16 %v3362
    %v3431 = vunpack.c.l.b16 %v3363
    %v3432 = vunpack.c.l.b16 %v3364
    %v3433 = vunpack.c.l.b16 %v3365
    %v3434 = vunpack.c.l.b16 %v3366
    %v3435 = vunpack.c.l.b16 %v3367
    %v3436 = vunpack.c.l.b16 %v3368
    %v3437 = vunpack.c.l.b16 %v3369
    %v3438 = vunpack.c.l.b16 %v3370
    %v3439 = vunpack.c.l.b16 %v3371
    %v3440 = vunpack.c.l.b16 %v3372
    %v3441 = vunpack.c.l.b16 %v3373
    %v3442 = vunpack.c.l.b16 %v3374
    %v3443 = vunpack.c.l.b16 %v3375
    %v3444 = vunpack.c.l.b16 %v3376
    %v3445 = vpack.c.b16 %v3414, %v3413
    %v3446 = vpack.c.b16 %v3416, %v3415
    %v3447 = vpack.c.b16 %v3418, %v3417
    %v3448 = vpack.c.b16 %v3420, %v3419
    %v3449 = vpack.c.b16 %v3422, %v3421
    %v3450 = vpack.c.b16 %v3424, %v3423
    %v3451 = vpack.c.b16 %v3426, %v3425
    %v3452 = vpack.c.b16 %v3428, %v3427
    %v3453 = vpack.c.b16 %v3430, %v3429
    %v3454 = vpack.c.b16 %v3432, %v3431
    %v3455 = vpack.c.b16 %v3434, %v3433
    %v3456 = vpack.c.b16 %v3436, %v3435
    %v3457 = vpack.c.b16 %v3438, %v3437
    %v3458 = vpack.c.b16 %v3440, %v3439
    %v3459 = vpack.c.b16 %v3442, %v3441
    %v3460 = vpack.c.b16 %v3444, %v3443
    %3477 = vmatpush.bf16.msra.mxu0 %v3452
    %3478 = vmatpush.bf16.msra.mxu0 %v3451
    %3479 = vmatpush.bf16.msra.mxu0 %v3450
    %3480 = vmatpush.bf16.msra.mxu0 %v3449
    %3481 = vmatpush.bf16.msra.mxu0 %v3448
    %3482 = vmatpush.bf16.msra.mxu0 %v3447
    %3483 = vmatpush.bf16.msra.mxu0 %v3446
    %3484 = vmatpush.bf16.msra.mxu0 %v3445
    %3485 = vmatmul.bf16.gmra.mxu0 %v3343
    %v3486 = vpop.f32.mrf.mxu0
    %v3487 = vadd.f32 %v3379, %v3486
    %v3488 = vpop.f32.mrf.mxu0
    %v3489 = vadd.f32 %v3379, %v3488
    %3490 = vdwg.mxu0
    %3491 = vmatpush.bf16.msra.mxu0 %v3460
    %3492 = vmatpush.bf16.msra.mxu0 %v3459
    %3493 = vmatpush.bf16.msra.mxu0 %v3458
    %3494 = vmatpush.bf16.msra.mxu0 %v3457
    %3495 = vmatpush.bf16.msra.mxu0 %v3456
    %3496 = vmatpush.bf16.msra.mxu0 %v3455
    %3497 = vmatpush.bf16.msra.mxu0 %v3454
    %3498 = vmatpush.bf16.msra.mxu0 %v3453
    %3499 = vmatmul.bf16.gmra.mxu0 %v3344
    %v3500 = vpop.f32.mrf.mxu0
    %v3501 = vadd.f32 %v3487, %v3500
    %v3502 = vpop.f32.mrf.mxu0
    %v3503 = vadd.f32 %v3489, %v3502
    %3504 = vdwg.mxu0
    %vm3505 = vcmp.gt.f32.partialorder %v3501, 0.0
    %vm3506 = vcmp.gt.f32.partialorder %v3503, 0.0
    %v3507 = vmul.f32 %v3501, 0.01
    %v3508 = vmul.f32 %v3503, 0.01
    %v3509 = vsel %vm3505, %v3501, %v3507
    %v3510 = vsel %vm3506, %v3503, %v3508
    %3511 = vst [vmem:[%s13] sm:$0xff] %v3509
    %3512 = vst [vmem:[%s13 + $0x8] sm:$0xff] %v3510
    %v3513 = vpack.c.bf16 %v3510, %v3509
    %v3514 = vld [vmem:[#allocation10] sm:$0xf]
    %v3515 = vld [vmem:[#allocation10 + $0x4] sm:$0xf]
    %v3516 = vld [vmem:[#allocation10 + $0x8] sm:$0xf]
    %v3517 = vld [vmem:[#allocation10 + $0xc] sm:$0xf]
    %v3518 = vld [vmem:[#allocation10 + $0x10] sm:$0xf]
    %v3519 = vld [vmem:[#allocation10 + $0x14] sm:$0xf]
    %v3520 = vld [vmem:[#allocation10 + $0x18] sm:$0xf]
    %v3521 = vld [vmem:[#allocation10 + $0x1c] sm:$0xf]
    %v3522 = vld [vmem:[#allocation10 + $0x20] sm:$0xf]
    %v3523 = vld [vmem:[#allocation10 + $0x24] sm:$0xf]
    %v3524 = vld [vmem:[#allocation10 + $0x28] sm:$0xf]
    %v3525 = vld [vmem:[#allocation10 + $0x2c] sm:$0xf]
    %v3526 = vld [vmem:[#allocation10 + $0x30] sm:$0xf]
    %v3527 = vld [vmem:[#allocation10 + $0x34] sm:$0xf]
    %v3528 = vld [vmem:[#allocation10 + $0x38] sm:$0xf]
    %v3529 = vld [vmem:[#allocation10 + $0x3c] sm:$0xf]
    %v3530 = vld [vmem:[%s12] sm:$0x1]
    %v3532 = vperm.slane %v3530, 0
    %v3550 = vunpack.c.l.b16 %v3514
    %v3551 = vunpack.c.l.b16 %v3515
    %v3552 = vunpack.c.l.b16 %v3516
    %v3553 = vunpack.c.l.b16 %v3517
    %v3554 = vunpack.c.l.b16 %v3518
    %v3555 = vunpack.c.l.b16 %v3519
    %v3556 = vunpack.c.l.b16 %v3520
    %v3557 = vunpack.c.l.b16 %v3521
    %v3558 = vunpack.c.l.b16 %v3522
    %v3559 = vunpack.c.l.b16 %v3523
    %v3560 = vunpack.c.l.b16 %v3524
    %v3561 = vunpack.c.l.b16 %v3525
    %v3562 = vunpack.c.l.b16 %v3526
    %v3563 = vunpack.c.l.b16 %v3527
    %v3564 = vunpack.c.l.b16 %v3528
    %v3565 = vunpack.c.l.b16 %v3529
    %v3566 = vpack.c.b16 %v3551, %v3550
    %v3567 = vpack.c.b16 %v3553, %v3552
    %v3568 = vpack.c.b16 %v3555, %v3554
    %v3569 = vpack.c.b16 %v3557, %v3556
    %v3570 = vpack.c.b16 %v3559, %v3558
    %v3571 = vpack.c.b16 %v3561, %v3560
    %v3572 = vpack.c.b16 %v3563, %v3562
    %v3573 = vpack.c.b16 %v3565, %v3564
    %3582 = vmatpush.bf16.msra.mxu0 %v3573
    %3583 = vmatpush.bf16.msra.mxu0 %v3572
    %3584 = vmatpush.bf16.msra.mxu0 %v3571
    %3585 = vmatpush.bf16.msra.mxu0 %v3570
    %3586 = vmatpush.bf16.msra.mxu0 %v3569
    %3587 = vmatpush.bf16.msra.mxu0 %v3568
    %3588 = vmatpush.bf16.msra.mxu0 %v3567
    %3589 = vmatpush.bf16.msra.mxu0 %v3566
    %3590 = vmatmul.bf16.gmra.mxu0 %v3513
    %v3591 = vpop.f32.mrf.mxu0
    %v3592 = vadd.f32 %v3532, %v3591
    %v3593 = vpop.f32.mrf.mxu0
    %v3594 = vadd.f32 %v3532, %v3593
    %3595 = vdwg.mxu0
    %v3596 = vpack.c.bf16 %v3592, %v3592
    %v3597 = vpack.c.bf16 %v3594, %v3594
    %3598 = vst [vmem:[%s14] sm:$0xf] %v3596
    %3599 = vst [vmem:[%s14 + $0x4] sm:$0xf] %v3597
    // Predicated region
    $region78: #{server_resnet_cat_forward.1} parent=1 // pred_check
      _
    $region79: #{server_resnet_cat_forward.1} parent=1 // pred_check_branch
      %3601 = sbr.rel (0) target = $region81
    $region80: #{server_resnet_cat_forward.1} parent=1 // pred_region
      _
    $region81: #{server_resnet_cat_forward.1} parent=1 // pred_fallthru
      _
    // Predicated region
    $region82: #{server_resnet_cat_forward.1} parent=1 // pred_check
      _
    $region83: #{server_resnet_cat_forward.1} parent=1 // pred_check_branch
      %3603 = sbr.rel (0) target = $region85
    $region84: #{server_resnet_cat_forward.1} parent=1 // pred_region
      _
    $region85: #{server_resnet_cat_forward.1} parent=1 // pred_fallthru
      _
    // Predicated region
    $region86: #{server_resnet_cat_forward.1} parent=1 // pred_check
      _
    $region87: #{server_resnet_cat_forward.1} parent=1 // pred_check_branch
      %3605 = sbr.rel (0) target = $region89
    $region88: #{server_resnet_cat_forward.1} parent=1 // pred_region
      _
    $region89: #{server_resnet_cat_forward.1} parent=1 // pred_fallthru
      _
    // Predicated region
    $region90: #{server_resnet_cat_forward.1} parent=1 // pred_check
      _
    $region91: #{server_resnet_cat_forward.1} parent=1 // pred_check_branch
      %3607 = sbr.rel (0) target = $region93
    $region92: #{server_resnet_cat_forward.1} parent=1 // pred_region
      _
    $region93: #{server_resnet_cat_forward.1} parent=1 // pred_fallthru
      _
    %3608 = vsyncpa [#allocation3], 1
    %3609 = vsyncpa [#allocation5], 1
    %3610 = vsyncpa [#allocation8], 1
    %3611 = vsyncpa [#allocation11], 1

</llo_original>
